<compile_context>
chip_gen: v5e
topology: v5e:2x2
jax: 0.10.0
libtpu: 0.0.40
codegen_flags: <defaults>
</compile_context>

<pallas_src>
import functools
import math

import jax
import jax.numpy as jnp
from jax import lax
from jax.experimental import pallas as pl
from jax.experimental.pallas import tpu as pltpu

# ----------------------------- module constants -----------------------------
IMAGE_EDGE = 24
VISION_TOKENS = IMAGE_EDGE * IMAGE_EDGE        # 576
POOL_K = IMAGE_EDGE // 2                       # 12
POOLED_EDGE = 1 + IMAGE_EDGE - POOL_K          # 13
SCALE_RATIO = 2
IMG_START = 5
IMG_END = IMG_START + VISION_TOKENS            # 581


def _vmem_limit(*block_bytes):
    """Right-sized VMEM request: double-buffered blocks + headroom for internal scratch."""
    return int(2 * sum(block_bytes) + (4 << 20))


# --------- kernel 1: attention column sums (only unmasked query rows) ---------
def _attn_colsum_kernel(x_ref, o_ref, *, num_heads, head_dim, seq_len):
    # x_ref: (1, S, H)   o_ref: (1, nh, S)
    x = x_ref[0]                                            # (S, H) f32
    inv_sqrt_hd = 1.0 / math.sqrt(head_dim)
    n_suf = seq_len - IMG_END                               # trailing text tokens

    # Masked query rows (q in [IMG_START, IMG_END)) become a constant row after the
    # f32 "+= finfo.min" -> uniform softmax -> each contributes 1/S to every column.
    uniform_const = float(VISION_TOKENS) / float(seq_len)

    # Gather the (S - 576) unmasked query rows once (static slices).
    parts = [x[0:IMG_START, :]]
    if n_suf > 0:
        parts.append(x[IMG_END:seq_len, :])
    x_un = jnp.concatenate(parts, axis=0) if len(parts) > 1 else parts[0]   # (8, H)

    rows = []
    for h in range(num_heads):                              # unrolled: back-to-back MXU
        sl = slice(h * head_dim, (h + 1) * head_dim)
        kh = x[:, sl].astype(jnp.bfloat16)                  # (S, hd)  bf16 MXU operands
        qh = x_un[:, sl].astype(jnp.bfloat16)               # (8, hd)
        scores = lax.dot_general(
            qh, kh, (((1,), (1,)), ((), ())),
            preferred_element_type=jnp.float32) * inv_sqrt_hd          # (8, S) f32
        m = jnp.max(scores, axis=-1, keepdims=True)
        e = jnp.exp(scores - m)                             # f32 exp (v5e: no bf16 EUP)
        p = e / jnp.sum(e, axis=-1, keepdims=True)          # exact divide (argmax feeds off it)
        # TODO(synk): attention dropout omitted (eval mode / attention_dropout == 0).
        rows.append(jnp.sum(p, axis=0, keepdims=True) + uniform_const)  # (1, S)

    # Single full-block store instead of num_heads masked 1-sublane stores.
    o_ref[0] = jnp.concatenate(rows, axis=0)                # (nh, S)


def attn_colsum(hidden_states, num_heads):
    b, s, h = hidden_states.shape
    hd = h // num_heads
    kernel = functools.partial(_attn_colsum_kernel, num_heads=num_heads,
                               head_dim=hd, seq_len=s)
    # NOTE(v7x): a second 'parallel' head axis would force sub-8-sublane output blocks
    # and output residency; grid=(B,) with B>=2 already spans both TensorCores.
    return pl.pallas_call(
        kernel,
        out_shape=jax.ShapeDtypeStruct((b, num_heads, s), jnp.float32),
        grid=(b,),
        in_specs=[pl.BlockSpec((1, s, h), lambda i: (i, 0, 0))],
        out_specs=pl.BlockSpec((1, num_heads, s), lambda i: (i, 0, 0)),
        compiler_params=pltpu.CompilerParams(
            dimension_semantics=("parallel",),
            vmem_limit_bytes=_vmem_limit(s * h * 4, num_heads * s * 4)),
    )(hidden_states)


# ------------- kernel 2: block-diagonal up_proj + per-head scale -------------
def _upproj_scale_kernel(x_ref, w_ref, s_ref, o_ref):
    # x_ref: (1, 144, H)  w_ref: (H, nh*4hd)  s_ref: (1, 1, nh*4hd)  o_ref: (1, 144, nh*4hd)
    y = jnp.dot(x_ref[0], w_ref[...], preferred_element_type=jnp.float32)
    o_ref[0] = y * s_ref[0]                                 # broadcast (1, N) over rows


def upproj_scale(windows_flat, w_bd, scale_vec):
    b, n, h = windows_flat.shape
    nout = w_bd.shape[1]
    return pl.pallas_call(
        _upproj_scale_kernel,
        out_shape=jax.ShapeDtypeStruct((b, n, nout), jnp.float32),
        grid=(b,),
        in_specs=[
            pl.BlockSpec((1, n, h), lambda i: (i, 0, 0)),
            pl.BlockSpec((h, nout), lambda i: (0, 0)),
            pl.BlockSpec((1, 1, nout), lambda i: (i, 0, 0)),
        ],
        out_specs=pl.BlockSpec((1, n, nout), lambda i: (i, 0, 0)),
        compiler_params=pltpu.CompilerParams(
            dimension_semantics=("parallel",),
            vmem_limit_bytes=_vmem_limit(n * h * 4, h * nout * 4,
                                         nout * 4, n * nout * 4)),
    )(windows_flat, w_bd, scale_vec)


# ------- kernel 3: fused splice + input_proj (N-tiled) + SiLU + residual -------
def _proj_act_residual_kernel(hs_ref, res_ref, img_ref, w_ref, o_ref, x_scr, *, seq_len):
    # hs_ref:  (1, S, H)   full hidden_states (splice source; resident across N tiles)
    # res_ref: (1, S, TN)  residual slice for this N tile
    # img_ref: (1, 576, H) rearranged image tokens
    # w_ref:   (H, TN)     input_proj weight tile, (in, out) layout
    # o_ref:   (1, S, TN)  output tile
    # x_scr:   (S, H)      spliced-input scratch, built once per batch element
    n_suf = seq_len - IMG_END

    @pl.when(pl.program_id(1) == 0)
    def _():
        # Splice: each destination row is written exactly once (no bulk copy+overwrite).
        x_scr[0:IMG_START, :] = hs_ref[0, 0:IMG_START, :]
        x_scr[pl.ds(IMG_START, VISION_TOKENS), :] = img_ref[0]
        if n_suf > 0:
            x_scr[pl.ds(IMG_END, n_suf), :] = hs_ref[0, pl.ds(IMG_END, n_suf), :]

    y = jnp.dot(x_scr[...], w_ref[...], preferred_element_type=jnp.float32)  # (S, TN)
    y = y * jax.nn.sigmoid(y)                               # SiLU (Mistral hidden_act)
    o_ref[0] = res_ref[0] + y


def proj_act_residual(hidden_states, image_out, w_t, *, n_tile=512):
    b, s, h = hidden_states.shape
    tn = h if h <= n_tile else n_tile            # N-tile the (H, H) weight at real dims
    nt = pl.cdiv(h, tn)
    kernel = functools.partial(_proj_act_residual_kernel, seq_len=s)
    vmem = _vmem_limit(s * h * 4, s * tn * 4, VISION_TOKENS * h * 4,
                       h * tn * 4, s * tn * 4, s * h * 4)
    return pl.pallas_call(
        kernel,
        out_shape=jax.ShapeDtypeStruct((b, s, h), jnp.float32),
        grid=(b, nt),
        in_specs=[
            pl.BlockSpec((1, s, h), lambda i, j: (i, 0, 0)),            # full hs (splice)
            pl.BlockSpec((1, s, tn), lambda i, j: (i, 0, j)),           # residual N tile
            pl.BlockSpec((1, VISION_TOKENS, h), lambda i, j: (i, 0, 0)),
            pl.BlockSpec((h, tn), lambda i, j: (0, j)),
        ],
        out_specs=pl.BlockSpec((1, s, tn), lambda i, j: (i, 0, j)),
        scratch_shapes=[pltpu.VMEM((s, h), jnp.float32)],
        compiler_params=pltpu.CompilerParams(
            dimension_semantics=("parallel", "arbitrary"),
            vmem_limit_bytes=vmem),
    )(hidden_states, hidden_states, image_out, w_t)


# ----------------------------- weight prep (outside jit) -----------------------------
def prepare_weights(w_input_proj, w_up_proj, num_heads):
    # nn.Linear weights are (out_features, in_features); kernels consume (in, out).
    w_input_proj_t = jnp.asarray(w_input_proj).T
    # Block-diagonal up_proj weight, hoisted out of the jitted forward (built once).
    # TODO(synk): at production dims (nh=32, hd=128) replace with a per-head batched
    # matmul — this kron weight would be 256 MiB and 97% zeros.
    w_up_bd = jnp.kron(jnp.eye(num_heads, dtype=w_up_proj.dtype), w_up_proj.T)
    return w_input_proj_t, w_up_bd


# ----------------------------- forward -----------------------------
def image_rearrangement_forward(hidden_states, w_input_proj_t, w_up_bd, num_heads):
    b, s, h = hidden_states.shape
    hd = h // num_heads
    up = hd * SCALE_RATIO * SCALE_RATIO

    # --- attention-score column sums over the (S-576) unmasked query rows (kernel 1) ---
    col_sums = attn_colsum(hidden_states, num_heads)                 # (B, nh, S) f32
    image_attn = col_sums[:, :, IMG_START:IMG_END]                   # (B, nh, 576)

    # --- pooled argmax window selection (tiny; plain-JAX glue) ---
    image_attn_softmax = jax.nn.softmax(image_attn, axis=-1)
    attn_grid = image_attn.reshape(b, num_heads, IMAGE_EDGE, IMAGE_EDGE)
    pooled = lax.reduce_window(
        attn_grid, 0.0, lax.add,
        window_dimensions=(1, 1, POOL_K, POOL_K),
        window_strides=(1, 1, 1, 1),
        padding="VALID") / float(POOL_K * POOL_K)                    # (B, nh, 13, 13)
    pooled = pooled.reshape(b, num_heads, POOLED_EDGE * POOLED_EDGE)
    max_idx = jnp.argmax(pooled, axis=-1)                            # (B, nh)
    rows_i = (max_idx // POOLED_EDGE).astype(jnp.int32)
    cols_i = (max_idx % POOLED_EDGE).astype(jnp.int32)

    soft_grid = image_attn_softmax.reshape(b, num_heads, IMAGE_EDGE, IMAGE_EDGE)
    # Image-region per-head states, straight reshape of (B, S, H) -> no big transpose.
    img_states = hidden_states[:, IMG_START:IMG_END].reshape(
        b, IMAGE_EDGE, IMAGE_EDGE, num_heads, hd)                    # (B, 24, 24, nh, hd)
    head_ids = jnp.arange(num_heads, dtype=jnp.int32)

    def _gather(sg_h, st, r, c, hidx):
        # sg_h: (24, 24)  st: (24, 24, nh, hd)
        w_soft = lax.dynamic_slice(sg_h, (r, c), (POOL_K, POOL_K))
        w_state = lax.dynamic_slice(st, (r, c, hidx, jnp.int32(0)),
                                    (POOL_K, POOL_K, 1, hd))
        return jnp.sum(w_soft), w_state[:, :, 0, :]

    gather_heads = jax.vmap(_gather, in_axes=(0, None, 0, 0, 0))
    gather = jax.vmap(gather_heads, in_axes=(0, 0, 0, 0, None))
    image_attn_weight, windows = gather(soft_grid, img_states, rows_i, cols_i, head_ids)
    # image_attn_weight: (B, nh)   windows: (B, nh, 12, 12, hd)

    # --- block-diagonal up-projection + per-head scaling (kernel 2) ---
    windows_flat = jnp.transpose(
        windows.reshape(b, num_heads, POOL_K * POOL_K, hd),
        (0, 2, 1, 3)).reshape(b, POOL_K * POOL_K, h)                 # (B, 144, nh*hd)
    scale_vec = jnp.repeat(image_attn_weight, up, axis=-1).reshape(b, 1, num_heads * up)
    y = upproj_scale(windows_flat, w_up_bd, scale_vec)               # (B, 144, nh*up)

    # pixel-shuffle 12x12 x (2x2xhd) back to a 24x24 grid of per-head features
    # TODO(synk): fusing kernel 2 + this shuffle into kernel 3 would drop one launch
    # and one HBM round trip; left separate (lower priority than the kernel-1 cut).
    y = y.reshape(b, POOL_K, POOL_K, num_heads, SCALE_RATIO, SCALE_RATIO, hd)
    y = jnp.transpose(y, (0, 1, 4, 2, 5, 3, 6))                      # (B, 12, 2, 12, 2, nh, hd)
    image_out = y.reshape(b, VISION_TOKENS, h)                       # (B, 576, H)

    # --- fused splice + input_proj + SiLU + residual (kernel 3) ---
    return proj_act_residual(hidden_states, image_out, w_input_proj_t)


# ----------------------------- main -----------------------------
if __name__ == "__main__":
    B = 2
    NUM_HEADS = 4
    HEAD_DIM = 16
    HIDDEN = NUM_HEADS * HEAD_DIM            # 64
    SEQ = IMG_END + 3                        # 5 prefix + 576 image + 3 trailing tokens

    key = jax.random.PRNGKey(0)
    k_x, k_in, k_up = jax.random.split(key, 3)
    hidden_states = jax.random.normal(k_x, (B, SEQ, HIDDEN), jnp.float32)
    # nn.Linear weights are (out_features, in_features), no bias.
    w_input_proj = jax.random.normal(k_in, (HIDDEN, HIDDEN), jnp.float32) * 0.02
    w_up_proj = jax.random.normal(
        k_up, (HEAD_DIM * SCALE_RATIO * SCALE_RATIO, HEAD_DIM), jnp.float32) * 0.02

    # Hoisted out of jit: no per-call kron / transpose rebuild.
    w_in_t, w_up_bd = prepare_weights(w_input_proj, w_up_proj, NUM_HEADS)

    fwd = jax.jit(functools.partial(image_rearrangement_forward, num_heads=NUM_HEADS))
    out = fwd(hidden_states, w_in_t, w_up_bd)
    jax.block_until_ready(out)
    assert out.shape == (B, SEQ, HIDDEN)
    print("KERNEL_OK")
</pallas_src>

<mosaic_0001>
module attributes {stable_mosaic.version = 11 : i64} {
  func.func @_attn_colsum_kernel(%arg0: i32, %arg1: memref<1x584x64xf32, #tpu.memory_space<vmem>>, %arg2: memref<1x4x584xf32, #tpu.memory_space<vmem>>) attributes {dimension_semantics = [#tpu.dimension_semantics<parallel>], iteration_bounds = array<i64: 2>, scalar_prefetch = 0 : i64, scratch_operands = 0 : i64, tpu.core_type = #tpu.core_type<tc>, window_params = [{transform_indices = @transform_0, window_bounds = array<i64: 1, 584, 64>}, {transform_indices = @transform_1, window_bounds = array<i64: 1, 4, 584>}]} {
    %c0 = arith.constant 0 : index
    %c0_0 = arith.constant 0 : index
    %c0_1 = arith.constant 0 : index
    %0 = vector.load %arg1[%c0, %c0_0, %c0_1] : memref<1x584x64xf32, #tpu.memory_space<vmem>>, vector<1x584x64xf32>
    %1 = vector.shape_cast %0 : vector<1x584x64xf32> to vector<584x64xf32>
    %2 = vector.extract_strided_slice %1 {offsets = [0, 0], sizes = [5, 64], strides = [1, 1]} : vector<584x64xf32> to vector<5x64xf32>
    %3 = vector.extract_strided_slice %1 {offsets = [581, 0], sizes = [3, 64], strides = [1, 1]} : vector<584x64xf32> to vector<3x64xf32>
    %4 = tpu.concatenate %2, %3 in 0 : vector<5x64xf32>, vector<3x64xf32> -> vector<8x64xf32>
    %5 = vector.extract_strided_slice %1 {offsets = [0, 0], sizes = [584, 16], strides = [1, 1]} : vector<584x64xf32> to vector<584x16xf32>
    %6 = arith.truncf %5 : vector<584x16xf32> to vector<584x16xbf16>
    %7 = vector.extract_strided_slice %4 {offsets = [0, 0], sizes = [8, 16], strides = [1, 1]} : vector<8x64xf32> to vector<8x16xf32>
    %8 = arith.truncf %7 : vector<8x16xf32> to vector<8x16xbf16>
    %cst = arith.constant dense<0.000000e+00> : vector<8x584xf32>
    %9 = tpu.matmul %8, %6, %cst {dimension_numbers = #tpu.dot_dimension_numbers<[1], [1], [0], [0], [0, 0, 1, 0], [], []>} : vector<8x16xbf16>, vector<584x16xbf16>, vector<8x584xf32> -> vector<8x584xf32>
    %cst_2 = arith.constant 2.500000e-01 : f32
    %10 = vector.broadcast %cst_2 : f32 to vector<8x584xf32>
    %11 = arith.mulf %9, %10 : vector<8x584xf32>
    %cst_3 = arith.constant dense<0xFF800000> : vector<8xf32>
    %12 = vector.multi_reduction <maximumf>, %11, %cst_3 [1] : vector<8x584xf32> to vector<8xf32>
    %13 = vector.shape_cast %12 : vector<8xf32> to vector<8x1xf32>
    %14 = vector.broadcast %13 : vector<8x1xf32> to vector<8x584xf32>
    %15 = arith.subf %11, %14 : vector<8x584xf32>
    %16 = math.exp %15 : vector<8x584xf32>
    %cst_4 = arith.constant dense<0.000000e+00> : vector<8xf32>
    %17 = vector.multi_reduction <add>, %16, %cst_4 [1] : vector<8x584xf32> to vector<8xf32>
    %18 = vector.shape_cast %17 : vector<8xf32> to vector<8x1xf32>
    %19 = vector.broadcast %18 : vector<8x1xf32> to vector<8x584xf32>
    %20 = arith.divf %16, %19 : vector<8x584xf32>
    %cst_5 = arith.constant dense<0.000000e+00> : vector<584xf32>
    %21 = vector.multi_reduction <add>, %20, %cst_5 [0] : vector<8x584xf32> to vector<584xf32>
    %22 = vector.shape_cast %21 : vector<584xf32> to vector<1x584xf32>
    %cst_6 = arith.constant 0.986301362 : f32
    %23 = vector.broadcast %cst_6 : f32 to vector<1x584xf32>
    %24 = arith.addf %22, %23 : vector<1x584xf32>
    %25 = vector.extract_strided_slice %1 {offsets = [0, 16], sizes = [584, 16], strides = [1, 1]} : vector<584x64xf32> to vector<584x16xf32>
    %26 = arith.truncf %25 : vector<584x16xf32> to vector<584x16xbf16>
    %27 = vector.extract_strided_slice %4 {offsets = [0, 16], sizes = [8, 16], strides = [1, 1]} : vector<8x64xf32> to vector<8x16xf32>
    %28 = arith.truncf %27 : vector<8x16xf32> to vector<8x16xbf16>
    %cst_7 = arith.constant dense<0.000000e+00> : vector<8x584xf32>
    %29 = tpu.matmul %28, %26, %cst_7 {dimension_numbers = #tpu.dot_dimension_numbers<[1], [1], [0], [0], [0, 0, 1, 0], [], []>} : vector<8x16xbf16>, vector<584x16xbf16>, vector<8x584xf32> -> vector<8x584xf32>
    %cst_8 = arith.constant 2.500000e-01 : f32
    %30 = vector.broadcast %cst_8 : f32 to vector<8x584xf32>
    %31 = arith.mulf %29, %30 : vector<8x584xf32>
    %cst_9 = arith.constant dense<0xFF800000> : vector<8xf32>
    %32 = vector.multi_reduction <maximumf>, %31, %cst_9 [1] : vector<8x584xf32> to vector<8xf32>
    %33 = vector.shape_cast %32 : vector<8xf32> to vector<8x1xf32>
    %34 = vector.broadcast %33 : vector<8x1xf32> to vector<8x584xf32>
    %35 = arith.subf %31, %34 : vector<8x584xf32>
    %36 = math.exp %35 : vector<8x584xf32>
    %cst_10 = arith.constant dense<0.000000e+00> : vector<8xf32>
    %37 = vector.multi_reduction <add>, %36, %cst_10 [1] : vector<8x584xf32> to vector<8xf32>
    %38 = vector.shape_cast %37 : vector<8xf32> to vector<8x1xf32>
    %39 = vector.broadcast %38 : vector<8x1xf32> to vector<8x584xf32>
    %40 = arith.divf %36, %39 : vector<8x584xf32>
    %cst_11 = arith.constant dense<0.000000e+00> : vector<584xf32>
    %41 = vector.multi_reduction <add>, %40, %cst_11 [0] : vector<8x584xf32> to vector<584xf32>
    %42 = vector.shape_cast %41 : vector<584xf32> to vector<1x584xf32>
    %cst_12 = arith.constant 0.986301362 : f32
    %43 = vector.broadcast %cst_12 : f32 to vector<1x584xf32>
    %44 = arith.addf %42, %43 : vector<1x584xf32>
    %45 = vector.extract_strided_slice %1 {offsets = [0, 32], sizes = [584, 16], strides = [1, 1]} : vector<584x64xf32> to vector<584x16xf32>
    %46 = arith.truncf %45 : vector<584x16xf32> to vector<584x16xbf16>
    %47 = vector.extract_strided_slice %4 {offsets = [0, 32], sizes = [8, 16], strides = [1, 1]} : vector<8x64xf32> to vector<8x16xf32>
    %48 = arith.truncf %47 : vector<8x16xf32> to vector<8x16xbf16>
    %cst_13 = arith.constant dense<0.000000e+00> : vector<8x584xf32>
    %49 = tpu.matmul %48, %46, %cst_13 {dimension_numbers = #tpu.dot_dimension_numbers<[1], [1], [0], [0], [0, 0, 1, 0], [], []>} : vector<8x16xbf16>, vector<584x16xbf16>, vector<8x584xf32> -> vector<8x584xf32>
    %cst_14 = arith.constant 2.500000e-01 : f32
    %50 = vector.broadcast %cst_14 : f32 to vector<8x584xf32>
    %51 = arith.mulf %49, %50 : vector<8x584xf32>
    %cst_15 = arith.constant dense<0xFF800000> : vector<8xf32>
    %52 = vector.multi_reduction <maximumf>, %51, %cst_15 [1] : vector<8x584xf32> to vector<8xf32>
    %53 = vector.shape_cast %52 : vector<8xf32> to vector<8x1xf32>
    %54 = vector.broadcast %53 : vector<8x1xf32> to vector<8x584xf32>
    %55 = arith.subf %51, %54 : vector<8x584xf32>
    %56 = math.exp %55 : vector<8x584xf32>
    %cst_16 = arith.constant dense<0.000000e+00> : vector<8xf32>
    %57 = vector.multi_reduction <add>, %56, %cst_16 [1] : vector<8x584xf32> to vector<8xf32>
    %58 = vector.shape_cast %57 : vector<8xf32> to vector<8x1xf32>
    %59 = vector.broadcast %58 : vector<8x1xf32> to vector<8x584xf32>
    %60 = arith.divf %56, %59 : vector<8x584xf32>
    %cst_17 = arith.constant dense<0.000000e+00> : vector<584xf32>
    %61 = vector.multi_reduction <add>, %60, %cst_17 [0] : vector<8x584xf32> to vector<584xf32>
    %62 = vector.shape_cast %61 : vector<584xf32> to vector<1x584xf32>
    %cst_18 = arith.constant 0.986301362 : f32
    %63 = vector.broadcast %cst_18 : f32 to vector<1x584xf32>
    %64 = arith.addf %62, %63 : vector<1x584xf32>
    %65 = vector.extract_strided_slice %1 {offsets = [0, 48], sizes = [584, 16], strides = [1, 1]} : vector<584x64xf32> to vector<584x16xf32>
    %66 = arith.truncf %65 : vector<584x16xf32> to vector<584x16xbf16>
    %67 = vector.extract_strided_slice %4 {offsets = [0, 48], sizes = [8, 16], strides = [1, 1]} : vector<8x64xf32> to vector<8x16xf32>
    %68 = arith.truncf %67 : vector<8x16xf32> to vector<8x16xbf16>
    %cst_19 = arith.constant dense<0.000000e+00> : vector<8x584xf32>
    %69 = tpu.matmul %68, %66, %cst_19 {dimension_numbers = #tpu.dot_dimension_numbers<[1], [1], [0], [0], [0, 0, 1, 0], [], []>} : vector<8x16xbf16>, vector<584x16xbf16>, vector<8x584xf32> -> vector<8x584xf32>
    %cst_20 = arith.constant 2.500000e-01 : f32
    %70 = vector.broadcast %cst_20 : f32 to vector<8x584xf32>
    %71 = arith.mulf %69, %70 : vector<8x584xf32>
    %cst_21 = arith.constant dense<0xFF800000> : vector<8xf32>
    %72 = vector.multi_reduction <maximumf>, %71, %cst_21 [1] : vector<8x584xf32> to vector<8xf32>
    %73 = vector.shape_cast %72 : vector<8xf32> to vector<8x1xf32>
    %74 = vector.broadcast %73 : vector<8x1xf32> to vector<8x584xf32>
    %75 = arith.subf %71, %74 : vector<8x584xf32>
    %76 = math.exp %75 : vector<8x584xf32>
    %cst_22 = arith.constant dense<0.000000e+00> : vector<8xf32>
    %77 = vector.multi_reduction <add>, %76, %cst_22 [1] : vector<8x584xf32> to vector<8xf32>
    %78 = vector.shape_cast %77 : vector<8xf32> to vector<8x1xf32>
    %79 = vector.broadcast %78 : vector<8x1xf32> to vector<8x584xf32>
    %80 = arith.divf %76, %79 : vector<8x584xf32>
    %cst_23 = arith.constant dense<0.000000e+00> : vector<584xf32>
    %81 = vector.multi_reduction <add>, %80, %cst_23 [0] : vector<8x584xf32> to vector<584xf32>
    %82 = vector.shape_cast %81 : vector<584xf32> to vector<1x584xf32>
    %cst_24 = arith.constant 0.986301362 : f32
    %83 = vector.broadcast %cst_24 : f32 to vector<1x584xf32>
    %84 = arith.addf %82, %83 : vector<1x584xf32>
    %85 = tpu.concatenate %24, %44, %64, %84 in 0 : vector<1x584xf32>, vector<1x584xf32>, vector<1x584xf32>, vector<1x584xf32> -> vector<4x584xf32>
    %c0_25 = arith.constant 0 : index
    %c0_26 = arith.constant 0 : index
    %c0_27 = arith.constant 0 : index
    %86 = vector.load %arg2[%c0_25, %c0_26, %c0_27] : memref<1x4x584xf32, #tpu.memory_space<vmem>>, vector<1x4x584xf32>
    %87 = vector.shape_cast %86 : vector<1x4x584xf32> to vector<4x584xf32>
    %88 = vector.shape_cast %85 : vector<4x584xf32> to vector<1x4x584xf32>
    tpu.vector_store %arg2[%c0_25, %c0_26, %c0_27], %88 {strides = array<i32>} : memref<1x4x584xf32, #tpu.memory_space<vmem>>, vector<1x4x584xf32>,
    return
  }
  func.func @transform_0(%arg0: i32) -> (i32, i32, i32) {
    %c0_i32 = arith.constant 0 : i32
    %c0_i32_0 = arith.constant 0 : i32
    %c0_i32_1 = arith.constant 0 : i32
    return %arg0, %c0_i32, %c0_i32_0 : i32, i32, i32
  }
  func.func @transform_1(%arg0: i32) -> (i32, i32, i32) {
    %c0_i32 = arith.constant 0 : i32
    %c0_i32_0 = arith.constant 0 : i32
    %c0_i32_1 = arith.constant 0 : i32
    return %arg0, %c0_i32, %c0_i32_0 : i32, i32, i32
  }
}

module attributes {stable_mosaic.version = 11 : i64} {
  func.func @_upproj_scale_kernel(%arg0: i32, %arg1: memref<1x144x64xf32, #tpu.memory_space<vmem>>, %arg2: memref<64x256xf32, #tpu.memory_space<vmem>>, %arg3: memref<1x1x256xf32, #tpu.memory_space<vmem>>, %arg4: memref<1x144x256xf32, #tpu.memory_space<vmem>>) attributes {dimension_semantics = [#tpu.dimension_semantics<parallel>], iteration_bounds = array<i64: 2>, scalar_prefetch = 0 : i64, scratch_operands = 0 : i64, tpu.core_type = #tpu.core_type<tc>, window_params = [{transform_indices = @transform_0, window_bounds = array<i64: 1, 144, 64>}, {pipeline_mode = #tpu.pipeline_mode<synchronous>, transform_indices = @transform_1, window_bounds = array<i64: 64, 256>}, {transform_indices = @transform_2, window_bounds = array<i64: 1, 1, 256>}, {transform_indices = @transform_3, window_bounds = array<i64: 1, 144, 256>}]} {
    %c0 = arith.constant 0 : index
    %c0_0 = arith.constant 0 : index
    %c0_1 = arith.constant 0 : index
    %0 = vector.load %arg1[%c0, %c0_0, %c0_1] : memref<1x144x64xf32, #tpu.memory_space<vmem>>, vector<1x144x64xf32>
    %1 = vector.shape_cast %0 : vector<1x144x64xf32> to vector<144x64xf32>
    %c0_2 = arith.constant 0 : index
    %c0_3 = arith.constant 0 : index
    %2 = vector.load %arg2[%c0_2, %c0_3] : memref<64x256xf32, #tpu.memory_space<vmem>>, vector<64x256xf32>
    %cst = arith.constant dense<0.000000e+00> : vector<144x256xf32>
    %3 = tpu.matmul %1, %2, %cst {dimension_numbers = #tpu.dot_dimension_numbers<[1], [0], [0], [1], [0, 0, 1, 1], [], []>} : vector<144x64xf32>, vector<64x256xf32>, vector<144x256xf32> -> vector<144x256xf32>
    %c0_4 = arith.constant 0 : index
    %c0_5 = arith.constant 0 : index
    %c0_6 = arith.constant 0 : index
    %4 = vector.load %arg3[%c0_4, %c0_5, %c0_6] : memref<1x1x256xf32, #tpu.memory_space<vmem>>, vector<1x1x256xf32>
    %5 = vector.shape_cast %4 : vector<1x1x256xf32> to vector<1x256xf32>
    %6 = vector.broadcast %5 : vector<1x256xf32> to vector<144x256xf32>
    %7 = arith.mulf %3, %6 : vector<144x256xf32>
    %c0_7 = arith.constant 0 : index
    %c0_8 = arith.constant 0 : index
    %c0_9 = arith.constant 0 : index
    %8 = vector.load %arg4[%c0_7, %c0_8, %c0_9] : memref<1x144x256xf32, #tpu.memory_space<vmem>>, vector<1x144x256xf32>
    %9 = vector.shape_cast %8 : vector<1x144x256xf32> to vector<144x256xf32>
    %10 = vector.shape_cast %7 : vector<144x256xf32> to vector<1x144x256xf32>
    tpu.vector_store %arg4[%c0_7, %c0_8, %c0_9], %10 {strides = array<i32>} : memref<1x144x256xf32, #tpu.memory_space<vmem>>, vector<1x144x256xf32>,
    return
  }
  func.func @transform_0(%arg0: i32) -> (i32, i32, i32) {
    %c0_i32 = arith.constant 0 : i32
    %c0_i32_0 = arith.constant 0 : i32
    %c0_i32_1 = arith.constant 0 : i32
    return %arg0, %c0_i32, %c0_i32_0 : i32, i32, i32
  }
  func.func @transform_1(%arg0: i32) -> (i32, i32) {
    %c0_i32 = arith.constant 0 : i32
    %c0_i32_0 = arith.constant 0 : i32
    %c0_i32_1 = arith.constant 0 : i32
    return %c0_i32, %c0_i32_0 : i32, i32
  }
  func.func @transform_2(%arg0: i32) -> (i32, i32, i32) {
    %c0_i32 = arith.constant 0 : i32
    %c0_i32_0 = arith.constant 0 : i32
    %c0_i32_1 = arith.constant 0 : i32
    return %arg0, %c0_i32, %c0_i32_0 : i32, i32, i32
  }
  func.func @transform_3(%arg0: i32) -> (i32, i32, i32) {
    %c0_i32 = arith.constant 0 : i32
    %c0_i32_0 = arith.constant 0 : i32
    %c0_i32_1 = arith.constant 0 : i32
    return %arg0, %c0_i32, %c0_i32_0 : i32, i32, i32
  }
}

module attributes {stable_mosaic.version = 11 : i64} {
  func.func @_proj_act_residual_kernel(%arg0: i32, %arg1: i32, %arg2: memref<1x584x64xf32, #tpu.memory_space<vmem>>, %arg3: memref<1x584x64xf32, #tpu.memory_space<vmem>>, %arg4: memref<1x576x64xf32, #tpu.memory_space<vmem>>, %arg5: memref<64x64xf32, #tpu.memory_space<vmem>>, %arg6: memref<1x584x64xf32, #tpu.memory_space<vmem>>, %arg7: memref<584x64xf32, #tpu.memory_space<vmem>>) attributes {dimension_semantics = [#tpu.dimension_semantics<parallel>, #tpu.dimension_semantics<arbitrary>], iteration_bounds = array<i64: 2, 1>, scalar_prefetch = 0 : i64, scratch_operands = 1 : i64, tpu.core_type = #tpu.core_type<tc>, window_params = [{transform_indices = @transform_0, window_bounds = array<i64: 1, 584, 64>}, {transform_indices = @transform_1, window_bounds = array<i64: 1, 584, 64>}, {transform_indices = @transform_2, window_bounds = array<i64: 1, 576, 64>}, {transform_indices = @transform_3, window_bounds = array<i64: 64, 64>}, {transform_indices = @transform_4, window_bounds = array<i64: 1, 584, 64>}]} {
    %c0_i32 = arith.constant 0 : i32
    %0 = arith.cmpi eq, %arg1, %c0_i32 : i32
    %1 = arith.extui %0 : i1 to i32
    %c0_i32_0 = arith.constant 0 : i32
    %2 = arith.cmpi ne, %1, %c0_i32_0 : i32
    scf.if %2 {
      %c0_11 = arith.constant 0 : index
      %c0_12 = arith.constant 0 : index
      %c0_13 = arith.constant 0 : index
      %18 = vector.load %arg2[%c0_11, %c0_12, %c0_13] : memref<1x584x64xf32, #tpu.memory_space<vmem>>, vector<1x5x64xf32>
      %19 = vector.shape_cast %18 : vector<1x5x64xf32> to vector<5x64xf32>
      %c0_14 = arith.constant 0 : index
      %c0_15 = arith.constant 0 : index
      %20 = vector.load %arg7[%c0_14, %c0_15] : memref<584x64xf32, #tpu.memory_space<vmem>>, vector<5x64xf32>
      tpu.vector_store %arg7[%c0_14, %c0_15], %19 {strides = array<i32>} : memref<584x64xf32, #tpu.memory_space<vmem>>, vector<5x64xf32>,
      %c0_16 = arith.constant 0 : index
      %c0_17 = arith.constant 0 : index
      %c0_18 = arith.constant 0 : index
      %21 = vector.load %arg4[%c0_16, %c0_17, %c0_18] : memref<1x576x64xf32, #tpu.memory_space<vmem>>, vector<1x576x64xf32>
      %22 = vector.shape_cast %21 : vector<1x576x64xf32> to vector<576x64xf32>
      %c5 = arith.constant 5 : index
      %c0_19 = arith.constant 0 : index
      %23 = vector.load %arg7[%c5, %c0_19] : memref<584x64xf32, #tpu.memory_space<vmem>>, vector<576x64xf32>
      tpu.vector_store %arg7[%c5, %c0_19], %22 {strides = array<i32>} : memref<584x64xf32, #tpu.memory_space<vmem>>, vector<576x64xf32>,
      %c0_20 = arith.constant 0 : index
      %c581 = arith.constant 581 : index
      %c0_21 = arith.constant 0 : index
      %24 = vector.load %arg2[%c0_20, %c581, %c0_21] : memref<1x584x64xf32, #tpu.memory_space<vmem>>, vector<1x3x64xf32>
      %25 = vector.shape_cast %24 : vector<1x3x64xf32> to vector<3x64xf32>
      %c581_22 = arith.constant 581 : index
      %c0_23 = arith.constant 0 : index
      %26 = vector.load %arg7[%c581_22, %c0_23] : memref<584x64xf32, #tpu.memory_space<vmem>>, vector<3x64xf32>
      tpu.vector_store %arg7[%c581_22, %c0_23], %25 {strides = array<i32>} : memref<584x64xf32, #tpu.memory_space<vmem>>, vector<3x64xf32>,
    } else {
    }
    %c0 = arith.constant 0 : index
    %c0_1 = arith.constant 0 : index
    %3 = vector.load %arg7[%c0, %c0_1] : memref<584x64xf32, #tpu.memory_space<vmem>>, vector<584x64xf32>
    %c0_2 = arith.constant 0 : index
    %c0_3 = arith.constant 0 : index
    %4 = vector.load %arg5[%c0_2, %c0_3] : memref<64x64xf32, #tpu.memory_space<vmem>>, vector<64x64xf32>
    %cst = arith.constant dense<0.000000e+00> : vector<584x64xf32>
    %5 = tpu.matmul %3, %4, %cst {dimension_numbers = #tpu.dot_dimension_numbers<[1], [0], [0], [1], [0, 0, 1, 1], [], []>} : vector<584x64xf32>, vector<64x64xf32>, vector<584x64xf32> -> vector<584x64xf32>
    %6 = arith.negf %5 : vector<584x64xf32>
    %7 = math.exp %6 : vector<584x64xf32>
    %cst_4 = arith.constant 1.000000e+00 : f32
    %8 = vector.broadcast %cst_4 : f32 to vector<584x64xf32>
    %9 = arith.addf %8, %7 : vector<584x64xf32>
    %10 = arith.divf %8, %9 : vector<584x64xf32>
    %11 = arith.mulf %5, %10 : vector<584x64xf32>
    %c0_5 = arith.constant 0 : index
    %c0_6 = arith.constant 0 : index
    %c0_7 = arith.constant 0 : index
    %12 = vector.load %arg3[%c0_5, %c0_6, %c0_7] : memref<1x584x64xf32, #tpu.memory_space<vmem>>, vector<1x584x64xf32>
    %13 = vector.shape_cast %12 : vector<1x584x64xf32> to vector<584x64xf32>
    %14 = arith.addf %13, %11 : vector<584x64xf32>
    %c0_8 = arith.constant 0 : index
    %c0_9 = arith.constant 0 : index
    %c0_10 = arith.constant 0 : index
    %15 = vector.load %arg6[%c0_8, %c0_9, %c0_10] : memref<1x584x64xf32, #tpu.memory_space<vmem>>, vector<1x584x64xf32>
    %16 = vector.shape_cast %15 : vector<1x584x64xf32> to vector<584x64xf32>
    %17 = vector.shape_cast %14 : vector<584x64xf32> to vector<1x584x64xf32>
    tpu.vector_store %arg6[%c0_8, %c0_9, %c0_10], %17 {strides = array<i32>} : memref<1x584x64xf32, #tpu.memory_space<vmem>>, vector<1x584x64xf32>,
    return
  }
  func.func @transform_0(%arg0: i32, %arg1: i32) -> (i32, i32, i32) {
    %c0_i32 = arith.constant 0 : i32
    %c0_i32_0 = arith.constant 0 : i32
    %c0_i32_1 = arith.constant 0 : i32
    return %arg0, %c0_i32, %c0_i32_0 : i32, i32, i32
  }
  func.func @transform_1(%arg0: i32, %arg1: i32) -> (i32, i32, i32) {
    %c0_i32 = arith.constant 0 : i32
    %c0_i32_0 = arith.constant 0 : i32
    return %arg0, %c0_i32, %arg1 : i32, i32, i32
  }
  func.func @transform_2(%arg0: i32, %arg1: i32) -> (i32, i32, i32) {
    %c0_i32 = arith.constant 0 : i32
    %c0_i32_0 = arith.constant 0 : i32
    %c0_i32_1 = arith.constant 0 : i32
    return %arg0, %c0_i32, %c0_i32_0 : i32, i32, i32
  }
  func.func @transform_3(%arg0: i32, %arg1: i32) -> (i32, i32) {
    %c0_i32 = arith.constant 0 : i32
    %c0_i32_0 = arith.constant 0 : i32
    return %c0_i32, %arg1 : i32, i32
  }
  func.func @transform_4(%arg0: i32, %arg1: i32) -> (i32, i32, i32) {
    %c0_i32 = arith.constant 0 : i32
    %c0_i32_0 = arith.constant 0 : i32
    return %arg0, %c0_i32, %arg1 : i32, i32, i32
  }
}

</mosaic_0001>

<llo_original>
// kernel: custom-call.2
$region0: #{custom-call.2}
  %s0 = inlined_call_operand.vmem [shape: f32[8,12,12], index: 0, kind: output, shape index: {}]

// kernel: image_rearrangement_forward.3
$region0: #{image_rearrangement_forward.3}
  #allocation0 [shape = 'u32[]', space=smem, size = 0x4, offset = 0x4, fixed_abs, tag = 'smem constant byte address 0x4 - core index']
  #allocation1 [shape = 'u32[72,128]{1,0:T(1,128)}', space=vmem, size = 0x9000, scoped, tag = 'internal scratch']
  %s0 = inlined_call_operand.vmem [shape: f32[2,584,64], index: 0, kind: input, shape index: {}]
  %s1 = inlined_call_operand.vmem [shape: f32[2,4,584], index: 1, kind: output, shape index: {}]
  %s2 = sld [smem:[#allocation0]]
  $region37: #{image_rearrangement_forward.3} parent=0
    _
  %s4 = ssub.s32 1, %s2
  %s5 = scalar_select 0, %s4, %s2
  loop: start=0, step=1, limit=4
  $region2: #{image_rearrangement_forward.3} parent=0 // loop_pre_header
    _
  $region3: #{image_rearrangement_forward.3} parent=0 // loop_header
    %s7 = sphi 0, %s11
    %p8 = scmp.ge.s32.totalorder %s7, 4
    %s17 = sphi 0, %s19
    %s20 = sphi 0, %s17
    %s21 = sphi 0, %s20
    %s37 = sphi 0, %s21
    %s43 = sphi 0, %s45
    %s46 = sphi 0, %s43
    %s47 = sphi 0, %s46
    %s63 = sphi 0, %s47
  $region4: #{image_rearrangement_forward.3} parent=0 // loop_header_branch
    %10 = sbr.rel (%p8) target = $region8
  $region5: #{image_rearrangement_forward.3} parent=0 // loop_body
    %s12 = ssub.s32 %s7, 1
    %s13 = ssub.s32 %s7, 2
    %s14 = sadd.s32 %s7, 1
    %s15 = ssub.s32 %s7, %s14
    %p16 = scmp.eq.s32.totalorder %s15, 0
    %s18 = sadd.s32 %s17, 1
    %s19 = scalar_select %p16, %s17, %s18
    %p22 = pneg %p16
    %p23 = scmp.eq.s32.totalorder %s7, 1
    %p24 = por %p22, %p23
    %p25 = scmp.ne.s32.totalorder %s17, %s20
    %p26 = scmp.eq.s32.totalorder %s7, 0
    %p27 = por %p25, %p26
    %p28 = scmp.ne.s32.totalorder %s17, %s20
    %p29 = scmp.eq.s32.totalorder %s12, 1
    %p30 = por %p28, %p29
    %p31 = scmp.ne.s32.totalorder %s20, %s21
    %p32 = scmp.eq.s32.totalorder %s12, 0
    %p33 = por %p31, %p32
    %p34 = scmp.ne.s32.totalorder %s20, %s21
    %p35 = scmp.eq.s32.totalorder %s13, 1
    %p36 = por %p34, %p35
    %p38 = scmp.ne.s32.totalorder %s21, %s37
    %p39 = scmp.eq.s32.totalorder %s13, 0
    %p40 = por %p38, %p39
    %s41 = ssub.s32 %s7, %s14
    %p42 = scmp.eq.s32.totalorder %s41, 0
    %s44 = sadd.s32 %s43, 1
    %s45 = scalar_select %p42, %s43, %s44
    %p48 = pneg %p42
    %p49 = scmp.eq.s32.totalorder %s7, 1
    %p50 = por %p48, %p49
    %p51 = scmp.ne.s32.totalorder %s43, %s46
    %p52 = scmp.eq.s32.totalorder %s7, 0
    %p53 = por %p51, %p52
    %p54 = scmp.ne.s32.totalorder %s43, %s46
    %p55 = scmp.eq.s32.totalorder %s12, 1
    %p56 = por %p54, %p55
    %p57 = scmp.ne.s32.totalorder %s46, %s47
    %p58 = scmp.eq.s32.totalorder %s12, 0
    %p59 = por %p57, %p58
    %p60 = scmp.ne.s32.totalorder %s46, %s47
    %p61 = scmp.eq.s32.totalorder %s13, 1
    %p62 = por %p60, %p61
    %p64 = scmp.ne.s32.totalorder %s47, %s63
    %p65 = scmp.eq.s32.totalorder %s13, 0
    %p66 = por %p64, %p65
    %p67 = scmp.le.s32.totalorder 1, %s7
    %p68 = scmp.lt.s32.totalorder %s7, 3
    %p69 = pnand %p67, %p68
    %p70 = pneg %p69
    // Predicated region
    $region9: #{image_rearrangement_forward.3} parent=5 // pred_check
      _
    $region10: #{image_rearrangement_forward.3} parent=5 // pred_check_branch
      %72 = sbr.rel (%p69) target = $region12
    $region11: #{image_rearrangement_forward.3} parent=5 // pred_region
      %s73 = ssub.s32 %s7, 1
    $region12: #{image_rearrangement_forward.3} parent=5 // pred_fallthru
      _
    %p74 = scmp.lt.s32.totalorder %s7, 2
    // Predicated region
    $region13: #{image_rearrangement_forward.3} parent=5 // pred_check
      %p75 = pneg %p74
    $region14: #{image_rearrangement_forward.3} parent=5 // pred_check_branch
      %77 = sbr.rel (%p75) target = $region16
    $region15: #{image_rearrangement_forward.3} parent=5 // pred_region
      // Predicated region
      $region17: #{image_rearrangement_forward.3} parent=15 // pred_check
        %p78 = pneg %p27
      $region18: #{image_rearrangement_forward.3} parent=15 // pred_check_branch
        %80 = sbr.rel (%p78) target = $region20
      $region19: #{image_rearrangement_forward.3} parent=15 // pred_region
        %p81 = scmp.lt.s32.totalorder %s7, 1
        %s82 = scalar_select %p81, %s7, 1
        %s83 = smul.addr %s82, 73
        %s84 = smul.addr %s83, 8
        %s85 = scalar_lea.vmem %s0, %s84
      $region20: #{image_rearrangement_forward.3} parent=15 // pred_fallthru
        _
    $region16: #{image_rearrangement_forward.3} parent=5 // pred_fallthru
      _
    %p86 = scmp.le.s32.totalorder 1, %s7
    %p87 = scmp.lt.s32.totalorder %s7, 3
    %p88 = pnand %p86, %p87
    %p89 = pneg %p88
    // Predicated region
    $region21: #{image_rearrangement_forward.3} parent=5 // pred_check
      _
    $region22: #{image_rearrangement_forward.3} parent=5 // pred_check_branch
      %91 = sbr.rel (%p88) target = $region24
    $region23: #{image_rearrangement_forward.3} parent=5 // pred_region
      %s92 = ssub.s32 %s7, 1
      %p93 = scmp.lt.s32.totalorder %s12, 1
      %s94 = scalar_select %p93, %s12, 1
      %s95 = smul.addr %s94, 73
      %s96 = smul.addr %s95, 8
      %s97 = scalar_lea.vmem %s0, %s96
      %p98 = pneg %p33
      %p99 = pneg %p30
      %p100 = pneg %p59
      %p101 = pneg %p56
      %p102 = scmp.lt.s32.totalorder %s12, 1
      %s103 = scalar_select %p102, %s12, 1
      %s104 = smul.addr %s103, 5
      %s105 = smul.addr %s104, 4
      %s106 = scalar_lea.vmem %s1, %s105
      %p107 = scmp.lt.s32.totalorder %s12, 1
      %s108 = scalar_select %p107, %s12, 1
      %s109 = smul.addr %s108, 73
      %s110 = smul.addr %s109, 8
      %s111 = scalar_lea.vmem %s0, %s110
      %p112 = scmp.lt.s32.totalorder %s12, 1
      %s113 = scalar_select %p112, %s12, 1
      %s114 = smul.addr %s113, 5
      %s115 = smul.addr %s114, 4
      %s116 = scalar_lea.vmem %s1, %s115
      %v118 = vld [vmem:[%s111] sm:$0xff]
      %v119 = vld [vmem:[%s111 + $0x8] sm:$0xff]
      %v120 = vld [vmem:[%s111 + $0x10] sm:$0xff]
      %v121 = vld [vmem:[%s111 + $0x18] sm:$0xff]
      %v122 = vld [vmem:[%s111 + $0x20] sm:$0xff]
      %v123 = vld [vmem:[%s111 + $0x28] sm:$0xff]
      %v124 = vld [vmem:[%s111 + $0x30] sm:$0xff]
      %v125 = vld [vmem:[%s111 + $0x38] sm:$0xff]
      %v126 = vld [vmem:[%s111 + $0x40] sm:$0xff]
      %v127 = vld [vmem:[%s111 + $0x48] sm:$0xff]
      %v128 = vld [vmem:[%s111 + $0x50] sm:$0xff]
      %v129 = vld [vmem:[%s111 + $0x58] sm:$0xff]
      %v130 = vld [vmem:[%s111 + $0x60] sm:$0xff]
      %v131 = vld [vmem:[%s111 + $0x68] sm:$0xff]
      %v132 = vld [vmem:[%s111 + $0x70] sm:$0xff]
      %v133 = vld [vmem:[%s111 + $0x78] sm:$0xff]
      %v134 = vld [vmem:[%s111 + $0x80] sm:$0xff]
      %v135 = vld [vmem:[%s111 + $0x88] sm:$0xff]
      %v136 = vld [vmem:[%s111 + $0x90] sm:$0xff]
      %v137 = vld [vmem:[%s111 + $0x98] sm:$0xff]
      %v138 = vld [vmem:[%s111 + $0xa0] sm:$0xff]
      %v139 = vld [vmem:[%s111 + $0xa8] sm:$0xff]
      %v140 = vld [vmem:[%s111 + $0xb0] sm:$0xff]
      %v141 = vld [vmem:[%s111 + $0xb8] sm:$0xff]
      %v142 = vld [vmem:[%s111 + $0xc0] sm:$0xff]
      %v143 = vld [vmem:[%s111 + $0xc8] sm:$0xff]
      %v144 = vld [vmem:[%s111 + $0xd0] sm:$0xff]
      %v145 = vld [vmem:[%s111 + $0xd8] sm:$0xff]
      %v146 = vld [vmem:[%s111 + $0xe0] sm:$0xff]
      %v147 = vld [vmem:[%s111 + $0xe8] sm:$0xff]
      %v148 = vld [vmem:[%s111 + $0xf0] sm:$0xff]
      %v149 = vld [vmem:[%s111 + $0xf8] sm:$0xff]
      %v150 = vld [vmem:[%s111 + $0x100] sm:$0xff]
      %v151 = vld [vmem:[%s111 + $0x108] sm:$0xff]
      %v152 = vld [vmem:[%s111 + $0x110] sm:$0xff]
      %v153 = vld [vmem:[%s111 + $0x118] sm:$0xff]
      %v154 = vld [vmem:[%s111 + $0x120] sm:$0xff]
      %v155 = vld [vmem:[%s111 + $0x128] sm:$0xff]
      %v156 = vld [vmem:[%s111 + $0x130] sm:$0xff]
      %v157 = vld [vmem:[%s111 + $0x138] sm:$0xff]
      %v158 = vld [vmem:[%s111 + $0x140] sm:$0xff]
      %v159 = vld [vmem:[%s111 + $0x148] sm:$0xff]
      %v160 = vld [vmem:[%s111 + $0x150] sm:$0xff]
      %v161 = vld [vmem:[%s111 + $0x158] sm:$0xff]
      %v162 = vld [vmem:[%s111 + $0x160] sm:$0xff]
      %v163 = vld [vmem:[%s111 + $0x168] sm:$0xff]
      %v164 = vld [vmem:[%s111 + $0x170] sm:$0xff]
      %v165 = vld [vmem:[%s111 + $0x178] sm:$0xff]
      %v166 = vld [vmem:[%s111 + $0x180] sm:$0xff]
      %v167 = vld [vmem:[%s111 + $0x188] sm:$0xff]
      %v168 = vld [vmem:[%s111 + $0x190] sm:$0xff]
      %v169 = vld [vmem:[%s111 + $0x198] sm:$0xff]
      %v170 = vld [vmem:[%s111 + $0x1a0] sm:$0xff]
      %v171 = vld [vmem:[%s111 + $0x1a8] sm:$0xff]
      %v172 = vld [vmem:[%s111 + $0x1b0] sm:$0xff]
      %v173 = vld [vmem:[%s111 + $0x1b8] sm:$0xff]
      %v174 = vld [vmem:[%s111 + $0x1c0] sm:$0xff]
      %v175 = vld [vmem:[%s111 + $0x1c8] sm:$0xff]
      %v176 = vld [vmem:[%s111 + $0x1d0] sm:$0xff]
      %v177 = vld [vmem:[%s111 + $0x1d8] sm:$0xff]
      %v178 = vld [vmem:[%s111 + $0x1e0] sm:$0xff]
      %v179 = vld [vmem:[%s111 + $0x1e8] sm:$0xff]
      %v180 = vld [vmem:[%s111 + $0x1f0] sm:$0xff]
      %v181 = vld [vmem:[%s111 + $0x1f8] sm:$0xff]
      %v182 = vld [vmem:[%s111 + $0x200] sm:$0xff]
      %v183 = vld [vmem:[%s111 + $0x208] sm:$0xff]
      %v184 = vld [vmem:[%s111 + $0x210] sm:$0xff]
      %v185 = vld [vmem:[%s111 + $0x218] sm:$0xff]
      %v186 = vld [vmem:[%s111 + $0x220] sm:$0xff]
      %v187 = vld [vmem:[%s111 + $0x228] sm:$0xff]
      %v188 = vld [vmem:[%s111 + $0x230] sm:$0xff]
      %v189 = vld [vmem:[%s111 + $0x238] sm:$0xff]
      %v190 = vld [vmem:[%s111 + $0x240] sm:$0xff]
      %vm191 = vcmask 1044480
      %v192 = vsel %vm191, %v118, %v190
      %v193 = vpack.c.bf16 %v119, %v118
      %v194 = vpack.c.bf16 %v121, %v120
      %v195 = vpack.c.bf16 %v123, %v122
      %v196 = vpack.c.bf16 %v125, %v124
      %v197 = vpack.c.bf16 %v127, %v126
      %v198 = vpack.c.bf16 %v129, %v128
      %v199 = vpack.c.bf16 %v131, %v130
      %v200 = vpack.c.bf16 %v133, %v132
      %v201 = vpack.c.bf16 %v135, %v134
      %v202 = vpack.c.bf16 %v137, %v136
      %v203 = vpack.c.bf16 %v139, %v138
      %v204 = vpack.c.bf16 %v141, %v140
      %v205 = vpack.c.bf16 %v143, %v142
      %v206 = vpack.c.bf16 %v145, %v144
      %v207 = vpack.c.bf16 %v147, %v146
      %v208 = vpack.c.bf16 %v149, %v148
      %v209 = vpack.c.bf16 %v151, %v150
      %v210 = vpack.c.bf16 %v153, %v152
      %v211 = vpack.c.bf16 %v155, %v154
      %v212 = vpack.c.bf16 %v157, %v156
      %v213 = vpack.c.bf16 %v159, %v158
      %v214 = vpack.c.bf16 %v161, %v160
      %v215 = vpack.c.bf16 %v163, %v162
      %v216 = vpack.c.bf16 %v165, %v164
      %v217 = vpack.c.bf16 %v167, %v166
      %v218 = vpack.c.bf16 %v169, %v168
      %v219 = vpack.c.bf16 %v171, %v170
      %v220 = vpack.c.bf16 %v173, %v172
      %v221 = vpack.c.bf16 %v175, %v174
      %v222 = vpack.c.bf16 %v177, %v176
      %v223 = vpack.c.bf16 %v179, %v178
      %v224 = vpack.c.bf16 %v181, %v180
      %v225 = vpack.c.bf16 %v183, %v182
      %v226 = vpack.c.bf16 %v185, %v184
      %v227 = vpack.c.bf16 %v187, %v186
      %v228 = vpack.c.bf16 %v189, %v188
      %v229 = vpack.c.bf16 %v190, %v190
      %v230 = vpack.c.bf16 %v192, %v192
      %vm231 = vcmask 130048
      %v233 = vsel %vm231, %v230, 0
      %v236 = vsel %vm231, %v193, 0
      %v239 = vsel %vm231, %v194, 0
      %v242 = vsel %vm231, %v195, 0
      %v245 = vsel %vm231, %v196, 0
      %v248 = vsel %vm231, %v197, 0
      %v251 = vsel %vm231, %v198, 0
      %v254 = vsel %vm231, %v199, 0
      %v257 = vsel %vm231, %v200, 0
      %v260 = vsel %vm231, %v201, 0
      %v263 = vsel %vm231, %v202, 0
      %v266 = vsel %vm231, %v203, 0
      %v269 = vsel %vm231, %v204, 0
      %v272 = vsel %vm231, %v205, 0
      %v275 = vsel %vm231, %v206, 0
      %v278 = vsel %vm231, %v207, 0
      %v281 = vsel %vm231, %v208, 0
      %v284 = vsel %vm231, %v209, 0
      %v287 = vsel %vm231, %v210, 0
      %v290 = vsel %vm231, %v211, 0
      %v293 = vsel %vm231, %v212, 0
      %v296 = vsel %vm231, %v213, 0
      %v299 = vsel %vm231, %v214, 0
      %v302 = vsel %vm231, %v215, 0
      %v305 = vsel %vm231, %v216, 0
      %v308 = vsel %vm231, %v217, 0
      %v311 = vsel %vm231, %v218, 0
      %v314 = vsel %vm231, %v219, 0
      %v317 = vsel %vm231, %v220, 0
      %v320 = vsel %vm231, %v221, 0
      %v323 = vsel %vm231, %v222, 0
      %v326 = vsel %vm231, %v223, 0
      %v329 = vsel %vm231, %v224, 0
      %v332 = vsel %vm231, %v225, 0
      %v335 = vsel %vm231, %v226, 0
      %v338 = vsel %vm231, %v227, 0
      %v341 = vsel %vm231, %v228, 0
      %v344 = vsel %vm231, %v229, 0
      %346 = vmatpush.bf16.xpose.msra.mxu0 %v257
      %347 = vmatpush.bf16.xpose.msra.mxu0 %v254
      %348 = vmatpush.bf16.xpose.msra.mxu0 %v251
      %349 = vmatpush.bf16.xpose.msra.mxu0 %v248
      %350 = vmatpush.bf16.xpose.msra.mxu0 %v245
      %351 = vmatpush.bf16.xpose.msra.mxu0 %v242
      %352 = vmatpush.bf16.xpose.msra.mxu0 %v239
      %353 = vmatpush.bf16.xpose.msra.mxu0 %v236
      %354 = vmatmul.bf16.gmra.mxu0 %v233
      %v355 = vpop.f32.mrf.mxu0
      %v356 = vadd.f32 0.0, %v355
      %v357 = vpop.f32.mrf.mxu0
      %358 = vdwg.mxu0
      %359 = vmatpush.bf16.xpose.msra.mxu0 %v281
      %360 = vmatpush.bf16.xpose.msra.mxu0 %v278
      %361 = vmatpush.bf16.xpose.msra.mxu0 %v275
      %362 = vmatpush.bf16.xpose.msra.mxu0 %v272
      %363 = vmatpush.bf16.xpose.msra.mxu0 %v269
      %364 = vmatpush.bf16.xpose.msra.mxu0 %v266
      %365 = vmatpush.bf16.xpose.msra.mxu0 %v263
      %366 = vmatpush.bf16.xpose.msra.mxu0 %v260
      %367 = vmatmul.bf16.gmra.mxu0 %v233
      %v368 = vpop.f32.mrf.mxu0
      %v369 = vadd.f32 0.0, %v368
      %v370 = vpop.f32.mrf.mxu0
      %371 = vdwg.mxu0
      %372 = vmatpush.bf16.xpose.msra.mxu0 %v305
      %373 = vmatpush.bf16.xpose.msra.mxu0 %v302
      %374 = vmatpush.bf16.xpose.msra.mxu0 %v299
      %375 = vmatpush.bf16.xpose.msra.mxu0 %v296
      %376 = vmatpush.bf16.xpose.msra.mxu0 %v293
      %377 = vmatpush.bf16.xpose.msra.mxu0 %v290
      %378 = vmatpush.bf16.xpose.msra.mxu0 %v287
      %379 = vmatpush.bf16.xpose.msra.mxu0 %v284
      %380 = vmatmul.bf16.gmra.mxu0 %v233
      %v381 = vpop.f32.mrf.mxu0
      %v382 = vadd.f32 0.0, %v381
      %v383 = vpop.f32.mrf.mxu0
      %384 = vdwg.mxu0
      %385 = vmatpush.bf16.xpose.msra.mxu0 %v329
      %386 = vmatpush.bf16.xpose.msra.mxu0 %v326
      %387 = vmatpush.bf16.xpose.msra.mxu0 %v323
      %388 = vmatpush.bf16.xpose.msra.mxu0 %v320
      %389 = vmatpush.bf16.xpose.msra.mxu0 %v317
      %390 = vmatpush.bf16.xpose.msra.mxu0 %v314
      %391 = vmatpush.bf16.xpose.msra.mxu0 %v311
      %392 = vmatpush.bf16.xpose.msra.mxu0 %v308
      %393 = vmatmul.bf16.gmra.mxu0 %v233
      %v394 = vpop.f32.mrf.mxu0
      %v395 = vadd.f32 0.0, %v394
      %v396 = vpop.f32.mrf.mxu0
      %397 = vdwg.mxu0
      %398 = vmatpush.bf16.xpose.msra.mxu0 0
      %399 = vmatpush.bf16.xpose.msra.mxu0 0
      %400 = vmatpush.bf16.xpose.msra.mxu0 0
      %401 = vmatpush.bf16.xpose.msra.mxu0 %v344
      %402 = vmatpush.bf16.xpose.msra.mxu0 %v341
      %403 = vmatpush.bf16.xpose.msra.mxu0 %v338
      %404 = vmatpush.bf16.xpose.msra.mxu0 %v335
      %405 = vmatpush.bf16.xpose.msra.mxu0 %v332
      %406 = vmatmul.bf16.gmra.mxu0 %v233
      %v407 = vpop.f32.mrf.mxu0
      %v408 = vadd.f32 0.0, %v407
      %v409 = vpop.f32.mrf.mxu0
      %410 = vdwg.mxu0
      %v411 = vmul.f32 %v356, 0.25
      %v412 = vmul.f32 %v369, 0.25
      %v413 = vmul.f32 %v382, 0.25
      %v414 = vmul.f32 %v395, 0.25
      %v415 = vmul.f32 %v408, 0.25
      %vm416 = vcmask 588800
      %v417 = vsel %vm416, %v415, -inf
      %v418 = vmax.f32 %v411, %v417
      %v419 = vmax.f32 %v418, %v412
      %v420 = vmax.f32 %v413, %v414
      %v421 = vmax.f32 %v419, %v420
      %422 = vmax.xlane.f32.xlu0 %v421
      %v423 = vpop.xlane.xlu0 %422
      %v424 = vsub.f32 %v411, %v423
      %v425 = vsub.f32 %v412, %v423
      %v426 = vsub.f32 %v413, %v423
      %v427 = vsub.f32 %v414, %v423
      %v428 = vsub.f32 %v415, %v423
      %v429 = vmul.f32 %v424, 1.442695
      %v430 = vpow.pop %v429
      %v431 = vmul.f32 %v425, 1.442695
      %v432 = vpow.pop %v431
      %v433 = vmul.f32 %v426, 1.442695
      %v434 = vpow.pop %v433
      %v435 = vmul.f32 %v427, 1.442695
      %v436 = vpow.pop %v435
      %v437 = vmul.f32 %v428, 1.442695
      %v438 = vpow.pop %v437
      %v439 = vadd.f32 %v430, %v432
      %v440 = vadd.f32 %v439, %v434
      %v441 = vadd.f32 %v440, %v436
      %v442 = vsel %vm416, %v438, 0.0
      %v443 = vadd.f32 %v441, %v442
      %444 = vadd.xlane.f32.xlu0 %v443
      %v445 = vpop.xlane.xlu0 %444
      %v446 = vrcp.pop %v445
      %v447 = vmul.f32 %v445, %v446
      %v448 = vsub.f32 1.0, %v447
      %v449 = vmul.f32 %v446, %v448
      %v450 = vadd.f32 %v446, %v449
      %vm451 = vweird.f32 %v445
      %vm452 = vweird.f32 %v446
      %vm453 = vmor %vm451, %vm452
      %v454 = vsel %vm453, %v446, %v450
      %v455 = vand.u32 2147483647, %v445
      %vm456 = vcmp.eq.f32.partialorder %v455, 8.507059e+37
      %v457 = vand.u32 %v445, 2147483648
      %v458 = vor.u32 1.1754944e-38, %v457
      %v459 = vsel %vm456, %v458, %v454
      %v460 = vmul.f32 %v430, %v459
      %v461 = vmul.f32 %v432, %v459
      %v462 = vmul.f32 %v434, %v459
      %v463 = vmul.f32 %v436, %v459
      %v464 = vmul.f32 %v438, %v459
      %v465 = vrot.slane %v460, 4
      %v466 = vadd.f32 %v460, %v465
      %v467 = vrot.slane %v466, 2
      %v468 = vadd.f32 %v466, %v467
      %v469 = vrot.slane %v468, 1
      %v470 = vadd.f32 %v468, %v469
      %v471 = vrot.slane %v461, 4
      %v472 = vadd.f32 %v461, %v471
      %v473 = vrot.slane %v472, 2
      %v474 = vadd.f32 %v472, %v473
      %v475 = vrot.slane %v474, 1
      %v476 = vadd.f32 %v474, %v475
      %v477 = vrot.slane %v462, 4
      %v478 = vadd.f32 %v462, %v477
      %v479 = vrot.slane %v478, 2
      %v480 = vadd.f32 %v478, %v479
      %v481 = vrot.slane %v480, 1
      %v482 = vadd.f32 %v480, %v481
      %v483 = vrot.slane %v463, 4
      %v484 = vadd.f32 %v463, %v483
      %v485 = vrot.slane %v484, 2
      %v486 = vadd.f32 %v484, %v485
      %v487 = vrot.slane %v486, 1
      %v488 = vadd.f32 %v486, %v487
      %v489 = vsel %vm416, %v464, 0.0
      %v490 = vrot.slane %v489, 4
      %v491 = vadd.f32 %v489, %v490
      %v492 = vrot.slane %v491, 2
      %v493 = vadd.f32 %v491, %v492
      %v494 = vrot.slane %v493, 1
      %v495 = vadd.f32 %v493, %v494
      %v496 = vadd.f32 %v470, 0.98630136
      %v497 = vadd.f32 %v476, 0.98630136
      %v498 = vadd.f32 %v482, 0.98630136
      %v499 = vadd.f32 %v488, 0.98630136
      %v500 = vadd.f32 %v495, 0.98630136
      %502 = vrot.lane.b32.xlu0 %v230, 112
      %v503 = vpop.permute.xlu0 %502
      %541 = vrot.lane.b32.xlu0 %v193, 112
      %v542 = vpop.permute.xlu0 %541
      %543 = vrot.lane.b32.xlu0 %v194, 112
      %v544 = vpop.permute.xlu0 %543
      %545 = vrot.lane.b32.xlu0 %v195, 112
      %v546 = vpop.permute.xlu0 %545
      %547 = vrot.lane.b32.xlu0 %v196, 112
      %v548 = vpop.permute.xlu0 %547
      %549 = vrot.lane.b32.xlu0 %v197, 112
      %v550 = vpop.permute.xlu0 %549
      %551 = vrot.lane.b32.xlu0 %v198, 112
      %v552 = vpop.permute.xlu0 %551
      %553 = vrot.lane.b32.xlu0 %v199, 112
      %v554 = vpop.permute.xlu0 %553
      %555 = vrot.lane.b32.xlu0 %v200, 112
      %v556 = vpop.permute.xlu0 %555
      %557 = vrot.lane.b32.xlu0 %v201, 112
      %v558 = vpop.permute.xlu0 %557
      %559 = vrot.lane.b32.xlu0 %v202, 112
      %v560 = vpop.permute.xlu0 %559
      %561 = vrot.lane.b32.xlu0 %v203, 112
      %v562 = vpop.permute.xlu0 %561
      %563 = vrot.lane.b32.xlu0 %v204, 112
      %v564 = vpop.permute.xlu0 %563
      %565 = vrot.lane.b32.xlu0 %v205, 112
      %v566 = vpop.permute.xlu0 %565
      %567 = vrot.lane.b32.xlu0 %v206, 112
      %v568 = vpop.permute.xlu0 %567
      %569 = vrot.lane.b32.xlu0 %v207, 112
      %v570 = vpop.permute.xlu0 %569
      %571 = vrot.lane.b32.xlu0 %v208, 112
      %v572 = vpop.permute.xlu0 %571
      %573 = vrot.lane.b32.xlu0 %v209, 112
      %v574 = vpop.permute.xlu0 %573
      %575 = vrot.lane.b32.xlu0 %v210, 112
      %v576 = vpop.permute.xlu0 %575
      %577 = vrot.lane.b32.xlu0 %v211, 112
      %v578 = vpop.permute.xlu0 %577
      %579 = vrot.lane.b32.xlu0 %v212, 112
      %v580 = vpop.permute.xlu0 %579
      %581 = vrot.lane.b32.xlu0 %v213, 112
      %v582 = vpop.permute.xlu0 %581
      %583 = vrot.lane.b32.xlu0 %v214, 112
      %v584 = vpop.permute.xlu0 %583
      %585 = vrot.lane.b32.xlu0 %v215, 112
      %v586 = vpop.permute.xlu0 %585
      %587 = vrot.lane.b32.xlu0 %v216, 112
      %v588 = vpop.permute.xlu0 %587
      %589 = vrot.lane.b32.xlu0 %v217, 112
      %v590 = vpop.permute.xlu0 %589
      %591 = vrot.lane.b32.xlu0 %v218, 112
      %v592 = vpop.permute.xlu0 %591
      %593 = vrot.lane.b32.xlu0 %v219, 112
      %v594 = vpop.permute.xlu0 %593
      %595 = vrot.lane.b32.xlu0 %v220, 112
      %v596 = vpop.permute.xlu0 %595
      %597 = vrot.lane.b32.xlu0 %v221, 112
      %v598 = vpop.permute.xlu0 %597
      %599 = vrot.lane.b32.xlu0 %v222, 112
      %v600 = vpop.permute.xlu0 %599
      %601 = vrot.lane.b32.xlu0 %v223, 112
      %v602 = vpop.permute.xlu0 %601
      %603 = vrot.lane.b32.xlu0 %v224, 112
      %v604 = vpop.permute.xlu0 %603
      %605 = vrot.lane.b32.xlu0 %v225, 112
      %v606 = vpop.permute.xlu0 %605
      %607 = vrot.lane.b32.xlu0 %v226, 112
      %v608 = vpop.permute.xlu0 %607
      %609 = vrot.lane.b32.xlu0 %v227, 112
      %v610 = vpop.permute.xlu0 %609
      %611 = vrot.lane.b32.xlu0 %v228, 112
      %v612 = vpop.permute.xlu0 %611
      %613 = vrot.lane.b32.xlu0 %v229, 112
      %v614 = vpop.permute.xlu0 %613
      %v616 = vsel %vm231, %v503, 0
      %v619 = vsel %vm231, %v542, 0
      %v622 = vsel %vm231, %v544, 0
      %v625 = vsel %vm231, %v546, 0
      %v628 = vsel %vm231, %v548, 0
      %v631 = vsel %vm231, %v550, 0
      %v634 = vsel %vm231, %v552, 0
      %v637 = vsel %vm231, %v554, 0
      %v640 = vsel %vm231, %v556, 0
      %v643 = vsel %vm231, %v558, 0
      %v646 = vsel %vm231, %v560, 0
      %v649 = vsel %vm231, %v562, 0
      %v652 = vsel %vm231, %v564, 0
      %v655 = vsel %vm231, %v566, 0
      %v658 = vsel %vm231, %v568, 0
      %v661 = vsel %vm231, %v570, 0
      %v664 = vsel %vm231, %v572, 0
      %v667 = vsel %vm231, %v574, 0
      %v670 = vsel %vm231, %v576, 0
      %v673 = vsel %vm231, %v578, 0
      %v676 = vsel %vm231, %v580, 0
      %v679 = vsel %vm231, %v582, 0
      %v682 = vsel %vm231, %v584, 0
      %v685 = vsel %vm231, %v586, 0
      %v688 = vsel %vm231, %v588, 0
      %v691 = vsel %vm231, %v590, 0
      %v694 = vsel %vm231, %v592, 0
      %v697 = vsel %vm231, %v594, 0
      %v700 = vsel %vm231, %v596, 0
      %v703 = vsel %vm231, %v598, 0
      %v706 = vsel %vm231, %v600, 0
      %v709 = vsel %vm231, %v602, 0
      %v712 = vsel %vm231, %v604, 0
      %v715 = vsel %vm231, %v606, 0
      %v718 = vsel %vm231, %v608, 0
      %v721 = vsel %vm231, %v610, 0
      %v724 = vsel %vm231, %v612, 0
      %v727 = vsel %vm231, %v614, 0
      %729 = vmatpush.bf16.xpose.msra.mxu0 %v640
      %730 = vmatpush.bf16.xpose.msra.mxu0 %v637
      %731 = vmatpush.bf16.xpose.msra.mxu0 %v634
      %732 = vmatpush.bf16.xpose.msra.mxu0 %v631
      %733 = vmatpush.bf16.xpose.msra.mxu0 %v628
      %734 = vmatpush.bf16.xpose.msra.mxu0 %v625
      %735 = vmatpush.bf16.xpose.msra.mxu0 %v622
      %736 = vmatpush.bf16.xpose.msra.mxu0 %v619
      %737 = vmatmul.bf16.gmra.mxu0 %v616
      %v738 = vpop.f32.mrf.mxu0
      %v739 = vadd.f32 0.0, %v738
      %v740 = vpop.f32.mrf.mxu0
      %741 = vdwg.mxu0
      %742 = vmatpush.bf16.xpose.msra.mxu0 %v664
      %743 = vmatpush.bf16.xpose.msra.mxu0 %v661
      %744 = vmatpush.bf16.xpose.msra.mxu0 %v658
      %745 = vmatpush.bf16.xpose.msra.mxu0 %v655
      %746 = vmatpush.bf16.xpose.msra.mxu0 %v652
      %747 = vmatpush.bf16.xpose.msra.mxu0 %v649
      %748 = vmatpush.bf16.xpose.msra.mxu0 %v646
      %749 = vmatpush.bf16.xpose.msra.mxu0 %v643
      %750 = vmatmul.bf16.gmra.mxu0 %v616
      %v751 = vpop.f32.mrf.mxu0
      %v752 = vadd.f32 0.0, %v751
      %v753 = vpop.f32.mrf.mxu0
      %754 = vdwg.mxu0
      %755 = vmatpush.bf16.xpose.msra.mxu0 %v688
      %756 = vmatpush.bf16.xpose.msra.mxu0 %v685
      %757 = vmatpush.bf16.xpose.msra.mxu0 %v682
      %758 = vmatpush.bf16.xpose.msra.mxu0 %v679
      %759 = vmatpush.bf16.xpose.msra.mxu0 %v676
      %760 = vmatpush.bf16.xpose.msra.mxu0 %v673
      %761 = vmatpush.bf16.xpose.msra.mxu0 %v670
      %762 = vmatpush.bf16.xpose.msra.mxu0 %v667
      %763 = vmatmul.bf16.gmra.mxu0 %v616
      %v764 = vpop.f32.mrf.mxu0
      %v765 = vadd.f32 0.0, %v764
      %v766 = vpop.f32.mrf.mxu0
      %767 = vdwg.mxu0
      %768 = vmatpush.bf16.xpose.msra.mxu0 %v712
      %769 = vmatpush.bf16.xpose.msra.mxu0 %v709
      %770 = vmatpush.bf16.xpose.msra.mxu0 %v706
      %771 = vmatpush.bf16.xpose.msra.mxu0 %v703
      %772 = vmatpush.bf16.xpose.msra.mxu0 %v700
      %773 = vmatpush.bf16.xpose.msra.mxu0 %v697
      %774 = vmatpush.bf16.xpose.msra.mxu0 %v694
      %775 = vmatpush.bf16.xpose.msra.mxu0 %v691
      %776 = vmatmul.bf16.gmra.mxu0 %v616
      %v777 = vpop.f32.mrf.mxu0
      %v778 = vadd.f32 0.0, %v777
      %v779 = vpop.f32.mrf.mxu0
      %780 = vdwg.mxu0
      %781 = vmatpush.bf16.xpose.msra.mxu0 0
      %782 = vmatpush.bf16.xpose.msra.mxu0 0
      %783 = vmatpush.bf16.xpose.msra.mxu0 0
      %784 = vmatpush.bf16.xpose.msra.mxu0 %v727
      %785 = vmatpush.bf16.xpose.msra.mxu0 %v724
      %786 = vmatpush.bf16.xpose.msra.mxu0 %v721
      %787 = vmatpush.bf16.xpose.msra.mxu0 %v718
      %788 = vmatpush.bf16.xpose.msra.mxu0 %v715
      %789 = vmatmul.bf16.gmra.mxu0 %v616
      %v790 = vpop.f32.mrf.mxu0
      %v791 = vadd.f32 0.0, %v790
      %v792 = vpop.f32.mrf.mxu0
      %793 = vdwg.mxu0
      %v794 = vmul.f32 %v739, 0.25
      %v795 = vmul.f32 %v752, 0.25
      %v796 = vmul.f32 %v765, 0.25
      %v797 = vmul.f32 %v778, 0.25
      %v798 = vmul.f32 %v791, 0.25
      %v799 = vsel %vm416, %v798, -inf
      %v800 = vmax.f32 %v794, %v799
      %v801 = vmax.f32 %v800, %v795
      %v802 = vmax.f32 %v796, %v797
      %v803 = vmax.f32 %v801, %v802
      %804 = vmax.xlane.f32.xlu0 %v803
      %v805 = vpop.xlane.xlu0 %804
      %v806 = vsub.f32 %v794, %v805
      %v807 = vsub.f32 %v795, %v805
      %v808 = vsub.f32 %v796, %v805
      %v809 = vsub.f32 %v797, %v805
      %v810 = vsub.f32 %v798, %v805
      %v811 = vmul.f32 %v806, 1.442695
      %v812 = vpow.pop %v811
      %v813 = vmul.f32 %v807, 1.442695
      %v814 = vpow.pop %v813
      %v815 = vmul.f32 %v808, 1.442695
      %v816 = vpow.pop %v815
      %v817 = vmul.f32 %v809, 1.442695
      %v818 = vpow.pop %v817
      %v819 = vmul.f32 %v810, 1.442695
      %v820 = vpow.pop %v819
      %v821 = vadd.f32 %v812, %v814
      %v822 = vadd.f32 %v821, %v816
      %v823 = vadd.f32 %v822, %v818
      %v824 = vsel %vm416, %v820, 0.0
      %v825 = vadd.f32 %v823, %v824
      %826 = vadd.xlane.f32.xlu0 %v825
      %v827 = vpop.xlane.xlu0 %826
      %v828 = vrcp.pop %v827
      %v829 = vmul.f32 %v827, %v828
      %v830 = vsub.f32 1.0, %v829
      %v831 = vmul.f32 %v828, %v830
      %v832 = vadd.f32 %v828, %v831
      %vm833 = vweird.f32 %v827
      %vm834 = vweird.f32 %v828
      %vm835 = vmor %vm833, %vm834
      %v836 = vsel %vm835, %v828, %v832
      %v837 = vand.u32 2147483647, %v827
      %vm838 = vcmp.eq.f32.partialorder %v837, 8.507059e+37
      %v839 = vand.u32 %v827, 2147483648
      %v840 = vor.u32 1.1754944e-38, %v839
      %v841 = vsel %vm838, %v840, %v836
      %v842 = vmul.f32 %v812, %v841
      %v843 = vmul.f32 %v814, %v841
      %v844 = vmul.f32 %v816, %v841
      %v845 = vmul.f32 %v818, %v841
      %v846 = vmul.f32 %v820, %v841
      %v847 = vrot.slane %v842, 4
      %v848 = vadd.f32 %v842, %v847
      %v849 = vrot.slane %v848, 2
      %v850 = vadd.f32 %v848, %v849
      %v851 = vrot.slane %v850, 1
      %v852 = vadd.f32 %v850, %v851
      %v853 = vrot.slane %v843, 4
      %v854 = vadd.f32 %v843, %v853
      %v855 = vrot.slane %v854, 2
      %v856 = vadd.f32 %v854, %v855
      %v857 = vrot.slane %v856, 1
      %v858 = vadd.f32 %v856, %v857
      %v859 = vrot.slane %v844, 4
      %v860 = vadd.f32 %v844, %v859
      %v861 = vrot.slane %v860, 2
      %v862 = vadd.f32 %v860, %v861
      %v863 = vrot.slane %v862, 1
      %v864 = vadd.f32 %v862, %v863
      %v865 = vrot.slane %v845, 4
      %v866 = vadd.f32 %v845, %v865
      %v867 = vrot.slane %v866, 2
      %v868 = vadd.f32 %v866, %v867
      %v869 = vrot.slane %v868, 1
      %v870 = vadd.f32 %v868, %v869
      %v871 = vsel %vm416, %v846, 0.0
      %v872 = vrot.slane %v871, 4
      %v873 = vadd.f32 %v871, %v872
      %v874 = vrot.slane %v873, 2
      %v875 = vadd.f32 %v873, %v874
      %v876 = vrot.slane %v875, 1
      %v877 = vadd.f32 %v875, %v876
      %v878 = vadd.f32 %v852, 0.98630136
      %v879 = vadd.f32 %v858, 0.98630136
      %v880 = vadd.f32 %v864, 0.98630136
      %v881 = vadd.f32 %v870, 0.98630136
      %v882 = vadd.f32 %v877, 0.98630136
      %883 = vrot.lane.b32.xlu0 %v230, 96
      %v884 = vpop.permute.xlu0 %883
      %885 = vrot.lane.b32.xlu0 %v193, 96
      %v886 = vpop.permute.xlu0 %885
      %887 = vrot.lane.b32.xlu0 %v194, 96
      %v888 = vpop.permute.xlu0 %887
      %889 = vrot.lane.b32.xlu0 %v195, 96
      %v890 = vpop.permute.xlu0 %889
      %891 = vrot.lane.b32.xlu0 %v196, 96
      %v892 = vpop.permute.xlu0 %891
      %893 = vrot.lane.b32.xlu0 %v197, 96
      %v894 = vpop.permute.xlu0 %893
      %895 = vrot.lane.b32.xlu0 %v198, 96
      %v896 = vpop.permute.xlu0 %895
      %897 = vrot.lane.b32.xlu0 %v199, 96
      %v898 = vpop.permute.xlu0 %897
      %899 = vrot.lane.b32.xlu0 %v200, 96
      %v900 = vpop.permute.xlu0 %899
      %901 = vrot.lane.b32.xlu0 %v201, 96
      %v902 = vpop.permute.xlu0 %901
      %903 = vrot.lane.b32.xlu0 %v202, 96
      %v904 = vpop.permute.xlu0 %903
      %905 = vrot.lane.b32.xlu0 %v203, 96
      %v906 = vpop.permute.xlu0 %905
      %907 = vrot.lane.b32.xlu0 %v204, 96
      %v908 = vpop.permute.xlu0 %907
      %909 = vrot.lane.b32.xlu0 %v205, 96
      %v910 = vpop.permute.xlu0 %909
      %911 = vrot.lane.b32.xlu0 %v206, 96
      %v912 = vpop.permute.xlu0 %911
      %913 = vrot.lane.b32.xlu0 %v207, 96
      %v914 = vpop.permute.xlu0 %913
      %915 = vrot.lane.b32.xlu0 %v208, 96
      %v916 = vpop.permute.xlu0 %915
      %917 = vrot.lane.b32.xlu0 %v209, 96
      %v918 = vpop.permute.xlu0 %917
      %919 = vrot.lane.b32.xlu0 %v210, 96
      %v920 = vpop.permute.xlu0 %919
      %921 = vrot.lane.b32.xlu0 %v211, 96
      %v922 = vpop.permute.xlu0 %921
      %923 = vrot.lane.b32.xlu0 %v212, 96
      %v924 = vpop.permute.xlu0 %923
      %925 = vrot.lane.b32.xlu0 %v213, 96
      %v926 = vpop.permute.xlu0 %925
      %927 = vrot.lane.b32.xlu0 %v214, 96
      %v928 = vpop.permute.xlu0 %927
      %929 = vrot.lane.b32.xlu0 %v215, 96
      %v930 = vpop.permute.xlu0 %929
      %931 = vrot.lane.b32.xlu0 %v216, 96
      %v932 = vpop.permute.xlu0 %931
      %933 = vrot.lane.b32.xlu0 %v217, 96
      %v934 = vpop.permute.xlu0 %933
      %935 = vrot.lane.b32.xlu0 %v218, 96
      %v936 = vpop.permute.xlu0 %935
      %937 = vrot.lane.b32.xlu0 %v219, 96
      %v938 = vpop.permute.xlu0 %937
      %939 = vrot.lane.b32.xlu0 %v220, 96
      %v940 = vpop.permute.xlu0 %939
      %941 = vrot.lane.b32.xlu0 %v221, 96
      %v942 = vpop.permute.xlu0 %941
      %943 = vrot.lane.b32.xlu0 %v222, 96
      %v944 = vpop.permute.xlu0 %943
      %945 = vrot.lane.b32.xlu0 %v223, 96
      %v946 = vpop.permute.xlu0 %945
      %947 = vrot.lane.b32.xlu0 %v224, 96
      %v948 = vpop.permute.xlu0 %947
      %949 = vrot.lane.b32.xlu0 %v225, 96
      %v950 = vpop.permute.xlu0 %949
      %951 = vrot.lane.b32.xlu0 %v226, 96
      %v952 = vpop.permute.xlu0 %951
      %953 = vrot.lane.b32.xlu0 %v227, 96
      %v954 = vpop.permute.xlu0 %953
      %955 = vrot.lane.b32.xlu0 %v228, 96
      %v956 = vpop.permute.xlu0 %955
      %957 = vrot.lane.b32.xlu0 %v229, 96
      %v958 = vpop.permute.xlu0 %957
      %v960 = vsel %vm231, %v884, 0
      %v963 = vsel %vm231, %v886, 0
      %v966 = vsel %vm231, %v888, 0
      %v969 = vsel %vm231, %v890, 0
      %v972 = vsel %vm231, %v892, 0
      %v975 = vsel %vm231, %v894, 0
      %v978 = vsel %vm231, %v896, 0
      %v981 = vsel %vm231, %v898, 0
      %v984 = vsel %vm231, %v900, 0
      %v987 = vsel %vm231, %v902, 0
      %v990 = vsel %vm231, %v904, 0
      %v993 = vsel %vm231, %v906, 0
      %v996 = vsel %vm231, %v908, 0
      %v999 = vsel %vm231, %v910, 0
      %v1002 = vsel %vm231, %v912, 0
      %v1005 = vsel %vm231, %v914, 0
      %v1008 = vsel %vm231, %v916, 0
      %v1011 = vsel %vm231, %v918, 0
      %v1014 = vsel %vm231, %v920, 0
      %v1017 = vsel %vm231, %v922, 0
      %v1020 = vsel %vm231, %v924, 0
      %v1023 = vsel %vm231, %v926, 0
      %v1026 = vsel %vm231, %v928, 0
      %v1029 = vsel %vm231, %v930, 0
      %v1032 = vsel %vm231, %v932, 0
      %v1035 = vsel %vm231, %v934, 0
      %v1038 = vsel %vm231, %v936, 0
      %v1041 = vsel %vm231, %v938, 0
      %v1044 = vsel %vm231, %v940, 0
      %v1047 = vsel %vm231, %v942, 0
      %v1050 = vsel %vm231, %v944, 0
      %v1053 = vsel %vm231, %v946, 0
      %v1056 = vsel %vm231, %v948, 0
      %v1059 = vsel %vm231, %v950, 0
      %v1062 = vsel %vm231, %v952, 0
      %v1065 = vsel %vm231, %v954, 0
      %v1068 = vsel %vm231, %v956, 0
      %v1071 = vsel %vm231, %v958, 0
      %1073 = vmatpush.bf16.xpose.msra.mxu0 %v984
      %1074 = vmatpush.bf16.xpose.msra.mxu0 %v981
      %1075 = vmatpush.bf16.xpose.msra.mxu0 %v978
      %1076 = vmatpush.bf16.xpose.msra.mxu0 %v975
      %1077 = vmatpush.bf16.xpose.msra.mxu0 %v972
      %1078 = vmatpush.bf16.xpose.msra.mxu0 %v969
      %1079 = vmatpush.bf16.xpose.msra.mxu0 %v966
      %1080 = vmatpush.bf16.xpose.msra.mxu0 %v963
      %1081 = vmatmul.bf16.gmra.mxu0 %v960
      %v1082 = vpop.f32.mrf.mxu0
      %v1083 = vadd.f32 0.0, %v1082
      %v1084 = vpop.f32.mrf.mxu0
      %1085 = vdwg.mxu0
      %1086 = vmatpush.bf16.xpose.msra.mxu0 %v1008
      %1087 = vmatpush.bf16.xpose.msra.mxu0 %v1005
      %1088 = vmatpush.bf16.xpose.msra.mxu0 %v1002
      %1089 = vmatpush.bf16.xpose.msra.mxu0 %v999
      %1090 = vmatpush.bf16.xpose.msra.mxu0 %v996
      %1091 = vmatpush.bf16.xpose.msra.mxu0 %v993
      %1092 = vmatpush.bf16.xpose.msra.mxu0 %v990
      %1093 = vmatpush.bf16.xpose.msra.mxu0 %v987
      %1094 = vmatmul.bf16.gmra.mxu0 %v960
      %v1095 = vpop.f32.mrf.mxu0
      %v1096 = vadd.f32 0.0, %v1095
      %v1097 = vpop.f32.mrf.mxu0
      %1098 = vdwg.mxu0
      %1099 = vmatpush.bf16.xpose.msra.mxu0 %v1032
      %1100 = vmatpush.bf16.xpose.msra.mxu0 %v1029
      %1101 = vmatpush.bf16.xpose.msra.mxu0 %v1026
      %1102 = vmatpush.bf16.xpose.msra.mxu0 %v1023
      %1103 = vmatpush.bf16.xpose.msra.mxu0 %v1020
      %1104 = vmatpush.bf16.xpose.msra.mxu0 %v1017
      %1105 = vmatpush.bf16.xpose.msra.mxu0 %v1014
      %1106 = vmatpush.bf16.xpose.msra.mxu0 %v1011
      %1107 = vmatmul.bf16.gmra.mxu0 %v960
      %v1108 = vpop.f32.mrf.mxu0
      %v1109 = vadd.f32 0.0, %v1108
      %v1110 = vpop.f32.mrf.mxu0
      %1111 = vdwg.mxu0
      %1112 = vmatpush.bf16.xpose.msra.mxu0 %v1056
      %1113 = vmatpush.bf16.xpose.msra.mxu0 %v1053
      %1114 = vmatpush.bf16.xpose.msra.mxu0 %v1050
      %1115 = vmatpush.bf16.xpose.msra.mxu0 %v1047
      %1116 = vmatpush.bf16.xpose.msra.mxu0 %v1044
      %1117 = vmatpush.bf16.xpose.msra.mxu0 %v1041
      %1118 = vmatpush.bf16.xpose.msra.mxu0 %v1038
      %1119 = vmatpush.bf16.xpose.msra.mxu0 %v1035
      %1120 = vmatmul.bf16.gmra.mxu0 %v960
      %v1121 = vpop.f32.mrf.mxu0
      %v1122 = vadd.f32 0.0, %v1121
      %v1123 = vpop.f32.mrf.mxu0
      %1124 = vdwg.mxu0
      %1125 = vmatpush.bf16.xpose.msra.mxu0 0
      %1126 = vmatpush.bf16.xpose.msra.mxu0 0
      %1127 = vmatpush.bf16.xpose.msra.mxu0 0
      %1128 = vmatpush.bf16.xpose.msra.mxu0 %v1071
      %1129 = vmatpush.bf16.xpose.msra.mxu0 %v1068
      %1130 = vmatpush.bf16.xpose.msra.mxu0 %v1065
      %1131 = vmatpush.bf16.xpose.msra.mxu0 %v1062
      %1132 = vmatpush.bf16.xpose.msra.mxu0 %v1059
      %1133 = vmatmul.bf16.gmra.mxu0 %v960
      %v1134 = vpop.f32.mrf.mxu0
      %v1135 = vadd.f32 0.0, %v1134
      %v1136 = vpop.f32.mrf.mxu0
      %1137 = vdwg.mxu0
      %v1138 = vmul.f32 %v1083, 0.25
      %v1139 = vmul.f32 %v1096, 0.25
      %v1140 = vmul.f32 %v1109, 0.25
      %v1141 = vmul.f32 %v1122, 0.25
      %v1142 = vmul.f32 %v1135, 0.25
      %v1143 = vsel %vm416, %v1142, -inf
      %v1144 = vmax.f32 %v1138, %v1143
      %v1145 = vmax.f32 %v1144, %v1139
      %v1146 = vmax.f32 %v1140, %v1141
      %v1147 = vmax.f32 %v1145, %v1146
      %1148 = vmax.xlane.f32.xlu0 %v1147
      %v1149 = vpop.xlane.xlu0 %1148
      %v1150 = vsub.f32 %v1138, %v1149
      %v1151 = vsub.f32 %v1139, %v1149
      %v1152 = vsub.f32 %v1140, %v1149
      %v1153 = vsub.f32 %v1141, %v1149
      %v1154 = vsub.f32 %v1142, %v1149
      %v1155 = vmul.f32 %v1150, 1.442695
      %v1156 = vpow.pop %v1155
      %v1157 = vmul.f32 %v1151, 1.442695
      %v1158 = vpow.pop %v1157
      %v1159 = vmul.f32 %v1152, 1.442695
      %v1160 = vpow.pop %v1159
      %v1161 = vmul.f32 %v1153, 1.442695
      %v1162 = vpow.pop %v1161
      %v1163 = vmul.f32 %v1154, 1.442695
      %v1164 = vpow.pop %v1163
      %v1165 = vadd.f32 %v1156, %v1158
      %v1166 = vadd.f32 %v1165, %v1160
      %v1167 = vadd.f32 %v1166, %v1162
      %v1168 = vsel %vm416, %v1164, 0.0
      %v1169 = vadd.f32 %v1167, %v1168
      %1170 = vadd.xlane.f32.xlu0 %v1169
      %v1171 = vpop.xlane.xlu0 %1170
      %v1172 = vrcp.pop %v1171
      %v1173 = vmul.f32 %v1171, %v1172
      %v1174 = vsub.f32 1.0, %v1173
      %v1175 = vmul.f32 %v1172, %v1174
      %v1176 = vadd.f32 %v1172, %v1175
      %vm1177 = vweird.f32 %v1171
      %vm1178 = vweird.f32 %v1172
      %vm1179 = vmor %vm1177, %vm1178
      %v1180 = vsel %vm1179, %v1172, %v1176
      %v1181 = vand.u32 2147483647, %v1171
      %vm1182 = vcmp.eq.f32.partialorder %v1181, 8.507059e+37
      %v1183 = vand.u32 %v1171, 2147483648
      %v1184 = vor.u32 1.1754944e-38, %v1183
      %v1185 = vsel %vm1182, %v1184, %v1180
      %v1186 = vmul.f32 %v1156, %v1185
      %v1187 = vmul.f32 %v1158, %v1185
      %v1188 = vmul.f32 %v1160, %v1185
      %v1189 = vmul.f32 %v1162, %v1185
      %v1190 = vmul.f32 %v1164, %v1185
      %v1191 = vrot.slane %v1186, 4
      %v1192 = vadd.f32 %v1186, %v1191
      %v1193 = vrot.slane %v1192, 2
      %v1194 = vadd.f32 %v1192, %v1193
      %v1195 = vrot.slane %v1194, 1
      %v1196 = vadd.f32 %v1194, %v1195
      %v1197 = vrot.slane %v1187, 4
      %v1198 = vadd.f32 %v1187, %v1197
      %v1199 = vrot.slane %v1198, 2
      %v1200 = vadd.f32 %v1198, %v1199
      %v1201 = vrot.slane %v1200, 1
      %v1202 = vadd.f32 %v1200, %v1201
      %v1203 = vrot.slane %v1188, 4
      %v1204 = vadd.f32 %v1188, %v1203
      %v1205 = vrot.slane %v1204, 2
      %v1206 = vadd.f32 %v1204, %v1205
      %v1207 = vrot.slane %v1206, 1
      %v1208 = vadd.f32 %v1206, %v1207
      %v1209 = vrot.slane %v1189, 4
      %v1210 = vadd.f32 %v1189, %v1209
      %v1211 = vrot.slane %v1210, 2
      %v1212 = vadd.f32 %v1210, %v1211
      %v1213 = vrot.slane %v1212, 1
      %v1214 = vadd.f32 %v1212, %v1213
      %v1215 = vsel %vm416, %v1190, 0.0
      %v1216 = vrot.slane %v1215, 4
      %v1217 = vadd.f32 %v1215, %v1216
      %v1218 = vrot.slane %v1217, 2
      %v1219 = vadd.f32 %v1217, %v1218
      %v1220 = vrot.slane %v1219, 1
      %v1221 = vadd.f32 %v1219, %v1220
      %v1222 = vadd.f32 %v1196, 0.98630136
      %v1223 = vadd.f32 %v1202, 0.98630136
      %v1224 = vadd.f32 %v1208, 0.98630136
      %v1225 = vadd.f32 %v1214, 0.98630136
      %v1226 = vadd.f32 %v1221, 0.98630136
      %1227 = vrot.lane.b32.xlu0 %v230, 80
      %v1228 = vpop.permute.xlu0 %1227
      %1229 = vrot.lane.b32.xlu0 %v193, 80
      %v1230 = vpop.permute.xlu0 %1229
      %1231 = vrot.lane.b32.xlu0 %v194, 80
      %v1232 = vpop.permute.xlu0 %1231
      %1233 = vrot.lane.b32.xlu0 %v195, 80
      %v1234 = vpop.permute.xlu0 %1233
      %1235 = vrot.lane.b32.xlu0 %v196, 80
      %v1236 = vpop.permute.xlu0 %1235
      %1237 = vrot.lane.b32.xlu0 %v197, 80
      %v1238 = vpop.permute.xlu0 %1237
      %1239 = vrot.lane.b32.xlu0 %v198, 80
      %v1240 = vpop.permute.xlu0 %1239
      %1241 = vrot.lane.b32.xlu0 %v199, 80
      %v1242 = vpop.permute.xlu0 %1241
      %1243 = vrot.lane.b32.xlu0 %v200, 80
      %v1244 = vpop.permute.xlu0 %1243
      %1245 = vrot.lane.b32.xlu0 %v201, 80
      %v1246 = vpop.permute.xlu0 %1245
      %1247 = vrot.lane.b32.xlu0 %v202, 80
      %v1248 = vpop.permute.xlu0 %1247
      %1249 = vrot.lane.b32.xlu0 %v203, 80
      %v1250 = vpop.permute.xlu0 %1249
      %1251 = vrot.lane.b32.xlu0 %v204, 80
      %v1252 = vpop.permute.xlu0 %1251
      %1253 = vrot.lane.b32.xlu0 %v205, 80
      %v1254 = vpop.permute.xlu0 %1253
      %1255 = vrot.lane.b32.xlu0 %v206, 80
      %v1256 = vpop.permute.xlu0 %1255
      %1257 = vrot.lane.b32.xlu0 %v207, 80
      %v1258 = vpop.permute.xlu0 %1257
      %1259 = vrot.lane.b32.xlu0 %v208, 80
      %v1260 = vpop.permute.xlu0 %1259
      %1261 = vrot.lane.b32.xlu0 %v209, 80
      %v1262 = vpop.permute.xlu0 %1261
      %1263 = vrot.lane.b32.xlu0 %v210, 80
      %v1264 = vpop.permute.xlu0 %1263
      %1265 = vrot.lane.b32.xlu0 %v211, 80
      %v1266 = vpop.permute.xlu0 %1265
      %1267 = vrot.lane.b32.xlu0 %v212, 80
      %v1268 = vpop.permute.xlu0 %1267
      %1269 = vrot.lane.b32.xlu0 %v213, 80
      %v1270 = vpop.permute.xlu0 %1269
      %1271 = vrot.lane.b32.xlu0 %v214, 80
      %v1272 = vpop.permute.xlu0 %1271
      %1273 = vrot.lane.b32.xlu0 %v215, 80
      %v1274 = vpop.permute.xlu0 %1273
      %1275 = vrot.lane.b32.xlu0 %v216, 80
      %v1276 = vpop.permute.xlu0 %1275
      %1277 = vrot.lane.b32.xlu0 %v217, 80
      %v1278 = vpop.permute.xlu0 %1277
      %1279 = vrot.lane.b32.xlu0 %v218, 80
      %v1280 = vpop.permute.xlu0 %1279
      %1281 = vrot.lane.b32.xlu0 %v219, 80
      %v1282 = vpop.permute.xlu0 %1281
      %1283 = vrot.lane.b32.xlu0 %v220, 80
      %v1284 = vpop.permute.xlu0 %1283
      %1285 = vrot.lane.b32.xlu0 %v221, 80
      %v1286 = vpop.permute.xlu0 %1285
      %1287 = vrot.lane.b32.xlu0 %v222, 80
      %v1288 = vpop.permute.xlu0 %1287
      %1289 = vrot.lane.b32.xlu0 %v223, 80
      %v1290 = vpop.permute.xlu0 %1289
      %1291 = vrot.lane.b32.xlu0 %v224, 80
      %v1292 = vpop.permute.xlu0 %1291
      %1293 = vrot.lane.b32.xlu0 %v225, 80
      %v1294 = vpop.permute.xlu0 %1293
      %1295 = vrot.lane.b32.xlu0 %v226, 80
      %v1296 = vpop.permute.xlu0 %1295
      %1297 = vrot.lane.b32.xlu0 %v227, 80
      %v1298 = vpop.permute.xlu0 %1297
      %1299 = vrot.lane.b32.xlu0 %v228, 80
      %v1300 = vpop.permute.xlu0 %1299
      %1301 = vrot.lane.b32.xlu0 %v229, 80
      %v1302 = vpop.permute.xlu0 %1301
      %v1304 = vsel %vm231, %v1228, 0
      %v1307 = vsel %vm231, %v1230, 0
      %v1310 = vsel %vm231, %v1232, 0
      %v1313 = vsel %vm231, %v1234, 0
      %v1316 = vsel %vm231, %v1236, 0
      %v1319 = vsel %vm231, %v1238, 0
      %v1322 = vsel %vm231, %v1240, 0
      %v1325 = vsel %vm231, %v1242, 0
      %v1328 = vsel %vm231, %v1244, 0
      %v1331 = vsel %vm231, %v1246, 0
      %v1334 = vsel %vm231, %v1248, 0
      %v1337 = vsel %vm231, %v1250, 0
      %v1340 = vsel %vm231, %v1252, 0
      %v1343 = vsel %vm231, %v1254, 0
      %v1346 = vsel %vm231, %v1256, 0
      %v1349 = vsel %vm231, %v1258, 0
      %v1352 = vsel %vm231, %v1260, 0
      %v1355 = vsel %vm231, %v1262, 0
      %v1358 = vsel %vm231, %v1264, 0
      %v1361 = vsel %vm231, %v1266, 0
      %v1364 = vsel %vm231, %v1268, 0
      %v1367 = vsel %vm231, %v1270, 0
      %v1370 = vsel %vm231, %v1272, 0
      %v1373 = vsel %vm231, %v1274, 0
      %v1376 = vsel %vm231, %v1276, 0
      %v1379 = vsel %vm231, %v1278, 0
      %v1382 = vsel %vm231, %v1280, 0
      %v1385 = vsel %vm231, %v1282, 0
      %v1388 = vsel %vm231, %v1284, 0
      %v1391 = vsel %vm231, %v1286, 0
      %v1394 = vsel %vm231, %v1288, 0
      %v1397 = vsel %vm231, %v1290, 0
      %v1400 = vsel %vm231, %v1292, 0
      %v1403 = vsel %vm231, %v1294, 0
      %v1406 = vsel %vm231, %v1296, 0
      %v1409 = vsel %vm231, %v1298, 0
      %v1412 = vsel %vm231, %v1300, 0
      %v1415 = vsel %vm231, %v1302, 0
      %1417 = vmatpush.bf16.xpose.msra.mxu0 %v1328
      %1418 = vmatpush.bf16.xpose.msra.mxu0 %v1325
      %1419 = vmatpush.bf16.xpose.msra.mxu0 %v1322
      %1420 = vmatpush.bf16.xpose.msra.mxu0 %v1319
      %1421 = vmatpush.bf16.xpose.msra.mxu0 %v1316
      %1422 = vmatpush.bf16.xpose.msra.mxu0 %v1313
      %1423 = vmatpush.bf16.xpose.msra.mxu0 %v1310
      %1424 = vmatpush.bf16.xpose.msra.mxu0 %v1307
      %1425 = vmatmul.bf16.gmra.mxu0 %v1304
      %v1426 = vpop.f32.mrf.mxu0
      %v1427 = vadd.f32 0.0, %v1426
      %v1428 = vpop.f32.mrf.mxu0
      %1429 = vdwg.mxu0
      %1430 = vmatpush.bf16.xpose.msra.mxu0 %v1352
      %1431 = vmatpush.bf16.xpose.msra.mxu0 %v1349
      %1432 = vmatpush.bf16.xpose.msra.mxu0 %v1346
      %1433 = vmatpush.bf16.xpose.msra.mxu0 %v1343
      %1434 = vmatpush.bf16.xpose.msra.mxu0 %v1340
      %1435 = vmatpush.bf16.xpose.msra.mxu0 %v1337
      %1436 = vmatpush.bf16.xpose.msra.mxu0 %v1334
      %1437 = vmatpush.bf16.xpose.msra.mxu0 %v1331
      %1438 = vmatmul.bf16.gmra.mxu0 %v1304
      %v1439 = vpop.f32.mrf.mxu0
      %v1440 = vadd.f32 0.0, %v1439
      %v1441 = vpop.f32.mrf.mxu0
      %1442 = vdwg.mxu0
      %1443 = vmatpush.bf16.xpose.msra.mxu0 %v1376
      %1444 = vmatpush.bf16.xpose.msra.mxu0 %v1373
      %1445 = vmatpush.bf16.xpose.msra.mxu0 %v1370
      %1446 = vmatpush.bf16.xpose.msra.mxu0 %v1367
      %1447 = vmatpush.bf16.xpose.msra.mxu0 %v1364
      %1448 = vmatpush.bf16.xpose.msra.mxu0 %v1361
      %1449 = vmatpush.bf16.xpose.msra.mxu0 %v1358
      %1450 = vmatpush.bf16.xpose.msra.mxu0 %v1355
      %1451 = vmatmul.bf16.gmra.mxu0 %v1304
      %v1452 = vpop.f32.mrf.mxu0
      %v1453 = vadd.f32 0.0, %v1452
      %v1454 = vpop.f32.mrf.mxu0
      %1455 = vdwg.mxu0
      %1456 = vmatpush.bf16.xpose.msra.mxu0 %v1400
      %1457 = vmatpush.bf16.xpose.msra.mxu0 %v1397
      %1458 = vmatpush.bf16.xpose.msra.mxu0 %v1394
      %1459 = vmatpush.bf16.xpose.msra.mxu0 %v1391
      %1460 = vmatpush.bf16.xpose.msra.mxu0 %v1388
      %1461 = vmatpush.bf16.xpose.msra.mxu0 %v1385
      %1462 = vmatpush.bf16.xpose.msra.mxu0 %v1382
      %1463 = vmatpush.bf16.xpose.msra.mxu0 %v1379
      %1464 = vmatmul.bf16.gmra.mxu0 %v1304
      %v1465 = vpop.f32.mrf.mxu0
      %v1466 = vadd.f32 0.0, %v1465
      %v1467 = vpop.f32.mrf.mxu0
      %1468 = vdwg.mxu0
      %1469 = vmatpush.bf16.xpose.msra.mxu0 0
      %1470 = vmatpush.bf16.xpose.msra.mxu0 0
      %1471 = vmatpush.bf16.xpose.msra.mxu0 0
      %1472 = vmatpush.bf16.xpose.msra.mxu0 %v1415
      %1473 = vmatpush.bf16.xpose.msra.mxu0 %v1412
      %1474 = vmatpush.bf16.xpose.msra.mxu0 %v1409
      %1475 = vmatpush.bf16.xpose.msra.mxu0 %v1406
      %1476 = vmatpush.bf16.xpose.msra.mxu0 %v1403
      %1477 = vmatmul.bf16.gmra.mxu0 %v1304
      %v1478 = vpop.f32.mrf.mxu0
      %v1479 = vadd.f32 0.0, %v1478
      %v1480 = vpop.f32.mrf.mxu0
      %1481 = vdwg.mxu0
      %v1482 = vmul.f32 %v1427, 0.25
      %v1483 = vmul.f32 %v1440, 0.25
      %v1484 = vmul.f32 %v1453, 0.25
      %v1485 = vmul.f32 %v1466, 0.25
      %v1486 = vmul.f32 %v1479, 0.25
      %v1487 = vsel %vm416, %v1486, -inf
      %v1488 = vmax.f32 %v1482, %v1487
      %v1489 = vmax.f32 %v1488, %v1483
      %v1490 = vmax.f32 %v1484, %v1485
      %v1491 = vmax.f32 %v1489, %v1490
      %1492 = vmax.xlane.f32.xlu0 %v1491
      %v1493 = vpop.xlane.xlu0 %1492
      %v1494 = vsub.f32 %v1482, %v1493
      %v1495 = vsub.f32 %v1483, %v1493
      %v1496 = vsub.f32 %v1484, %v1493
      %v1497 = vsub.f32 %v1485, %v1493
      %v1498 = vsub.f32 %v1486, %v1493
      %v1499 = vmul.f32 %v1494, 1.442695
      %v1500 = vpow.pop %v1499
      %v1501 = vmul.f32 %v1495, 1.442695
      %v1502 = vpow.pop %v1501
      %v1503 = vmul.f32 %v1496, 1.442695
      %v1504 = vpow.pop %v1503
      %v1505 = vmul.f32 %v1497, 1.442695
      %v1506 = vpow.pop %v1505
      %v1507 = vmul.f32 %v1498, 1.442695
      %v1508 = vpow.pop %v1507
      %v1509 = vadd.f32 %v1500, %v1502
      %v1510 = vadd.f32 %v1509, %v1504
      %v1511 = vadd.f32 %v1510, %v1506
      %v1512 = vsel %vm416, %v1508, 0.0
      %v1513 = vadd.f32 %v1511, %v1512
      %1514 = vadd.xlane.f32.xlu0 %v1513
      %v1515 = vpop.xlane.xlu0 %1514
      %v1516 = vrcp.pop %v1515
      %v1517 = vmul.f32 %v1515, %v1516
      %v1518 = vsub.f32 1.0, %v1517
      %v1519 = vmul.f32 %v1516, %v1518
      %v1520 = vadd.f32 %v1516, %v1519
      %vm1521 = vweird.f32 %v1515
      %vm1522 = vweird.f32 %v1516
      %vm1523 = vmor %vm1521, %vm1522
      %v1524 = vsel %vm1523, %v1516, %v1520
      %v1525 = vand.u32 2147483647, %v1515
      %vm1526 = vcmp.eq.f32.partialorder %v1525, 8.507059e+37
      %v1527 = vand.u32 %v1515, 2147483648
      %v1528 = vor.u32 1.1754944e-38, %v1527
      %v1529 = vsel %vm1526, %v1528, %v1524
      %v1530 = vmul.f32 %v1500, %v1529
      %v1531 = vmul.f32 %v1502, %v1529
      %v1532 = vmul.f32 %v1504, %v1529
      %v1533 = vmul.f32 %v1506, %v1529
      %v1534 = vmul.f32 %v1508, %v1529
      %v1535 = vrot.slane %v1530, 4
      %v1536 = vadd.f32 %v1530, %v1535
      %v1537 = vrot.slane %v1536, 2
      %v1538 = vadd.f32 %v1536, %v1537
      %v1539 = vrot.slane %v1538, 1
      %v1540 = vadd.f32 %v1538, %v1539
      %v1541 = vrot.slane %v1531, 4
      %v1542 = vadd.f32 %v1531, %v1541
      %v1543 = vrot.slane %v1542, 2
      %v1544 = vadd.f32 %v1542, %v1543
      %v1545 = vrot.slane %v1544, 1
      %v1546 = vadd.f32 %v1544, %v1545
      %v1547 = vrot.slane %v1532, 4
      %v1548 = vadd.f32 %v1532, %v1547
      %v1549 = vrot.slane %v1548, 2
      %v1550 = vadd.f32 %v1548, %v1549
      %v1551 = vrot.slane %v1550, 1
      %v1552 = vadd.f32 %v1550, %v1551
      %v1553 = vrot.slane %v1533, 4
      %v1554 = vadd.f32 %v1533, %v1553
      %v1555 = vrot.slane %v1554, 2
      %v1556 = vadd.f32 %v1554, %v1555
      %v1557 = vrot.slane %v1556, 1
      %v1558 = vadd.f32 %v1556, %v1557
      %v1559 = vsel %vm416, %v1534, 0.0
      %v1560 = vrot.slane %v1559, 4
      %v1561 = vadd.f32 %v1559, %v1560
      %v1562 = vrot.slane %v1561, 2
      %v1563 = vadd.f32 %v1561, %v1562
      %v1564 = vrot.slane %v1563, 1
      %v1565 = vadd.f32 %v1563, %v1564
      %v1566 = vadd.f32 %v1540, 0.98630136
      %v1567 = vadd.f32 %v1546, 0.98630136
      %v1568 = vadd.f32 %v1552, 0.98630136
      %v1569 = vadd.f32 %v1558, 0.98630136
      %v1570 = vadd.f32 %v1565, 0.98630136
      %vm1571 = vcmask 1040384
      %v1572 = vsel %vm1571, %v496, %v878
      %v1573 = vsel %vm1571, %v497, %v879
      %v1574 = vsel %vm1571, %v498, %v880
      %v1575 = vsel %vm1571, %v499, %v881
      %v1576 = vsel %vm1571, %v500, %v882
      %vm1577 = vcmask 1041408
      %v1578 = vsel %vm1577, %v1572, %v1222
      %v1579 = vsel %vm1577, %v1573, %v1223
      %v1580 = vsel %vm1577, %v1574, %v1224
      %v1581 = vsel %vm1577, %v1575, %v1225
      %v1582 = vsel %vm1577, %v1576, %v1226
      %vm1583 = vcmask 1042432
      %v1584 = vsel %vm1583, %v1578, %v1566
      %v1585 = vsel %vm1583, %v1579, %v1567
      %v1586 = vsel %vm1583, %v1580, %v1568
      %v1587 = vsel %vm1583, %v1581, %v1569
      %v1588 = vsel %vm1583, %v1582, %v1570
      %v1593 = vrot.slane %v1585, 4
      %v1594 = vrot.slane %v1587, 4
      %vm1595 = vcmask 1043456
      %v1596 = vsel %vm1595, %v1584, %v1593
      %v1597 = vsel %vm1595, %v1586, %v1594
      %1600 = vst [vmem:[%s116] sm:$0xff] %v1596
      %1601 = vst [vmem:[%s116 + $0x8] sm:$0xff] %v1597
      %vm1602 = vcmask 584704
      %1603 = vst.msk [vmem:[%s116 + $0x10] sm:$0xf] %vm1602, %v1588
      %p1604 = scmp.lt.s32.totalorder %s12, 1
      %s1605 = scalar_select %p1604, %s12, 1
      %s1606 = smul.addr %s1605, 5
      %s1607 = smul.addr %s1606, 4
      %s1608 = scalar_lea.vmem %s1, %s1607
      // Predicated region
      $region25: #{image_rearrangement_forward.3} parent=23 // pred_check
        %p1609 = pneg %p56
      $region26: #{image_rearrangement_forward.3} parent=23 // pred_check_branch
        %1611 = sbr.rel (%p1609) target = $region28
      $region27: #{image_rearrangement_forward.3} parent=23 // pred_region
        _
      $region28: #{image_rearrangement_forward.3} parent=23 // pred_fallthru
        _
    $region24: #{image_rearrangement_forward.3} parent=5 // pred_fallthru
      _
    %p1612 = scmp.le.s32.totalorder 2, %s7
    // Predicated region
    $region29: #{image_rearrangement_forward.3} parent=5 // pred_check
      %p1613 = pneg %p1612
    $region30: #{image_rearrangement_forward.3} parent=5 // pred_check_branch
      %1615 = sbr.rel (%p1613) target = $region32
    $region31: #{image_rearrangement_forward.3} parent=5 // pred_region
      %s1616 = ssub.s32 %s7, 2
      // Predicated region
      $region33: #{image_rearrangement_forward.3} parent=31 // pred_check
        %p1617 = pneg %p62
      $region34: #{image_rearrangement_forward.3} parent=31 // pred_check_branch
        %1619 = sbr.rel (%p1617) target = $region36
      $region35: #{image_rearrangement_forward.3} parent=31 // pred_region
        %p1620 = scmp.lt.s32.totalorder %s13, 1
        %s1621 = scalar_select %p1620, %s13, 1
        %s1622 = smul.addr %s1621, 5
        %s1623 = smul.addr %s1622, 4
        %s1624 = scalar_lea.vmem %s1, %s1623
      $region36: #{image_rearrangement_forward.3} parent=31 // pred_fallthru
        _
    $region32: #{image_rearrangement_forward.3} parent=5 // pred_fallthru
      _
  $region6: #{image_rearrangement_forward.3} parent=0 // loop_footer
    %s11 = sadd.s32 1, %s7
  $region7: #{image_rearrangement_forward.3} parent=0 // loop_footer_branch
    %6 = sbr.rel target = $region3
  $region8: #{image_rearrangement_forward.3} parent=0 // loop_exit
    _

// kernel: image_rearrangement_forward.4
$region0: #{image_rearrangement_forward.4}
  #allocation0 [shape = 'u32[]', space=smem, size = 0x4, offset = 0x4, fixed_abs, tag = 'smem constant byte address 0x4 - core index']
  #allocation1 [shape = 'u32[72,128]{1,0:T(1,128)}', space=vmem, size = 0x9000, scoped, tag = 'internal scratch']
  %s0 = inlined_call_operand.vmem [shape: f32[2,144,64], index: 0, kind: input, shape index: {}]
  %s1 = inlined_call_operand.vmem [shape: f32[64,256], index: 1, kind: input, shape index: {}]
  %s2 = inlined_call_operand.vmem [shape: f32[2,1,256], index: 2, kind: input, shape index: {}]
  %s3 = inlined_call_operand.vmem [shape: f32[2,144,256], index: 3, kind: output, shape index: {}]
  %s4 = sld [smem:[#allocation0]]
  $region45: #{image_rearrangement_forward.4} parent=0
    _
  %s6 = ssub.s32 1, %s4
  %s7 = scalar_select 0, %s6, %s4
  loop: start=0, step=1, limit=4
  $region2: #{image_rearrangement_forward.4} parent=0 // loop_pre_header
    _
  $region3: #{image_rearrangement_forward.4} parent=0 // loop_header
    %s9 = sphi 0, %s13
    %p10 = scmp.ge.s32.totalorder %s9, 4
    %s19 = sphi 0, %s21
    %s22 = sphi 0, %s19
    %s23 = sphi 0, %s22
    %s39 = sphi 0, %s23
    %s43 = sphi 0, %s43
    %s45 = sphi 0, %s43
    %s46 = sphi 0, %s45
    %s60 = sphi 0, %s46
    %s66 = sphi 0, %s68
    %s69 = sphi 0, %s66
    %s70 = sphi 0, %s69
    %s86 = sphi 0, %s70
    %s92 = sphi 0, %s94
    %s95 = sphi 0, %s92
    %s96 = sphi 0, %s95
    %s112 = sphi 0, %s96
  $region4: #{image_rearrangement_forward.4} parent=0 // loop_header_branch
    %12 = sbr.rel (%p10) target = $region8
  $region5: #{image_rearrangement_forward.4} parent=0 // loop_body
    %s14 = ssub.s32 %s9, 1
    %s15 = ssub.s32 %s9, 2
    %s16 = sadd.s32 %s9, 1
    %s17 = ssub.s32 %s9, %s16
    %p18 = scmp.eq.s32.totalorder %s17, 0
    %s20 = sadd.s32 %s19, 1
    %s21 = scalar_select %p18, %s19, %s20
    %p24 = pneg %p18
    %p25 = scmp.eq.s32.totalorder %s9, 1
    %p26 = por %p24, %p25
    %p27 = scmp.ne.s32.totalorder %s19, %s22
    %p28 = scmp.eq.s32.totalorder %s9, 0
    %p29 = por %p27, %p28
    %p30 = scmp.ne.s32.totalorder %s19, %s22
    %p31 = scmp.eq.s32.totalorder %s14, 1
    %p32 = por %p30, %p31
    %p33 = scmp.ne.s32.totalorder %s22, %s23
    %p34 = scmp.eq.s32.totalorder %s14, 0
    %p35 = por %p33, %p34
    %p36 = scmp.ne.s32.totalorder %s22, %s23
    %p37 = scmp.eq.s32.totalorder %s15, 1
    %p38 = por %p36, %p37
    %p40 = scmp.ne.s32.totalorder %s23, %s39
    %p41 = scmp.eq.s32.totalorder %s15, 0
    %p42 = por %p40, %p41
    %s44 = sadd.s32 %s43, 1
    %p47 = scmp.eq.s32.totalorder %s9, 1
    %p48 = scmp.ne.s32.totalorder %s43, %s45
    %p49 = scmp.eq.s32.totalorder %s9, 0
    %p50 = por %p48, %p49
    %p51 = scmp.ne.s32.totalorder %s43, %s45
    %p52 = scmp.eq.s32.totalorder %s14, 1
    %p53 = por %p51, %p52
    %p54 = scmp.ne.s32.totalorder %s45, %s46
    %p55 = scmp.eq.s32.totalorder %s14, 0
    %p56 = por %p54, %p55
    %p57 = scmp.ne.s32.totalorder %s45, %s46
    %p58 = scmp.eq.s32.totalorder %s15, 1
    %p59 = por %p57, %p58
    %p61 = scmp.ne.s32.totalorder %s46, %s60
    %p62 = scmp.eq.s32.totalorder %s15, 0
    %p63 = por %p61, %p62
    %s64 = ssub.s32 %s9, %s16
    %p65 = scmp.eq.s32.totalorder %s64, 0
    %s67 = sadd.s32 %s66, 1
    %s68 = scalar_select %p65, %s66, %s67
    %p71 = pneg %p65
    %p72 = scmp.eq.s32.totalorder %s9, 1
    %p73 = por %p71, %p72
    %p74 = scmp.ne.s32.totalorder %s66, %s69
    %p75 = scmp.eq.s32.totalorder %s9, 0
    %p76 = por %p74, %p75
    %p77 = scmp.ne.s32.totalorder %s66, %s69
    %p78 = scmp.eq.s32.totalorder %s14, 1
    %p79 = por %p77, %p78
    %p80 = scmp.ne.s32.totalorder %s69, %s70
    %p81 = scmp.eq.s32.totalorder %s14, 0
    %p82 = por %p80, %p81
    %p83 = scmp.ne.s32.totalorder %s69, %s70
    %p84 = scmp.eq.s32.totalorder %s15, 1
    %p85 = por %p83, %p84
    %p87 = scmp.ne.s32.totalorder %s70, %s86
    %p88 = scmp.eq.s32.totalorder %s15, 0
    %p89 = por %p87, %p88
    %s90 = ssub.s32 %s9, %s16
    %p91 = scmp.eq.s32.totalorder %s90, 0
    %s93 = sadd.s32 %s92, 1
    %s94 = scalar_select %p91, %s92, %s93
    %p97 = pneg %p91
    %p98 = scmp.eq.s32.totalorder %s9, 1
    %p99 = por %p97, %p98
    %p100 = scmp.ne.s32.totalorder %s92, %s95
    %p101 = scmp.eq.s32.totalorder %s9, 0
    %p102 = por %p100, %p101
    %p103 = scmp.ne.s32.totalorder %s92, %s95
    %p104 = scmp.eq.s32.totalorder %s14, 1
    %p105 = por %p103, %p104
    %p106 = scmp.ne.s32.totalorder %s95, %s96
    %p107 = scmp.eq.s32.totalorder %s14, 0
    %p108 = por %p106, %p107
    %p109 = scmp.ne.s32.totalorder %s95, %s96
    %p110 = scmp.eq.s32.totalorder %s15, 1
    %p111 = por %p109, %p110
    %p113 = scmp.ne.s32.totalorder %s96, %s112
    %p114 = scmp.eq.s32.totalorder %s15, 0
    %p115 = por %p113, %p114
    %p116 = scmp.le.s32.totalorder 1, %s9
    %p117 = scmp.lt.s32.totalorder %s9, 3
    %p118 = pnand %p116, %p117
    %p119 = pneg %p118
    // Predicated region
    $region9: #{image_rearrangement_forward.4} parent=5 // pred_check
      _
    $region10: #{image_rearrangement_forward.4} parent=5 // pred_check_branch
      %121 = sbr.rel (%p118) target = $region12
    $region11: #{image_rearrangement_forward.4} parent=5 // pred_region
      %s122 = ssub.s32 %s9, 1
      // Predicated region
      $region13: #{image_rearrangement_forward.4} parent=11 // pred_check
        %p123 = pneg %p56
      $region14: #{image_rearrangement_forward.4} parent=11 // pred_check_branch
        %125 = sbr.rel (%p123) target = $region16
      $region15: #{image_rearrangement_forward.4} parent=11 // pred_region
        _
      $region16: #{image_rearrangement_forward.4} parent=11 // pred_fallthru
        _
    $region12: #{image_rearrangement_forward.4} parent=5 // pred_fallthru
      _
    %p126 = scmp.lt.s32.totalorder %s9, 2
    // Predicated region
    $region17: #{image_rearrangement_forward.4} parent=5 // pred_check
      %p127 = pneg %p126
    $region18: #{image_rearrangement_forward.4} parent=5 // pred_check_branch
      %129 = sbr.rel (%p127) target = $region20
    $region19: #{image_rearrangement_forward.4} parent=5 // pred_region
      // Predicated region
      $region21: #{image_rearrangement_forward.4} parent=19 // pred_check
        %p130 = pneg %p29
      $region22: #{image_rearrangement_forward.4} parent=19 // pred_check_branch
        %132 = sbr.rel (%p130) target = $region24
      $region23: #{image_rearrangement_forward.4} parent=19 // pred_region
        %p133 = scmp.lt.s32.totalorder %s9, 1
        %s134 = scalar_select %p133, %s9, 1
        %s135 = smul.addr %s134, 18
        %s136 = smul.addr %s135, 8
        %s137 = scalar_lea.vmem %s0, %s136
      $region24: #{image_rearrangement_forward.4} parent=19 // pred_fallthru
        _
      // Predicated region
      $region25: #{image_rearrangement_forward.4} parent=19 // pred_check
        %p138 = pneg %p76
      $region26: #{image_rearrangement_forward.4} parent=19 // pred_check_branch
        %140 = sbr.rel (%p138) target = $region28
      $region27: #{image_rearrangement_forward.4} parent=19 // pred_region
        %p141 = scmp.lt.s32.totalorder %s9, 1
        %s142 = scalar_select %p141, %s9, 1
        %s143 = smul.addr %s142, 2
        %s144 = scalar_lea.vmem %s2, %s143
      $region28: #{image_rearrangement_forward.4} parent=19 // pred_fallthru
        _
    $region20: #{image_rearrangement_forward.4} parent=5 // pred_fallthru
      _
    %p145 = scmp.le.s32.totalorder 1, %s9
    %p146 = scmp.lt.s32.totalorder %s9, 3
    %p147 = pnand %p145, %p146
    %p148 = pneg %p147
    // Predicated region
    $region29: #{image_rearrangement_forward.4} parent=5 // pred_check
      _
    $region30: #{image_rearrangement_forward.4} parent=5 // pred_check_branch
      %150 = sbr.rel (%p147) target = $region32
    $region31: #{image_rearrangement_forward.4} parent=5 // pred_region
      %s151 = ssub.s32 %s9, 1
      %p152 = scmp.lt.s32.totalorder %s14, 1
      %s153 = scalar_select %p152, %s14, 1
      %s154 = smul.addr %s153, 18
      %s155 = smul.addr %s154, 8
      %s156 = scalar_lea.vmem %s0, %s155
      %p157 = pneg %p35
      %p158 = pneg %p32
      %p159 = pneg %p56
      %p160 = pneg %p53
      %p161 = scmp.lt.s32.totalorder %s14, 1
      %s162 = scalar_select %p161, %s14, 1
      %s163 = smul.addr %s162, 2
      %s164 = scalar_lea.vmem %s2, %s163
      %p165 = pneg %p82
      %p166 = pneg %p79
      %p167 = pneg %p108
      %p168 = pneg %p105
      %p169 = scmp.lt.s32.totalorder %s14, 1
      %s170 = scalar_select %p169, %s14, 1
      %s171 = smul.addr %s170, 36
      %s172 = smul.addr %s171, 8
      %s173 = scalar_lea.vmem %s3, %s172
      %p174 = scmp.lt.s32.totalorder %s14, 1
      %s175 = scalar_select %p174, %s14, 1
      %s176 = smul.addr %s175, 18
      %s177 = smul.addr %s176, 8
      %s178 = scalar_lea.vmem %s0, %s177
      %p179 = scmp.lt.s32.totalorder %s14, 1
      %s180 = scalar_select %p179, %s14, 1
      %s181 = smul.addr %s180, 2
      %s182 = scalar_lea.vmem %s2, %s181
      %p183 = scmp.lt.s32.totalorder %s14, 1
      %s184 = scalar_select %p183, %s14, 1
      %s185 = smul.addr %s184, 36
      %s186 = smul.addr %s185, 8
      %s187 = scalar_lea.vmem %s3, %s186
      %v188 = vld [vmem:[%s178] sm:$0xff]
      %v189 = vld [vmem:[%s178 + $0x8] sm:$0xff]
      %v190 = vld [vmem:[%s178 + $0x10] sm:$0xff]
      %v191 = vld [vmem:[%s178 + $0x18] sm:$0xff]
      %v192 = vld [vmem:[%s178 + $0x20] sm:$0xff]
      %v193 = vld [vmem:[%s178 + $0x28] sm:$0xff]
      %v194 = vld [vmem:[%s178 + $0x30] sm:$0xff]
      %v195 = vld [vmem:[%s178 + $0x38] sm:$0xff]
      %v196 = vld [vmem:[%s178 + $0x40] sm:$0xff]
      %v197 = vld [vmem:[%s178 + $0x48] sm:$0xff]
      %v198 = vld [vmem:[%s178 + $0x50] sm:$0xff]
      %v199 = vld [vmem:[%s178 + $0x58] sm:$0xff]
      %v200 = vld [vmem:[%s178 + $0x60] sm:$0xff]
      %v201 = vld [vmem:[%s178 + $0x68] sm:$0xff]
      %v202 = vld [vmem:[%s178 + $0x70] sm:$0xff]
      %v203 = vld [vmem:[%s178 + $0x78] sm:$0xff]
      %v204 = vld [vmem:[%s178 + $0x80] sm:$0xff]
      %v205 = vld [vmem:[%s178 + $0x88] sm:$0xff]
      %v206 = vld [vmem:[%s1] sm:$0xff]
      %v207 = vld [vmem:[%s1 + $0x8] sm:$0xff]
      %v208 = vld [vmem:[%s1 + $0x10] sm:$0xff]
      %v209 = vld [vmem:[%s1 + $0x18] sm:$0xff]
      %v210 = vld [vmem:[%s1 + $0x20] sm:$0xff]
      %v211 = vld [vmem:[%s1 + $0x28] sm:$0xff]
      %v212 = vld [vmem:[%s1 + $0x30] sm:$0xff]
      %v213 = vld [vmem:[%s1 + $0x38] sm:$0xff]
      %v214 = vld [vmem:[%s1 + $0x40] sm:$0xff]
      %v215 = vld [vmem:[%s1 + $0x48] sm:$0xff]
      %v216 = vld [vmem:[%s1 + $0x50] sm:$0xff]
      %v217 = vld [vmem:[%s1 + $0x58] sm:$0xff]
      %v218 = vld [vmem:[%s1 + $0x60] sm:$0xff]
      %v219 = vld [vmem:[%s1 + $0x68] sm:$0xff]
      %v220 = vld [vmem:[%s1 + $0x70] sm:$0xff]
      %v221 = vld [vmem:[%s1 + $0x78] sm:$0xff]
      %vm222 = vcmask 523264
      %v224 = vsel %vm222, %v188, 0
      %v227 = vsel %vm222, %v189, 0
      %v230 = vsel %vm222, %v190, 0
      %v233 = vsel %vm222, %v191, 0
      %v236 = vsel %vm222, %v192, 0
      %v239 = vsel %vm222, %v193, 0
      %v242 = vsel %vm222, %v194, 0
      %v245 = vsel %vm222, %v195, 0
      %v248 = vsel %vm222, %v196, 0
      %v251 = vsel %vm222, %v197, 0
      %v254 = vsel %vm222, %v198, 0
      %v257 = vsel %vm222, %v199, 0
      %v260 = vsel %vm222, %v200, 0
      %v263 = vsel %vm222, %v201, 0
      %v266 = vsel %vm222, %v202, 0
      %v269 = vsel %vm222, %v203, 0
      %v272 = vsel %vm222, %v204, 0
      %v275 = vsel %vm222, %v205, 0
      %277 = vmatpush.msra.mxu0 0.0
      %278 = vmatpush.msra.mxu0 0.0
      %279 = vmatpush.msra.mxu0 0.0
      %280 = vmatpush.msra.mxu0 0.0
      %281 = vmatpush.msra.mxu0 0.0
      %282 = vmatpush.msra.mxu0 0.0
      %283 = vmatpush.msra.mxu0 0.0
      %284 = vmatpush.msra.mxu0 0.0
      %285 = vmatpush.msra.mxu0 %v220
      %286 = vmatpush.msra.mxu0 %v218
      %287 = vmatpush.msra.mxu0 %v216
      %288 = vmatpush.msra.mxu0 %v214
      %289 = vmatpush.msra.mxu0 %v212
      %290 = vmatpush.msra.mxu0 %v210
      %291 = vmatpush.msra.mxu0 %v208
      %292 = vmatpush.msra.mxu0 %v206
      %293 = vmatmul.f32.gmra.mxu0 %v224
      %v294 = vpop.f32.mrf.mxu0
      %v295 = vadd.f32 0.0, %v294
      %296 = vmatmul.f32.gmra.mxu0 %v227
      %v297 = vpop.f32.mrf.mxu0
      %v298 = vadd.f32 0.0, %v297
      %299 = vmatmul.f32.gmra.mxu0 %v230
      %v300 = vpop.f32.mrf.mxu0
      %v301 = vadd.f32 0.0, %v300
      %302 = vmatmul.f32.gmra.mxu0 %v233
      %v303 = vpop.f32.mrf.mxu0
      %v304 = vadd.f32 0.0, %v303
      %305 = vmatmul.f32.gmra.mxu0 %v236
      %v306 = vpop.f32.mrf.mxu0
      %v307 = vadd.f32 0.0, %v306
      %308 = vmatmul.f32.gmra.mxu0 %v239
      %v309 = vpop.f32.mrf.mxu0
      %v310 = vadd.f32 0.0, %v309
      %311 = vmatmul.f32.gmra.mxu0 %v242
      %v312 = vpop.f32.mrf.mxu0
      %v313 = vadd.f32 0.0, %v312
      %314 = vmatmul.f32.gmra.mxu0 %v245
      %v315 = vpop.f32.mrf.mxu0
      %v316 = vadd.f32 0.0, %v315
      %317 = vmatmul.f32.gmra.mxu0 %v248
      %v318 = vpop.f32.mrf.mxu0
      %v319 = vadd.f32 0.0, %v318
      %320 = vmatmul.f32.gmra.mxu0 %v251
      %v321 = vpop.f32.mrf.mxu0
      %v322 = vadd.f32 0.0, %v321
      %323 = vmatmul.f32.gmra.mxu0 %v254
      %v324 = vpop.f32.mrf.mxu0
      %v325 = vadd.f32 0.0, %v324
      %326 = vmatmul.f32.gmra.mxu0 %v257
      %v327 = vpop.f32.mrf.mxu0
      %v328 = vadd.f32 0.0, %v327
      %329 = vmatmul.f32.gmra.mxu0 %v260
      %v330 = vpop.f32.mrf.mxu0
      %v331 = vadd.f32 0.0, %v330
      %332 = vmatmul.f32.gmra.mxu0 %v263
      %v333 = vpop.f32.mrf.mxu0
      %v334 = vadd.f32 0.0, %v333
      %335 = vmatmul.f32.gmra.mxu0 %v266
      %v336 = vpop.f32.mrf.mxu0
      %v337 = vadd.f32 0.0, %v336
      %338 = vmatmul.f32.gmra.mxu0 %v269
      %v339 = vpop.f32.mrf.mxu0
      %v340 = vadd.f32 0.0, %v339
      %341 = vmatmul.f32.gmra.mxu0 %v272
      %v342 = vpop.f32.mrf.mxu0
      %v343 = vadd.f32 0.0, %v342
      %344 = vmatmul.f32.gmra.mxu0 %v275
      %v345 = vpop.f32.mrf.mxu0
      %v346 = vadd.f32 0.0, %v345
      %347 = vdwg.mxu0
      %348 = vmatpush.msra.mxu0 0.0
      %349 = vmatpush.msra.mxu0 0.0
      %350 = vmatpush.msra.mxu0 0.0
      %351 = vmatpush.msra.mxu0 0.0
      %352 = vmatpush.msra.mxu0 0.0
      %353 = vmatpush.msra.mxu0 0.0
      %354 = vmatpush.msra.mxu0 0.0
      %355 = vmatpush.msra.mxu0 0.0
      %356 = vmatpush.msra.mxu0 %v221
      %357 = vmatpush.msra.mxu0 %v219
      %358 = vmatpush.msra.mxu0 %v217
      %359 = vmatpush.msra.mxu0 %v215
      %360 = vmatpush.msra.mxu0 %v213
      %361 = vmatpush.msra.mxu0 %v211
      %362 = vmatpush.msra.mxu0 %v209
      %363 = vmatpush.msra.mxu0 %v207
      %364 = vmatmul.f32.gmra.mxu0 %v224
      %v365 = vpop.f32.mrf.mxu0
      %v366 = vadd.f32 0.0, %v365
      %367 = vmatmul.f32.gmra.mxu0 %v227
      %v368 = vpop.f32.mrf.mxu0
      %v369 = vadd.f32 0.0, %v368
      %370 = vmatmul.f32.gmra.mxu0 %v230
      %v371 = vpop.f32.mrf.mxu0
      %v372 = vadd.f32 0.0, %v371
      %373 = vmatmul.f32.gmra.mxu0 %v233
      %v374 = vpop.f32.mrf.mxu0
      %v375 = vadd.f32 0.0, %v374
      %376 = vmatmul.f32.gmra.mxu0 %v236
      %v377 = vpop.f32.mrf.mxu0
      %v378 = vadd.f32 0.0, %v377
      %379 = vmatmul.f32.gmra.mxu0 %v239
      %v380 = vpop.f32.mrf.mxu0
      %v381 = vadd.f32 0.0, %v380
      %382 = vmatmul.f32.gmra.mxu0 %v242
      %v383 = vpop.f32.mrf.mxu0
      %v384 = vadd.f32 0.0, %v383
      %385 = vmatmul.f32.gmra.mxu0 %v245
      %v386 = vpop.f32.mrf.mxu0
      %v387 = vadd.f32 0.0, %v386
      %388 = vmatmul.f32.gmra.mxu0 %v248
      %v389 = vpop.f32.mrf.mxu0
      %v390 = vadd.f32 0.0, %v389
      %391 = vmatmul.f32.gmra.mxu0 %v251
      %v392 = vpop.f32.mrf.mxu0
      %v393 = vadd.f32 0.0, %v392
      %394 = vmatmul.f32.gmra.mxu0 %v254
      %v395 = vpop.f32.mrf.mxu0
      %v396 = vadd.f32 0.0, %v395
      %397 = vmatmul.f32.gmra.mxu0 %v257
      %v398 = vpop.f32.mrf.mxu0
      %v399 = vadd.f32 0.0, %v398
      %400 = vmatmul.f32.gmra.mxu0 %v260
      %v401 = vpop.f32.mrf.mxu0
      %v402 = vadd.f32 0.0, %v401
      %403 = vmatmul.f32.gmra.mxu0 %v263
      %v404 = vpop.f32.mrf.mxu0
      %v405 = vadd.f32 0.0, %v404
      %406 = vmatmul.f32.gmra.mxu0 %v266
      %v407 = vpop.f32.mrf.mxu0
      %v408 = vadd.f32 0.0, %v407
      %409 = vmatmul.f32.gmra.mxu0 %v269
      %v410 = vpop.f32.mrf.mxu0
      %v411 = vadd.f32 0.0, %v410
      %412 = vmatmul.f32.gmra.mxu0 %v272
      %v413 = vpop.f32.mrf.mxu0
      %v414 = vadd.f32 0.0, %v413
      %415 = vmatmul.f32.gmra.mxu0 %v275
      %v416 = vpop.f32.mrf.mxu0
      %v417 = vadd.f32 0.0, %v416
      %418 = vdwg.mxu0
      %v419 = vld [vmem:[%s182] sm:$0x3]
      %v421 = vperm.slane %v419, 0
      %v422 = vperm.slane %v419, 1
      %v425 = vmul.f32 %v295, %v421
      %v426 = vmul.f32 %v366, %v422
      %v427 = vmul.f32 %v298, %v421
      %v428 = vmul.f32 %v369, %v422
      %v429 = vmul.f32 %v301, %v421
      %v430 = vmul.f32 %v372, %v422
      %v431 = vmul.f32 %v304, %v421
      %v432 = vmul.f32 %v375, %v422
      %v433 = vmul.f32 %v307, %v421
      %v434 = vmul.f32 %v378, %v422
      %v435 = vmul.f32 %v310, %v421
      %v436 = vmul.f32 %v381, %v422
      %v437 = vmul.f32 %v313, %v421
      %v438 = vmul.f32 %v384, %v422
      %v439 = vmul.f32 %v316, %v421
      %v440 = vmul.f32 %v387, %v422
      %v441 = vmul.f32 %v319, %v421
      %v442 = vmul.f32 %v390, %v422
      %v443 = vmul.f32 %v322, %v421
      %v444 = vmul.f32 %v393, %v422
      %v445 = vmul.f32 %v325, %v421
      %v446 = vmul.f32 %v396, %v422
      %v447 = vmul.f32 %v328, %v421
      %v448 = vmul.f32 %v399, %v422
      %v449 = vmul.f32 %v331, %v421
      %v450 = vmul.f32 %v402, %v422
      %v451 = vmul.f32 %v334, %v421
      %v452 = vmul.f32 %v405, %v422
      %v453 = vmul.f32 %v337, %v421
      %v454 = vmul.f32 %v408, %v422
      %v455 = vmul.f32 %v340, %v421
      %v456 = vmul.f32 %v411, %v422
      %v457 = vmul.f32 %v343, %v421
      %v458 = vmul.f32 %v414, %v422
      %v459 = vmul.f32 %v346, %v421
      %v460 = vmul.f32 %v417, %v422
      %461 = vst [vmem:[%s187] sm:$0xff] %v425
      %462 = vst [vmem:[%s187 + $0x8] sm:$0xff] %v426
      %463 = vst [vmem:[%s187 + $0x10] sm:$0xff] %v427
      %464 = vst [vmem:[%s187 + $0x18] sm:$0xff] %v428
      %465 = vst [vmem:[%s187 + $0x20] sm:$0xff] %v429
      %466 = vst [vmem:[%s187 + $0x28] sm:$0xff] %v430
      %467 = vst [vmem:[%s187 + $0x30] sm:$0xff] %v431
      %468 = vst [vmem:[%s187 + $0x38] sm:$0xff] %v432
      %469 = vst [vmem:[%s187 + $0x40] sm:$0xff] %v433
      %470 = vst [vmem:[%s187 + $0x48] sm:$0xff] %v434
      %471 = vst [vmem:[%s187 + $0x50] sm:$0xff] %v435
      %472 = vst [vmem:[%s187 + $0x58] sm:$0xff] %v436
      %473 = vst [vmem:[%s187 + $0x60] sm:$0xff] %v437
      %474 = vst [vmem:[%s187 + $0x68] sm:$0xff] %v438
      %475 = vst [vmem:[%s187 + $0x70] sm:$0xff] %v439
      %476 = vst [vmem:[%s187 + $0x78] sm:$0xff] %v440
      %477 = vst [vmem:[%s187 + $0x80] sm:$0xff] %v441
      %478 = vst [vmem:[%s187 + $0x88] sm:$0xff] %v442
      %479 = vst [vmem:[%s187 + $0x90] sm:$0xff] %v443
      %480 = vst [vmem:[%s187 + $0x98] sm:$0xff] %v444
      %481 = vst [vmem:[%s187 + $0xa0] sm:$0xff] %v445
      %482 = vst [vmem:[%s187 + $0xa8] sm:$0xff] %v446
      %483 = vst [vmem:[%s187 + $0xb0] sm:$0xff] %v447
      %484 = vst [vmem:[%s187 + $0xb8] sm:$0xff] %v448
      %485 = vst [vmem:[%s187 + $0xc0] sm:$0xff] %v449
      %486 = vst [vmem:[%s187 + $0xc8] sm:$0xff] %v450
      %487 = vst [vmem:[%s187 + $0xd0] sm:$0xff] %v451
      %488 = vst [vmem:[%s187 + $0xd8] sm:$0xff] %v452
      %489 = vst [vmem:[%s187 + $0xe0] sm:$0xff] %v453
      %490 = vst [vmem:[%s187 + $0xe8] sm:$0xff] %v454
      %491 = vst [vmem:[%s187 + $0xf0] sm:$0xff] %v455
      %492 = vst [vmem:[%s187 + $0xf8] sm:$0xff] %v456
      %493 = vst [vmem:[%s187 + $0x100] sm:$0xff] %v457
      %494 = vst [vmem:[%s187 + $0x108] sm:$0xff] %v458
      %495 = vst [vmem:[%s187 + $0x110] sm:$0xff] %v459
      %496 = vst [vmem:[%s187 + $0x118] sm:$0xff] %v460
      %p497 = scmp.lt.s32.totalorder %s14, 1
      %s498 = scalar_select %p497, %s14, 1
      %s499 = smul.addr %s498, 36
      %s500 = smul.addr %s499, 8
      %s501 = scalar_lea.vmem %s3, %s500
      // Predicated region
      $region33: #{image_rearrangement_forward.4} parent=31 // pred_check
        %p502 = pneg %p105
      $region34: #{image_rearrangement_forward.4} parent=31 // pred_check_branch
        %504 = sbr.rel (%p502) target = $region36
      $region35: #{image_rearrangement_forward.4} parent=31 // pred_region
        _
      $region36: #{image_rearrangement_forward.4} parent=31 // pred_fallthru
        _
    $region32: #{image_rearrangement_forward.4} parent=5 // pred_fallthru
      _
    %p505 = scmp.le.s32.totalorder 2, %s9
    // Predicated region
    $region37: #{image_rearrangement_forward.4} parent=5 // pred_check
      %p506 = pneg %p505
    $region38: #{image_rearrangement_forward.4} parent=5 // pred_check_branch
      %508 = sbr.rel (%p506) target = $region40
    $region39: #{image_rearrangement_forward.4} parent=5 // pred_region
      %s509 = ssub.s32 %s9, 2
      // Predicated region
      $region41: #{image_rearrangement_forward.4} parent=39 // pred_check
        %p510 = pneg %p111
      $region42: #{image_rearrangement_forward.4} parent=39 // pred_check_branch
        %512 = sbr.rel (%p510) target = $region44
      $region43: #{image_rearrangement_forward.4} parent=39 // pred_region
        %p513 = scmp.lt.s32.totalorder %s15, 1
        %s514 = scalar_select %p513, %s15, 1
        %s515 = smul.addr %s514, 36
        %s516 = smul.addr %s515, 8
        %s517 = scalar_lea.vmem %s3, %s516
      $region44: #{image_rearrangement_forward.4} parent=39 // pred_fallthru
        _
    $region40: #{image_rearrangement_forward.4} parent=5 // pred_fallthru
      _
  $region6: #{image_rearrangement_forward.4} parent=0 // loop_footer
    %s13 = sadd.s32 1, %s9
  $region7: #{image_rearrangement_forward.4} parent=0 // loop_footer_branch
    %8 = sbr.rel target = $region3
  $region8: #{image_rearrangement_forward.4} parent=0 // loop_exit
    _

// kernel: image_rearrangement_forward.5
$region0: #{image_rearrangement_forward.5}
  #allocation0 [shape = 'u32[]', space=smem, size = 0x4, offset = 0x4, fixed_abs, tag = 'smem constant byte address 0x4 - core index']
  #allocation1 [shape = 'u32[72,128]{1,0:T(1,128)}', space=vmem, size = 0x9000, scoped, tag = 'internal scratch']
  #allocation2 [shape = 'f32[584,64]{1,0:T(8,128)}', space=vmem, size = 0x49000, scoped, tag = 'scratch operand']
  %s0 = inlined_call_operand.vmem [shape: f32[2,584,64], index: 0, kind: input, shape index: {}, may-alias: {0,1}]
  %s1 = inlined_call_operand.vmem [shape: f32[2,584,64], index: 1, kind: input, shape index: {}, may-alias: {0,1}]
  %s2 = inlined_call_operand.vmem [shape: f32[2,576,64], index: 2, kind: input, shape index: {}]
  %s3 = inlined_call_operand.vmem [shape: f32[64,64], index: 3, kind: input, shape index: {}]
  %s4 = inlined_call_operand.vmem [shape: f32[2,584,64], index: 4, kind: output, shape index: {}]
  %s5 = sld [smem:[#allocation0]]
  $region53: #{image_rearrangement_forward.5} parent=0
    _
  %s7 = ssub.s32 1, %s5
  %s8 = scalar_select 0, %s7, %s5
  loop: start=0, step=1, limit=4
  $region2: #{image_rearrangement_forward.5} parent=0 // loop_pre_header
    _
  $region3: #{image_rearrangement_forward.5} parent=0 // loop_header
    %s10 = sphi 0, %s14
    %p11 = scmp.ge.s32.totalorder %s10, 4
    %s17 = sphi 0, %s29
    %s18 = sphi 0, %s25
    %s19 = sphi 0, %s17
    %s20 = sphi 0, %s18
    %s21 = sphi 0, %s19
    %s22 = sphi 0, %s20
    %s32 = sphi 0, %s34
    %s35 = sphi 0, %s32
    %s36 = sphi 0, %s35
    %s52 = sphi 0, %s36
    %s60 = sphi 0, %s62
    %s63 = sphi 0, %s60
    %s64 = sphi 0, %s63
    %s80 = sphi 0, %s64
    %s86 = sphi 0, %s88
    %s89 = sphi 0, %s86
    %s90 = sphi 0, %s89
    %s106 = sphi 0, %s90
    %s112 = sphi 0, %s114
    %s115 = sphi 0, %s112
    %s116 = sphi 0, %s115
    %s132 = sphi 0, %s116
    %s140 = sphi 0, %s142
    %s143 = sphi 0, %s140
    %s144 = sphi 0, %s143
    %s160 = sphi 0, %s144
  $region4: #{image_rearrangement_forward.5} parent=0 // loop_header_branch
    %13 = sbr.rel (%p11) target = $region8
  $region5: #{image_rearrangement_forward.5} parent=0 // loop_body
    %s15 = ssub.s32 %s10, 1
    %s16 = ssub.s32 %s10, 2
    %s23 = sadd.s32 1, %s18
    %p24 = scmp.ge.s32.totalorder %s23, 1
    %s25 = scalar_select %p24, 0, %s23
    %s26 = sadd.s32 1, %s17
    %s27 = scalar_select %p24, %s26, %s17
    %p28 = scmp.ge.s32.totalorder %s27, 2
    %s29 = scalar_select %p28, 0, %s27
    %s30 = ssub.s32 %s17, %s29
    %p31 = scmp.eq.s32.totalorder %s30, 0
    %s33 = sadd.s32 %s32, 1
    %s34 = scalar_select %p31, %s32, %s33
    %p37 = pneg %p31
    %p38 = scmp.eq.s32.totalorder %s10, 1
    %p39 = por %p37, %p38
    %p40 = scmp.ne.s32.totalorder %s32, %s35
    %p41 = scmp.eq.s32.totalorder %s10, 0
    %p42 = por %p40, %p41
    %p43 = scmp.ne.s32.totalorder %s32, %s35
    %p44 = scmp.eq.s32.totalorder %s15, 1
    %p45 = por %p43, %p44
    %p46 = scmp.ne.s32.totalorder %s35, %s36
    %p47 = scmp.eq.s32.totalorder %s15, 0
    %p48 = por %p46, %p47
    %p49 = scmp.ne.s32.totalorder %s35, %s36
    %p50 = scmp.eq.s32.totalorder %s16, 1
    %p51 = por %p49, %p50
    %p53 = scmp.ne.s32.totalorder %s36, %s52
    %p54 = scmp.eq.s32.totalorder %s16, 0
    %p55 = por %p53, %p54
    %s56 = ssub.s32 %s17, %s29
    %s57 = ssub.s32 %s18, %s25
    %s58 = sor.u32 %s56, %s57
    %p59 = scmp.eq.s32.totalorder %s58, 0
    %s61 = sadd.s32 %s60, 1
    %s62 = scalar_select %p59, %s60, %s61
    %p65 = pneg %p59
    %p66 = scmp.eq.s32.totalorder %s10, 1
    %p67 = por %p65, %p66
    %p68 = scmp.ne.s32.totalorder %s60, %s63
    %p69 = scmp.eq.s32.totalorder %s10, 0
    %p70 = por %p68, %p69
    %p71 = scmp.ne.s32.totalorder %s60, %s63
    %p72 = scmp.eq.s32.totalorder %s15, 1
    %p73 = por %p71, %p72
    %p74 = scmp.ne.s32.totalorder %s63, %s64
    %p75 = scmp.eq.s32.totalorder %s15, 0
    %p76 = por %p74, %p75
    %p77 = scmp.ne.s32.totalorder %s63, %s64
    %p78 = scmp.eq.s32.totalorder %s16, 1
    %p79 = por %p77, %p78
    %p81 = scmp.ne.s32.totalorder %s64, %s80
    %p82 = scmp.eq.s32.totalorder %s16, 0
    %p83 = por %p81, %p82
    %s84 = ssub.s32 %s17, %s29
    %p85 = scmp.eq.s32.totalorder %s84, 0
    %s87 = sadd.s32 %s86, 1
    %s88 = scalar_select %p85, %s86, %s87
    %p91 = pneg %p85
    %p92 = scmp.eq.s32.totalorder %s10, 1
    %p93 = por %p91, %p92
    %p94 = scmp.ne.s32.totalorder %s86, %s89
    %p95 = scmp.eq.s32.totalorder %s10, 0
    %p96 = por %p94, %p95
    %p97 = scmp.ne.s32.totalorder %s86, %s89
    %p98 = scmp.eq.s32.totalorder %s15, 1
    %p99 = por %p97, %p98
    %p100 = scmp.ne.s32.totalorder %s89, %s90
    %p101 = scmp.eq.s32.totalorder %s15, 0
    %p102 = por %p100, %p101
    %p103 = scmp.ne.s32.totalorder %s89, %s90
    %p104 = scmp.eq.s32.totalorder %s16, 1
    %p105 = por %p103, %p104
    %p107 = scmp.ne.s32.totalorder %s90, %s106
    %p108 = scmp.eq.s32.totalorder %s16, 0
    %p109 = por %p107, %p108
    %s110 = ssub.s32 %s18, %s25
    %p111 = scmp.eq.s32.totalorder %s110, 0
    %s113 = sadd.s32 %s112, 1
    %s114 = scalar_select %p111, %s112, %s113
    %p117 = pneg %p111
    %p118 = scmp.eq.s32.totalorder %s10, 1
    %p119 = por %p117, %p118
    %p120 = scmp.ne.s32.totalorder %s112, %s115
    %p121 = scmp.eq.s32.totalorder %s10, 0
    %p122 = por %p120, %p121
    %p123 = scmp.ne.s32.totalorder %s112, %s115
    %p124 = scmp.eq.s32.totalorder %s15, 1
    %p125 = por %p123, %p124
    %p126 = scmp.ne.s32.totalorder %s115, %s116
    %p127 = scmp.eq.s32.totalorder %s15, 0
    %p128 = por %p126, %p127
    %p129 = scmp.ne.s32.totalorder %s115, %s116
    %p130 = scmp.eq.s32.totalorder %s16, 1
    %p131 = por %p129, %p130
    %p133 = scmp.ne.s32.totalorder %s116, %s132
    %p134 = scmp.eq.s32.totalorder %s16, 0
    %p135 = por %p133, %p134
    %s136 = ssub.s32 %s17, %s29
    %s137 = ssub.s32 %s18, %s25
    %s138 = sor.u32 %s136, %s137
    %p139 = scmp.eq.s32.totalorder %s138, 0
    %s141 = sadd.s32 %s140, 1
    %s142 = scalar_select %p139, %s140, %s141
    %p145 = pneg %p139
    %p146 = scmp.eq.s32.totalorder %s10, 1
    %p147 = por %p145, %p146
    %p148 = scmp.ne.s32.totalorder %s140, %s143
    %p149 = scmp.eq.s32.totalorder %s10, 0
    %p150 = por %p148, %p149
    %p151 = scmp.ne.s32.totalorder %s140, %s143
    %p152 = scmp.eq.s32.totalorder %s15, 1
    %p153 = por %p151, %p152
    %p154 = scmp.ne.s32.totalorder %s143, %s144
    %p155 = scmp.eq.s32.totalorder %s15, 0
    %p156 = por %p154, %p155
    %p157 = scmp.ne.s32.totalorder %s143, %s144
    %p158 = scmp.eq.s32.totalorder %s16, 1
    %p159 = por %p157, %p158
    %p161 = scmp.ne.s32.totalorder %s144, %s160
    %p162 = scmp.eq.s32.totalorder %s16, 0
    %p163 = por %p161, %p162
    %p164 = scmp.le.s32.totalorder 1, %s10
    %p165 = scmp.lt.s32.totalorder %s10, 3
    %p166 = pnand %p164, %p165
    %p167 = pneg %p166
    // Predicated region
    $region9: #{image_rearrangement_forward.5} parent=5 // pred_check
      _
    $region10: #{image_rearrangement_forward.5} parent=5 // pred_check_branch
      %169 = sbr.rel (%p166) target = $region12
    $region11: #{image_rearrangement_forward.5} parent=5 // pred_region
      %s170 = ssub.s32 %s10, 1
      // Predicated region
      $region13: #{image_rearrangement_forward.5} parent=11 // pred_check
        %p171 = pneg %p128
      $region14: #{image_rearrangement_forward.5} parent=11 // pred_check_branch
        %173 = sbr.rel (%p171) target = $region16
      $region15: #{image_rearrangement_forward.5} parent=11 // pred_region
        %p174 = scmp.lt.s32.totalorder %s20, 0
        %s175 = scalar_select %p174, %s20, 0
        %s176 = smul.addr %s175, 8
        %s177 = scalar_lea.vmem %s3, %s176
      $region16: #{image_rearrangement_forward.5} parent=11 // pred_fallthru
        _
    $region12: #{image_rearrangement_forward.5} parent=5 // pred_fallthru
      _
    %p178 = scmp.lt.s32.totalorder %s10, 2
    // Predicated region
    $region17: #{image_rearrangement_forward.5} parent=5 // pred_check
      %p179 = pneg %p178
    $region18: #{image_rearrangement_forward.5} parent=5 // pred_check_branch
      %181 = sbr.rel (%p179) target = $region20
    $region19: #{image_rearrangement_forward.5} parent=5 // pred_region
      // Predicated region
      $region21: #{image_rearrangement_forward.5} parent=19 // pred_check
        %p182 = pneg %p42
      $region22: #{image_rearrangement_forward.5} parent=19 // pred_check_branch
        %184 = sbr.rel (%p182) target = $region24
      $region23: #{image_rearrangement_forward.5} parent=19 // pred_region
        %p185 = scmp.lt.s32.totalorder %s17, 1
        %s186 = scalar_select %p185, %s17, 1
        %s187 = smul.addr %s186, 73
        %s188 = smul.addr %s187, 8
        %s189 = scalar_lea.vmem %s0, %s188
      $region24: #{image_rearrangement_forward.5} parent=19 // pred_fallthru
        _
      // Predicated region
      $region25: #{image_rearrangement_forward.5} parent=19 // pred_check
        %p190 = pneg %p70
      $region26: #{image_rearrangement_forward.5} parent=19 // pred_check_branch
        %192 = sbr.rel (%p190) target = $region28
      $region27: #{image_rearrangement_forward.5} parent=19 // pred_region
        %p193 = scmp.lt.s32.totalorder %s17, 1
        %s194 = scalar_select %p193, %s17, 1
        %p195 = scmp.lt.s32.totalorder %s18, 0
        %s196 = scalar_select %p195, %s18, 0
        %s197 = smul.addr %s194, 73
        %s198 = sadd.s32 %s196, %s197
        %s199 = smul.addr %s198, 8
        %s200 = scalar_lea.vmem %s1, %s199
      $region28: #{image_rearrangement_forward.5} parent=19 // pred_fallthru
        _
      // Predicated region
      $region29: #{image_rearrangement_forward.5} parent=19 // pred_check
        %p201 = pneg %p96
      $region30: #{image_rearrangement_forward.5} parent=19 // pred_check_branch
        %203 = sbr.rel (%p201) target = $region32
      $region31: #{image_rearrangement_forward.5} parent=19 // pred_region
        %p204 = scmp.lt.s32.totalorder %s17, 1
        %s205 = scalar_select %p204, %s17, 1
        %s206 = smul.addr %s205, 72
        %s207 = smul.addr %s206, 8
        %s208 = scalar_lea.vmem %s2, %s207
      $region32: #{image_rearrangement_forward.5} parent=19 // pred_fallthru
        _
    $region20: #{image_rearrangement_forward.5} parent=5 // pred_fallthru
      _
    %p209 = scmp.le.s32.totalorder 1, %s10
    %p210 = scmp.lt.s32.totalorder %s10, 3
    %p211 = pnand %p209, %p210
    %p212 = pneg %p211
    // Predicated region
    $region33: #{image_rearrangement_forward.5} parent=5 // pred_check
      _
    $region34: #{image_rearrangement_forward.5} parent=5 // pred_check_branch
      %214 = sbr.rel (%p211) target = $region36
    $region35: #{image_rearrangement_forward.5} parent=5 // pred_region
      %s215 = ssub.s32 %s10, 1
      %p216 = scmp.lt.s32.totalorder %s19, 1
      %s217 = scalar_select %p216, %s19, 1
      %s218 = smul.addr %s217, 73
      %s219 = smul.addr %s218, 8
      %s220 = scalar_lea.vmem %s0, %s219
      %p221 = pneg %p48
      %p222 = pneg %p45
      %p223 = scmp.lt.s32.totalorder %s19, 1
      %s224 = scalar_select %p223, %s19, 1
      %p225 = scmp.lt.s32.totalorder %s20, 0
      %s226 = scalar_select %p225, %s20, 0
      %s227 = smul.addr %s224, 73
      %s228 = sadd.s32 %s226, %s227
      %s229 = smul.addr %s228, 8
      %s230 = scalar_lea.vmem %s1, %s229
      %p231 = pneg %p76
      %p232 = pneg %p73
      %p233 = scmp.lt.s32.totalorder %s19, 1
      %s234 = scalar_select %p233, %s19, 1
      %s235 = smul.addr %s234, 72
      %s236 = smul.addr %s235, 8
      %s237 = scalar_lea.vmem %s2, %s236
      %p238 = pneg %p102
      %p239 = pneg %p99
      %p240 = scmp.lt.s32.totalorder %s20, 0
      %s241 = scalar_select %p240, %s20, 0
      %s242 = smul.addr %s241, 8
      %s243 = scalar_lea.vmem %s3, %s242
      %p244 = pneg %p128
      %p245 = pneg %p125
      %p246 = pneg %p156
      %p247 = pneg %p153
      %p248 = scmp.lt.s32.totalorder %s19, 1
      %s249 = scalar_select %p248, %s19, 1
      %p250 = scmp.lt.s32.totalorder %s20, 0
      %s251 = scalar_select %p250, %s20, 0
      %s252 = smul.addr %s249, 73
      %s253 = sadd.s32 %s251, %s252
      %s254 = smul.addr %s253, 8
      %s255 = scalar_lea.vmem %s4, %s254
      %p256 = scmp.lt.s32.totalorder %s19, 1
      %s257 = scalar_select %p256, %s19, 1
      %s258 = smul.addr %s257, 73
      %s259 = smul.addr %s258, 8
      %s260 = scalar_lea.vmem %s0, %s259
      %p261 = scmp.lt.s32.totalorder %s19, 1
      %s262 = scalar_select %p261, %s19, 1
      %p263 = scmp.lt.s32.totalorder %s20, 0
      %s264 = scalar_select %p263, %s20, 0
      %s265 = smul.addr %s262, 73
      %s266 = sadd.s32 %s264, %s265
      %s267 = smul.addr %s266, 8
      %s268 = scalar_lea.vmem %s1, %s267
      %p269 = scmp.lt.s32.totalorder %s19, 1
      %s270 = scalar_select %p269, %s19, 1
      %s271 = smul.addr %s270, 72
      %s272 = smul.addr %s271, 8
      %s273 = scalar_lea.vmem %s2, %s272
      %p274 = scmp.lt.s32.totalorder %s20, 0
      %s275 = scalar_select %p274, %s20, 0
      %s276 = smul.addr %s275, 8
      %s277 = scalar_lea.vmem %s3, %s276
      %p278 = scmp.lt.s32.totalorder %s19, 1
      %s279 = scalar_select %p278, %s19, 1
      %p280 = scmp.lt.s32.totalorder %s20, 0
      %s281 = scalar_select %p280, %s20, 0
      %s282 = smul.addr %s279, 73
      %s283 = sadd.s32 %s281, %s282
      %s284 = smul.addr %s283, 8
      %s285 = scalar_lea.vmem %s4, %s284
      %p286 = scmp.eq.s32.totalorder %s20, 0
      // Predicated region
      $region37: #{image_rearrangement_forward.5} parent=35 // pred_check
        %p287 = pneg %p286
      $region38: #{image_rearrangement_forward.5} parent=35 // pred_check_branch
        %289 = sbr.rel (%p287) target = $region40
      $region39: #{image_rearrangement_forward.5} parent=35 // pred_region
        %v290 = vld [vmem:[%s260] sm:$0x1f]
        %vm291 = vcmask 520192
        %292 = vst.msk [vmem:[#allocation2] sm:$0x1f] %vm291, %v290
        %v293 = vld [vmem:[%s273] sm:$0xff]
        %v294 = vld [vmem:[%s273 + $0x8] sm:$0xff]
        %v295 = vld [vmem:[%s273 + $0x10] sm:$0xff]
        %v296 = vld [vmem:[%s273 + $0x18] sm:$0xff]
        %v297 = vld [vmem:[%s273 + $0x20] sm:$0xff]
        %v298 = vld [vmem:[%s273 + $0x28] sm:$0xff]
        %v299 = vld [vmem:[%s273 + $0x30] sm:$0xff]
        %v300 = vld [vmem:[%s273 + $0x38] sm:$0xff]
        %v301 = vld [vmem:[%s273 + $0x40] sm:$0xff]
        %v302 = vld [vmem:[%s273 + $0x48] sm:$0xff]
        %v303 = vld [vmem:[%s273 + $0x50] sm:$0xff]
        %v304 = vld [vmem:[%s273 + $0x58] sm:$0xff]
        %v305 = vld [vmem:[%s273 + $0x60] sm:$0xff]
        %v306 = vld [vmem:[%s273 + $0x68] sm:$0xff]
        %v307 = vld [vmem:[%s273 + $0x70] sm:$0xff]
        %v308 = vld [vmem:[%s273 + $0x78] sm:$0xff]
        %v309 = vld [vmem:[%s273 + $0x80] sm:$0xff]
        %v310 = vld [vmem:[%s273 + $0x88] sm:$0xff]
        %v311 = vld [vmem:[%s273 + $0x90] sm:$0xff]
        %v312 = vld [vmem:[%s273 + $0x98] sm:$0xff]
        %v313 = vld [vmem:[%s273 + $0xa0] sm:$0xff]
        %v314 = vld [vmem:[%s273 + $0xa8] sm:$0xff]
        %v315 = vld [vmem:[%s273 + $0xb0] sm:$0xff]
        %v316 = vld [vmem:[%s273 + $0xb8] sm:$0xff]
        %v317 = vld [vmem:[%s273 + $0xc0] sm:$0xff]
        %v318 = vld [vmem:[%s273 + $0xc8] sm:$0xff]
        %v319 = vld [vmem:[%s273 + $0xd0] sm:$0xff]
        %v320 = vld [vmem:[%s273 + $0xd8] sm:$0xff]
        %v321 = vld [vmem:[%s273 + $0xe0] sm:$0xff]
        %v322 = vld [vmem:[%s273 + $0xe8] sm:$0xff]
        %v323 = vld [vmem:[%s273 + $0xf0] sm:$0xff]
        %v324 = vld [vmem:[%s273 + $0xf8] sm:$0xff]
        %v325 = vld [vmem:[%s273 + $0x100] sm:$0xff]
        %v326 = vld [vmem:[%s273 + $0x108] sm:$0xff]
        %v327 = vld [vmem:[%s273 + $0x110] sm:$0xff]
        %v328 = vld [vmem:[%s273 + $0x118] sm:$0xff]
        %v329 = vld [vmem:[%s273 + $0x120] sm:$0xff]
        %v330 = vld [vmem:[%s273 + $0x128] sm:$0xff]
        %v331 = vld [vmem:[%s273 + $0x130] sm:$0xff]
        %v332 = vld [vmem:[%s273 + $0x138] sm:$0xff]
        %v333 = vld [vmem:[%s273 + $0x140] sm:$0xff]
        %v334 = vld [vmem:[%s273 + $0x148] sm:$0xff]
        %v335 = vld [vmem:[%s273 + $0x150] sm:$0xff]
        %v336 = vld [vmem:[%s273 + $0x158] sm:$0xff]
        %v337 = vld [vmem:[%s273 + $0x160] sm:$0xff]
        %v338 = vld [vmem:[%s273 + $0x168] sm:$0xff]
        %v339 = vld [vmem:[%s273 + $0x170] sm:$0xff]
        %v340 = vld [vmem:[%s273 + $0x178] sm:$0xff]
        %v341 = vld [vmem:[%s273 + $0x180] sm:$0xff]
        %v342 = vld [vmem:[%s273 + $0x188] sm:$0xff]
        %v343 = vld [vmem:[%s273 + $0x190] sm:$0xff]
        %v344 = vld [vmem:[%s273 + $0x198] sm:$0xff]
        %v345 = vld [vmem:[%s273 + $0x1a0] sm:$0xff]
        %v346 = vld [vmem:[%s273 + $0x1a8] sm:$0xff]
        %v347 = vld [vmem:[%s273 + $0x1b0] sm:$0xff]
        %v348 = vld [vmem:[%s273 + $0x1b8] sm:$0xff]
        %v349 = vld [vmem:[%s273 + $0x1c0] sm:$0xff]
        %v350 = vld [vmem:[%s273 + $0x1c8] sm:$0xff]
        %v351 = vld [vmem:[%s273 + $0x1d0] sm:$0xff]
        %v352 = vld [vmem:[%s273 + $0x1d8] sm:$0xff]
        %v353 = vld [vmem:[%s273 + $0x1e0] sm:$0xff]
        %v354 = vld [vmem:[%s273 + $0x1e8] sm:$0xff]
        %v355 = vld [vmem:[%s273 + $0x1f0] sm:$0xff]
        %v356 = vld [vmem:[%s273 + $0x1f8] sm:$0xff]
        %v357 = vld [vmem:[%s273 + $0x200] sm:$0xff]
        %v358 = vld [vmem:[%s273 + $0x208] sm:$0xff]
        %v359 = vld [vmem:[%s273 + $0x210] sm:$0xff]
        %v360 = vld [vmem:[%s273 + $0x218] sm:$0xff]
        %v361 = vld [vmem:[%s273 + $0x220] sm:$0xff]
        %v362 = vld [vmem:[%s273 + $0x228] sm:$0xff]
        %v363 = vld [vmem:[%s273 + $0x230] sm:$0xff]
        %v364 = vld [vmem:[%s273 + $0x238] sm:$0xff]
        %vm365 = vcmask 523264
        %366 = vst.msk [vmem:[#allocation2 + $0x5] sm:$0xff] %vm365, %v293
        %367 = vst.msk [vmem:[#allocation2 + $0xd] sm:$0xff] %vm365, %v294
        %368 = vst.msk [vmem:[#allocation2 + $0x15] sm:$0xff] %vm365, %v295
        %369 = vst.msk [vmem:[#allocation2 + $0x1d] sm:$0xff] %vm365, %v296
        %370 = vst.msk [vmem:[#allocation2 + $0x25] sm:$0xff] %vm365, %v297
        %371 = vst.msk [vmem:[#allocation2 + $0x2d] sm:$0xff] %vm365, %v298
        %372 = vst.msk [vmem:[#allocation2 + $0x35] sm:$0xff] %vm365, %v299
        %373 = vst.msk [vmem:[#allocation2 + $0x3d] sm:$0xff] %vm365, %v300
        %374 = vst.msk [vmem:[#allocation2 + $0x45] sm:$0xff] %vm365, %v301
        %375 = vst.msk [vmem:[#allocation2 + $0x4d] sm:$0xff] %vm365, %v302
        %376 = vst.msk [vmem:[#allocation2 + $0x55] sm:$0xff] %vm365, %v303
        %377 = vst.msk [vmem:[#allocation2 + $0x5d] sm:$0xff] %vm365, %v304
        %378 = vst.msk [vmem:[#allocation2 + $0x65] sm:$0xff] %vm365, %v305
        %379 = vst.msk [vmem:[#allocation2 + $0x6d] sm:$0xff] %vm365, %v306
        %380 = vst.msk [vmem:[#allocation2 + $0x75] sm:$0xff] %vm365, %v307
        %381 = vst.msk [vmem:[#allocation2 + $0x7d] sm:$0xff] %vm365, %v308
        %382 = vst.msk [vmem:[#allocation2 + $0x85] sm:$0xff] %vm365, %v309
        %383 = vst.msk [vmem:[#allocation2 + $0x8d] sm:$0xff] %vm365, %v310
        %384 = vst.msk [vmem:[#allocation2 + $0x95] sm:$0xff] %vm365, %v311
        %385 = vst.msk [vmem:[#allocation2 + $0x9d] sm:$0xff] %vm365, %v312
        %386 = vst.msk [vmem:[#allocation2 + $0xa5] sm:$0xff] %vm365, %v313
        %387 = vst.msk [vmem:[#allocation2 + $0xad] sm:$0xff] %vm365, %v314
        %388 = vst.msk [vmem:[#allocation2 + $0xb5] sm:$0xff] %vm365, %v315
        %389 = vst.msk [vmem:[#allocation2 + $0xbd] sm:$0xff] %vm365, %v316
        %390 = vst.msk [vmem:[#allocation2 + $0xc5] sm:$0xff] %vm365, %v317
        %391 = vst.msk [vmem:[#allocation2 + $0xcd] sm:$0xff] %vm365, %v318
        %392 = vst.msk [vmem:[#allocation2 + $0xd5] sm:$0xff] %vm365, %v319
        %393 = vst.msk [vmem:[#allocation2 + $0xdd] sm:$0xff] %vm365, %v320
        %394 = vst.msk [vmem:[#allocation2 + $0xe5] sm:$0xff] %vm365, %v321
        %395 = vst.msk [vmem:[#allocation2 + $0xed] sm:$0xff] %vm365, %v322
        %396 = vst.msk [vmem:[#allocation2 + $0xf5] sm:$0xff] %vm365, %v323
        %397 = vst.msk [vmem:[#allocation2 + $0xfd] sm:$0xff] %vm365, %v324
        %398 = vst.msk [vmem:[#allocation2 + $0x105] sm:$0xff] %vm365, %v325
        %399 = vst.msk [vmem:[#allocation2 + $0x10d] sm:$0xff] %vm365, %v326
        %400 = vst.msk [vmem:[#allocation2 + $0x115] sm:$0xff] %vm365, %v327
        %401 = vst.msk [vmem:[#allocation2 + $0x11d] sm:$0xff] %vm365, %v328
        %402 = vst.msk [vmem:[#allocation2 + $0x125] sm:$0xff] %vm365, %v329
        %403 = vst.msk [vmem:[#allocation2 + $0x12d] sm:$0xff] %vm365, %v330
        %404 = vst.msk [vmem:[#allocation2 + $0x135] sm:$0xff] %vm365, %v331
        %405 = vst.msk [vmem:[#allocation2 + $0x13d] sm:$0xff] %vm365, %v332
        %406 = vst.msk [vmem:[#allocation2 + $0x145] sm:$0xff] %vm365, %v333
        %407 = vst.msk [vmem:[#allocation2 + $0x14d] sm:$0xff] %vm365, %v334
        %408 = vst.msk [vmem:[#allocation2 + $0x155] sm:$0xff] %vm365, %v335
        %409 = vst.msk [vmem:[#allocation2 + $0x15d] sm:$0xff] %vm365, %v336
        %410 = vst.msk [vmem:[#allocation2 + $0x165] sm:$0xff] %vm365, %v337
        %411 = vst.msk [vmem:[#allocation2 + $0x16d] sm:$0xff] %vm365, %v338
        %412 = vst.msk [vmem:[#allocation2 + $0x175] sm:$0xff] %vm365, %v339
        %413 = vst.msk [vmem:[#allocation2 + $0x17d] sm:$0xff] %vm365, %v340
        %414 = vst.msk [vmem:[#allocation2 + $0x185] sm:$0xff] %vm365, %v341
        %415 = vst.msk [vmem:[#allocation2 + $0x18d] sm:$0xff] %vm365, %v342
        %416 = vst.msk [vmem:[#allocation2 + $0x195] sm:$0xff] %vm365, %v343
        %417 = vst.msk [vmem:[#allocation2 + $0x19d] sm:$0xff] %vm365, %v344
        %418 = vst.msk [vmem:[#allocation2 + $0x1a5] sm:$0xff] %vm365, %v345
        %419 = vst.msk [vmem:[#allocation2 + $0x1ad] sm:$0xff] %vm365, %v346
        %420 = vst.msk [vmem:[#allocation2 + $0x1b5] sm:$0xff] %vm365, %v347
        %421 = vst.msk [vmem:[#allocation2 + $0x1bd] sm:$0xff] %vm365, %v348
        %422 = vst.msk [vmem:[#allocation2 + $0x1c5] sm:$0xff] %vm365, %v349
        %423 = vst.msk [vmem:[#allocation2 + $0x1cd] sm:$0xff] %vm365, %v350
        %424 = vst.msk [vmem:[#allocation2 + $0x1d5] sm:$0xff] %vm365, %v351
        %425 = vst.msk [vmem:[#allocation2 + $0x1dd] sm:$0xff] %vm365, %v352
        %426 = vst.msk [vmem:[#allocation2 + $0x1e5] sm:$0xff] %vm365, %v353
        %427 = vst.msk [vmem:[#allocation2 + $0x1ed] sm:$0xff] %vm365, %v354
        %428 = vst.msk [vmem:[#allocation2 + $0x1f5] sm:$0xff] %vm365, %v355
        %429 = vst.msk [vmem:[#allocation2 + $0x1fd] sm:$0xff] %vm365, %v356
        %430 = vst.msk [vmem:[#allocation2 + $0x205] sm:$0xff] %vm365, %v357
        %431 = vst.msk [vmem:[#allocation2 + $0x20d] sm:$0xff] %vm365, %v358
        %432 = vst.msk [vmem:[#allocation2 + $0x215] sm:$0xff] %vm365, %v359
        %433 = vst.msk [vmem:[#allocation2 + $0x21d] sm:$0xff] %vm365, %v360
        %434 = vst.msk [vmem:[#allocation2 + $0x225] sm:$0xff] %vm365, %v361
        %435 = vst.msk [vmem:[#allocation2 + $0x22d] sm:$0xff] %vm365, %v362
        %436 = vst.msk [vmem:[#allocation2 + $0x235] sm:$0xff] %vm365, %v363
        %437 = vst.msk [vmem:[#allocation2 + $0x23d] sm:$0xff] %vm365, %v364
        %v438 = vld [vmem:[%s260 + $0x245] sm:$0x7]
        %vm439 = vcmask 518144
        %440 = vst.msk [vmem:[#allocation2 + $0x245] sm:$0x7] %vm439, %v438
      $region40: #{image_rearrangement_forward.5} parent=35 // pred_fallthru
        _
      %v441 = vld [vmem:[#allocation2] sm:$0xff]
      %v442 = vld [vmem:[#allocation2 + $0x8] sm:$0xff]
      %v443 = vld [vmem:[#allocation2 + $0x10] sm:$0xff]
      %v444 = vld [vmem:[#allocation2 + $0x18] sm:$0xff]
      %v445 = vld [vmem:[#allocation2 + $0x20] sm:$0xff]
      %v446 = vld [vmem:[#allocation2 + $0x28] sm:$0xff]
      %v447 = vld [vmem:[#allocation2 + $0x30] sm:$0xff]
      %v448 = vld [vmem:[#allocation2 + $0x38] sm:$0xff]
      %v449 = vld [vmem:[#allocation2 + $0x40] sm:$0xff]
      %v450 = vld [vmem:[#allocation2 + $0x48] sm:$0xff]
      %v451 = vld [vmem:[#allocation2 + $0x50] sm:$0xff]
      %v452 = vld [vmem:[#allocation2 + $0x58] sm:$0xff]
      %v453 = vld [vmem:[#allocation2 + $0x60] sm:$0xff]
      %v454 = vld [vmem:[#allocation2 + $0x68] sm:$0xff]
      %v455 = vld [vmem:[#allocation2 + $0x70] sm:$0xff]
      %v456 = vld [vmem:[#allocation2 + $0x78] sm:$0xff]
      %v457 = vld [vmem:[#allocation2 + $0x80] sm:$0xff]
      %v458 = vld [vmem:[#allocation2 + $0x88] sm:$0xff]
      %v459 = vld [vmem:[#allocation2 + $0x90] sm:$0xff]
      %v460 = vld [vmem:[#allocation2 + $0x98] sm:$0xff]
      %v461 = vld [vmem:[#allocation2 + $0xa0] sm:$0xff]
      %v462 = vld [vmem:[#allocation2 + $0xa8] sm:$0xff]
      %v463 = vld [vmem:[#allocation2 + $0xb0] sm:$0xff]
      %v464 = vld [vmem:[#allocation2 + $0xb8] sm:$0xff]
      %v465 = vld [vmem:[#allocation2 + $0xc0] sm:$0xff]
      %v466 = vld [vmem:[#allocation2 + $0xc8] sm:$0xff]
      %v467 = vld [vmem:[#allocation2 + $0xd0] sm:$0xff]
      %v468 = vld [vmem:[#allocation2 + $0xd8] sm:$0xff]
      %v469 = vld [vmem:[#allocation2 + $0xe0] sm:$0xff]
      %v470 = vld [vmem:[#allocation2 + $0xe8] sm:$0xff]
      %v471 = vld [vmem:[#allocation2 + $0xf0] sm:$0xff]
      %v472 = vld [vmem:[#allocation2 + $0xf8] sm:$0xff]
      %v473 = vld [vmem:[#allocation2 + $0x100] sm:$0xff]
      %v474 = vld [vmem:[#allocation2 + $0x108] sm:$0xff]
      %v475 = vld [vmem:[#allocation2 + $0x110] sm:$0xff]
      %v476 = vld [vmem:[#allocation2 + $0x118] sm:$0xff]
      %v477 = vld [vmem:[#allocation2 + $0x120] sm:$0xff]
      %v478 = vld [vmem:[#allocation2 + $0x128] sm:$0xff]
      %v479 = vld [vmem:[#allocation2 + $0x130] sm:$0xff]
      %v480 = vld [vmem:[#allocation2 + $0x138] sm:$0xff]
      %v481 = vld [vmem:[#allocation2 + $0x140] sm:$0xff]
      %v482 = vld [vmem:[#allocation2 + $0x148] sm:$0xff]
      %v483 = vld [vmem:[#allocation2 + $0x150] sm:$0xff]
      %v484 = vld [vmem:[#allocation2 + $0x158] sm:$0xff]
      %v485 = vld [vmem:[#allocation2 + $0x160] sm:$0xff]
      %v486 = vld [vmem:[#allocation2 + $0x168] sm:$0xff]
      %v487 = vld [vmem:[#allocation2 + $0x170] sm:$0xff]
      %v488 = vld [vmem:[#allocation2 + $0x178] sm:$0xff]
      %v489 = vld [vmem:[#allocation2 + $0x180] sm:$0xff]
      %v490 = vld [vmem:[#allocation2 + $0x188] sm:$0xff]
      %v491 = vld [vmem:[#allocation2 + $0x190] sm:$0xff]
      %v492 = vld [vmem:[#allocation2 + $0x198] sm:$0xff]
      %v493 = vld [vmem:[#allocation2 + $0x1a0] sm:$0xff]
      %v494 = vld [vmem:[#allocation2 + $0x1a8] sm:$0xff]
      %v495 = vld [vmem:[#allocation2 + $0x1b0] sm:$0xff]
      %v496 = vld [vmem:[#allocation2 + $0x1b8] sm:$0xff]
      %v497 = vld [vmem:[#allocation2 + $0x1c0] sm:$0xff]
      %v498 = vld [vmem:[#allocation2 + $0x1c8] sm:$0xff]
      %v499 = vld [vmem:[#allocation2 + $0x1d0] sm:$0xff]
      %v500 = vld [vmem:[#allocation2 + $0x1d8] sm:$0xff]
      %v501 = vld [vmem:[#allocation2 + $0x1e0] sm:$0xff]
      %v502 = vld [vmem:[#allocation2 + $0x1e8] sm:$0xff]
      %v503 = vld [vmem:[#allocation2 + $0x1f0] sm:$0xff]
      %v504 = vld [vmem:[#allocation2 + $0x1f8] sm:$0xff]
      %v505 = vld [vmem:[#allocation2 + $0x200] sm:$0xff]
      %v506 = vld [vmem:[#allocation2 + $0x208] sm:$0xff]
      %v507 = vld [vmem:[#allocation2 + $0x210] sm:$0xff]
      %v508 = vld [vmem:[#allocation2 + $0x218] sm:$0xff]
      %v509 = vld [vmem:[#allocation2 + $0x220] sm:$0xff]
      %v510 = vld [vmem:[#allocation2 + $0x228] sm:$0xff]
      %v511 = vld [vmem:[#allocation2 + $0x230] sm:$0xff]
      %v512 = vld [vmem:[#allocation2 + $0x238] sm:$0xff]
      %v513 = vld [vmem:[#allocation2 + $0x240] sm:$0xff]
      %v514 = vld [vmem:[%s277] sm:$0xff]
      %v515 = vld [vmem:[%s277 + $0x8] sm:$0xff]
      %v516 = vld [vmem:[%s277 + $0x10] sm:$0xff]
      %v517 = vld [vmem:[%s277 + $0x18] sm:$0xff]
      %v518 = vld [vmem:[%s277 + $0x20] sm:$0xff]
      %v519 = vld [vmem:[%s277 + $0x28] sm:$0xff]
      %v520 = vld [vmem:[%s277 + $0x30] sm:$0xff]
      %v521 = vld [vmem:[%s277 + $0x38] sm:$0xff]
      %vm522 = vcmask 523264
      %v524 = vsel %vm522, %v441, 0
      %v527 = vsel %vm522, %v442, 0
      %v530 = vsel %vm522, %v443, 0
      %v533 = vsel %vm522, %v444, 0
      %v536 = vsel %vm522, %v445, 0
      %v539 = vsel %vm522, %v446, 0
      %v542 = vsel %vm522, %v447, 0
      %v545 = vsel %vm522, %v448, 0
      %v548 = vsel %vm522, %v449, 0
      %v551 = vsel %vm522, %v450, 0
      %v554 = vsel %vm522, %v451, 0
      %v557 = vsel %vm522, %v452, 0
      %v560 = vsel %vm522, %v453, 0
      %v563 = vsel %vm522, %v454, 0
      %v566 = vsel %vm522, %v455, 0
      %v569 = vsel %vm522, %v456, 0
      %v572 = vsel %vm522, %v457, 0
      %v575 = vsel %vm522, %v458, 0
      %v578 = vsel %vm522, %v459, 0
      %v581 = vsel %vm522, %v460, 0
      %v584 = vsel %vm522, %v461, 0
      %v587 = vsel %vm522, %v462, 0
      %v590 = vsel %vm522, %v463, 0
      %v593 = vsel %vm522, %v464, 0
      %v596 = vsel %vm522, %v465, 0
      %v599 = vsel %vm522, %v466, 0
      %v602 = vsel %vm522, %v467, 0
      %v605 = vsel %vm522, %v468, 0
      %v608 = vsel %vm522, %v469, 0
      %v611 = vsel %vm522, %v470, 0
      %v614 = vsel %vm522, %v471, 0
      %v617 = vsel %vm522, %v472, 0
      %v620 = vsel %vm522, %v473, 0
      %v623 = vsel %vm522, %v474, 0
      %v626 = vsel %vm522, %v475, 0
      %v629 = vsel %vm522, %v476, 0
      %v632 = vsel %vm522, %v477, 0
      %v635 = vsel %vm522, %v478, 0
      %v638 = vsel %vm522, %v479, 0
      %v641 = vsel %vm522, %v480, 0
      %v644 = vsel %vm522, %v481, 0
      %v647 = vsel %vm522, %v482, 0
      %v650 = vsel %vm522, %v483, 0
      %v653 = vsel %vm522, %v484, 0
      %v656 = vsel %vm522, %v485, 0
      %v659 = vsel %vm522, %v486, 0
      %v662 = vsel %vm522, %v487, 0
      %v665 = vsel %vm522, %v488, 0
      %v668 = vsel %vm522, %v489, 0
      %v671 = vsel %vm522, %v490, 0
      %v674 = vsel %vm522, %v491, 0
      %v677 = vsel %vm522, %v492, 0
      %v680 = vsel %vm522, %v493, 0
      %v683 = vsel %vm522, %v494, 0
      %v686 = vsel %vm522, %v495, 0
      %v689 = vsel %vm522, %v496, 0
      %v692 = vsel %vm522, %v497, 0
      %v695 = vsel %vm522, %v498, 0
      %v698 = vsel %vm522, %v499, 0
      %v701 = vsel %vm522, %v500, 0
      %v704 = vsel %vm522, %v501, 0
      %v707 = vsel %vm522, %v502, 0
      %v710 = vsel %vm522, %v503, 0
      %v713 = vsel %vm522, %v504, 0
      %v716 = vsel %vm522, %v505, 0
      %v719 = vsel %vm522, %v506, 0
      %v722 = vsel %vm522, %v507, 0
      %v725 = vsel %vm522, %v508, 0
      %v728 = vsel %vm522, %v509, 0
      %v731 = vsel %vm522, %v510, 0
      %v734 = vsel %vm522, %v511, 0
      %v737 = vsel %vm522, %v512, 0
      %v740 = vsel %vm522, %v513, 0
      %742 = vmatpush.msra.mxu0 0.0
      %743 = vmatpush.msra.mxu0 0.0
      %744 = vmatpush.msra.mxu0 0.0
      %745 = vmatpush.msra.mxu0 0.0
      %746 = vmatpush.msra.mxu0 0.0
      %747 = vmatpush.msra.mxu0 0.0
      %748 = vmatpush.msra.mxu0 0.0
      %749 = vmatpush.msra.mxu0 0.0
      %750 = vmatpush.msra.mxu0 %v521
      %751 = vmatpush.msra.mxu0 %v520
      %752 = vmatpush.msra.mxu0 %v519
      %753 = vmatpush.msra.mxu0 %v518
      %754 = vmatpush.msra.mxu0 %v517
      %755 = vmatpush.msra.mxu0 %v516
      %756 = vmatpush.msra.mxu0 %v515
      %757 = vmatpush.msra.mxu0 %v514
      %758 = vmatmul.f32.gmra.mxu0 %v524
      %v759 = vpop.f32.mrf.mxu0
      %v760 = vadd.f32 0.0, %v759
      %761 = vmatmul.f32.gmra.mxu0 %v527
      %v762 = vpop.f32.mrf.mxu0
      %v763 = vadd.f32 0.0, %v762
      %764 = vmatmul.f32.gmra.mxu0 %v530
      %v765 = vpop.f32.mrf.mxu0
      %v766 = vadd.f32 0.0, %v765
      %767 = vmatmul.f32.gmra.mxu0 %v533
      %v768 = vpop.f32.mrf.mxu0
      %v769 = vadd.f32 0.0, %v768
      %770 = vmatmul.f32.gmra.mxu0 %v536
      %v771 = vpop.f32.mrf.mxu0
      %v772 = vadd.f32 0.0, %v771
      %773 = vmatmul.f32.gmra.mxu0 %v539
      %v774 = vpop.f32.mrf.mxu0
      %v775 = vadd.f32 0.0, %v774
      %776 = vmatmul.f32.gmra.mxu0 %v542
      %v777 = vpop.f32.mrf.mxu0
      %v778 = vadd.f32 0.0, %v777
      %779 = vmatmul.f32.gmra.mxu0 %v545
      %v780 = vpop.f32.mrf.mxu0
      %v781 = vadd.f32 0.0, %v780
      %782 = vmatmul.f32.gmra.mxu0 %v548
      %v783 = vpop.f32.mrf.mxu0
      %v784 = vadd.f32 0.0, %v783
      %785 = vmatmul.f32.gmra.mxu0 %v551
      %v786 = vpop.f32.mrf.mxu0
      %v787 = vadd.f32 0.0, %v786
      %788 = vmatmul.f32.gmra.mxu0 %v554
      %v789 = vpop.f32.mrf.mxu0
      %v790 = vadd.f32 0.0, %v789
      %791 = vmatmul.f32.gmra.mxu0 %v557
      %v792 = vpop.f32.mrf.mxu0
      %v793 = vadd.f32 0.0, %v792
      %794 = vmatmul.f32.gmra.mxu0 %v560
      %v795 = vpop.f32.mrf.mxu0
      %v796 = vadd.f32 0.0, %v795
      %797 = vmatmul.f32.gmra.mxu0 %v563
      %v798 = vpop.f32.mrf.mxu0
      %v799 = vadd.f32 0.0, %v798
      %800 = vmatmul.f32.gmra.mxu0 %v566
      %v801 = vpop.f32.mrf.mxu0
      %v802 = vadd.f32 0.0, %v801
      %803 = vmatmul.f32.gmra.mxu0 %v569
      %v804 = vpop.f32.mrf.mxu0
      %v805 = vadd.f32 0.0, %v804
      %806 = vmatmul.f32.gmra.mxu0 %v572
      %v807 = vpop.f32.mrf.mxu0
      %v808 = vadd.f32 0.0, %v807
      %809 = vmatmul.f32.gmra.mxu0 %v575
      %v810 = vpop.f32.mrf.mxu0
      %v811 = vadd.f32 0.0, %v810
      %812 = vmatmul.f32.gmra.mxu0 %v578
      %v813 = vpop.f32.mrf.mxu0
      %v814 = vadd.f32 0.0, %v813
      %815 = vmatmul.f32.gmra.mxu0 %v581
      %v816 = vpop.f32.mrf.mxu0
      %v817 = vadd.f32 0.0, %v816
      %818 = vmatmul.f32.gmra.mxu0 %v584
      %v819 = vpop.f32.mrf.mxu0
      %v820 = vadd.f32 0.0, %v819
      %821 = vmatmul.f32.gmra.mxu0 %v587
      %v822 = vpop.f32.mrf.mxu0
      %v823 = vadd.f32 0.0, %v822
      %824 = vmatmul.f32.gmra.mxu0 %v590
      %v825 = vpop.f32.mrf.mxu0
      %v826 = vadd.f32 0.0, %v825
      %827 = vmatmul.f32.gmra.mxu0 %v593
      %v828 = vpop.f32.mrf.mxu0
      %v829 = vadd.f32 0.0, %v828
      %830 = vmatmul.f32.gmra.mxu0 %v596
      %v831 = vpop.f32.mrf.mxu0
      %v832 = vadd.f32 0.0, %v831
      %833 = vmatmul.f32.gmra.mxu0 %v599
      %v834 = vpop.f32.mrf.mxu0
      %v835 = vadd.f32 0.0, %v834
      %836 = vmatmul.f32.gmra.mxu0 %v602
      %v837 = vpop.f32.mrf.mxu0
      %v838 = vadd.f32 0.0, %v837
      %839 = vmatmul.f32.gmra.mxu0 %v605
      %v840 = vpop.f32.mrf.mxu0
      %v841 = vadd.f32 0.0, %v840
      %842 = vmatmul.f32.gmra.mxu0 %v608
      %v843 = vpop.f32.mrf.mxu0
      %v844 = vadd.f32 0.0, %v843
      %845 = vmatmul.f32.gmra.mxu0 %v611
      %v846 = vpop.f32.mrf.mxu0
      %v847 = vadd.f32 0.0, %v846
      %848 = vmatmul.f32.gmra.mxu0 %v614
      %v849 = vpop.f32.mrf.mxu0
      %v850 = vadd.f32 0.0, %v849
      %851 = vmatmul.f32.gmra.mxu0 %v617
      %v852 = vpop.f32.mrf.mxu0
      %v853 = vadd.f32 0.0, %v852
      %854 = vmatmul.f32.gmra.mxu0 %v620
      %v855 = vpop.f32.mrf.mxu0
      %v856 = vadd.f32 0.0, %v855
      %857 = vmatmul.f32.gmra.mxu0 %v623
      %v858 = vpop.f32.mrf.mxu0
      %v859 = vadd.f32 0.0, %v858
      %860 = vmatmul.f32.gmra.mxu0 %v626
      %v861 = vpop.f32.mrf.mxu0
      %v862 = vadd.f32 0.0, %v861
      %863 = vmatmul.f32.gmra.mxu0 %v629
      %v864 = vpop.f32.mrf.mxu0
      %v865 = vadd.f32 0.0, %v864
      %866 = vmatmul.f32.gmra.mxu0 %v632
      %v867 = vpop.f32.mrf.mxu0
      %v868 = vadd.f32 0.0, %v867
      %869 = vmatmul.f32.gmra.mxu0 %v635
      %v870 = vpop.f32.mrf.mxu0
      %v871 = vadd.f32 0.0, %v870
      %872 = vmatmul.f32.gmra.mxu0 %v638
      %v873 = vpop.f32.mrf.mxu0
      %v874 = vadd.f32 0.0, %v873
      %875 = vmatmul.f32.gmra.mxu0 %v641
      %v876 = vpop.f32.mrf.mxu0
      %v877 = vadd.f32 0.0, %v876
      %878 = vmatmul.f32.gmra.mxu0 %v644
      %v879 = vpop.f32.mrf.mxu0
      %v880 = vadd.f32 0.0, %v879
      %881 = vmatmul.f32.gmra.mxu0 %v647
      %v882 = vpop.f32.mrf.mxu0
      %v883 = vadd.f32 0.0, %v882
      %884 = vmatmul.f32.gmra.mxu0 %v650
      %v885 = vpop.f32.mrf.mxu0
      %v886 = vadd.f32 0.0, %v885
      %887 = vmatmul.f32.gmra.mxu0 %v653
      %v888 = vpop.f32.mrf.mxu0
      %v889 = vadd.f32 0.0, %v888
      %890 = vmatmul.f32.gmra.mxu0 %v656
      %v891 = vpop.f32.mrf.mxu0
      %v892 = vadd.f32 0.0, %v891
      %893 = vmatmul.f32.gmra.mxu0 %v659
      %v894 = vpop.f32.mrf.mxu0
      %v895 = vadd.f32 0.0, %v894
      %896 = vmatmul.f32.gmra.mxu0 %v662
      %v897 = vpop.f32.mrf.mxu0
      %v898 = vadd.f32 0.0, %v897
      %899 = vmatmul.f32.gmra.mxu0 %v665
      %v900 = vpop.f32.mrf.mxu0
      %v901 = vadd.f32 0.0, %v900
      %902 = vmatmul.f32.gmra.mxu0 %v668
      %v903 = vpop.f32.mrf.mxu0
      %v904 = vadd.f32 0.0, %v903
      %905 = vmatmul.f32.gmra.mxu0 %v671
      %v906 = vpop.f32.mrf.mxu0
      %v907 = vadd.f32 0.0, %v906
      %908 = vmatmul.f32.gmra.mxu0 %v674
      %v909 = vpop.f32.mrf.mxu0
      %v910 = vadd.f32 0.0, %v909
      %911 = vmatmul.f32.gmra.mxu0 %v677
      %v912 = vpop.f32.mrf.mxu0
      %v913 = vadd.f32 0.0, %v912
      %914 = vmatmul.f32.gmra.mxu0 %v680
      %v915 = vpop.f32.mrf.mxu0
      %v916 = vadd.f32 0.0, %v915
      %917 = vmatmul.f32.gmra.mxu0 %v683
      %v918 = vpop.f32.mrf.mxu0
      %v919 = vadd.f32 0.0, %v918
      %920 = vmatmul.f32.gmra.mxu0 %v686
      %v921 = vpop.f32.mrf.mxu0
      %v922 = vadd.f32 0.0, %v921
      %923 = vmatmul.f32.gmra.mxu0 %v689
      %v924 = vpop.f32.mrf.mxu0
      %v925 = vadd.f32 0.0, %v924
      %926 = vmatmul.f32.gmra.mxu0 %v692
      %v927 = vpop.f32.mrf.mxu0
      %v928 = vadd.f32 0.0, %v927
      %929 = vmatmul.f32.gmra.mxu0 %v695
      %v930 = vpop.f32.mrf.mxu0
      %v931 = vadd.f32 0.0, %v930
      %932 = vmatmul.f32.gmra.mxu0 %v698
      %v933 = vpop.f32.mrf.mxu0
      %v934 = vadd.f32 0.0, %v933
      %935 = vmatmul.f32.gmra.mxu0 %v701
      %v936 = vpop.f32.mrf.mxu0
      %v937 = vadd.f32 0.0, %v936
      %938 = vmatmul.f32.gmra.mxu0 %v704
      %v939 = vpop.f32.mrf.mxu0
      %v940 = vadd.f32 0.0, %v939
      %941 = vmatmul.f32.gmra.mxu0 %v707
      %v942 = vpop.f32.mrf.mxu0
      %v943 = vadd.f32 0.0, %v942
      %944 = vmatmul.f32.gmra.mxu0 %v710
      %v945 = vpop.f32.mrf.mxu0
      %v946 = vadd.f32 0.0, %v945
      %947 = vmatmul.f32.gmra.mxu0 %v713
      %v948 = vpop.f32.mrf.mxu0
      %v949 = vadd.f32 0.0, %v948
      %950 = vmatmul.f32.gmra.mxu0 %v716
      %v951 = vpop.f32.mrf.mxu0
      %v952 = vadd.f32 0.0, %v951
      %953 = vmatmul.f32.gmra.mxu0 %v719
      %v954 = vpop.f32.mrf.mxu0
      %v955 = vadd.f32 0.0, %v954
      %956 = vmatmul.f32.gmra.mxu0 %v722
      %v957 = vpop.f32.mrf.mxu0
      %v958 = vadd.f32 0.0, %v957
      %959 = vmatmul.f32.gmra.mxu0 %v725
      %v960 = vpop.f32.mrf.mxu0
      %v961 = vadd.f32 0.0, %v960
      %962 = vmatmul.f32.gmra.mxu0 %v728
      %v963 = vpop.f32.mrf.mxu0
      %v964 = vadd.f32 0.0, %v963
      %965 = vmatmul.f32.gmra.mxu0 %v731
      %v966 = vpop.f32.mrf.mxu0
      %v967 = vadd.f32 0.0, %v966
      %968 = vmatmul.f32.gmra.mxu0 %v734
      %v969 = vpop.f32.mrf.mxu0
      %v970 = vadd.f32 0.0, %v969
      %971 = vmatmul.f32.gmra.mxu0 %v737
      %v972 = vpop.f32.mrf.mxu0
      %v973 = vadd.f32 0.0, %v972
      %974 = vmatmul.f32.gmra.mxu0 %v740
      %v975 = vpop.f32.mrf.mxu0
      %v976 = vadd.f32 0.0, %v975
      %977 = vdwg.mxu0
      %v978 = vxor.u32 %v760, 2147483648
      %v979 = vxor.u32 %v763, 2147483648
      %v980 = vxor.u32 %v766, 2147483648
      %v981 = vxor.u32 %v769, 2147483648
      %v982 = vxor.u32 %v772, 2147483648
      %v983 = vxor.u32 %v775, 2147483648
      %v984 = vxor.u32 %v778, 2147483648
      %v985 = vxor.u32 %v781, 2147483648
      %v986 = vxor.u32 %v784, 2147483648
      %v987 = vxor.u32 %v787, 2147483648
      %v988 = vxor.u32 %v790, 2147483648
      %v989 = vxor.u32 %v793, 2147483648
      %v990 = vxor.u32 %v796, 2147483648
      %v991 = vxor.u32 %v799, 2147483648
      %v992 = vxor.u32 %v802, 2147483648
      %v993 = vxor.u32 %v805, 2147483648
      %v994 = vxor.u32 %v808, 2147483648
      %v995 = vxor.u32 %v811, 2147483648
      %v996 = vxor.u32 %v814, 2147483648
      %v997 = vxor.u32 %v817, 2147483648
      %v998 = vxor.u32 %v820, 2147483648
      %v999 = vxor.u32 %v823, 2147483648
      %v1000 = vxor.u32 %v826, 2147483648
      %v1001 = vxor.u32 %v829, 2147483648
      %v1002 = vxor.u32 %v832, 2147483648
      %v1003 = vxor.u32 %v835, 2147483648
      %v1004 = vxor.u32 %v838, 2147483648
      %v1005 = vxor.u32 %v841, 2147483648
      %v1006 = vxor.u32 %v844, 2147483648
      %v1007 = vxor.u32 %v847, 2147483648
      %v1008 = vxor.u32 %v850, 2147483648
      %v1009 = vxor.u32 %v853, 2147483648
      %v1010 = vxor.u32 %v856, 2147483648
      %v1011 = vxor.u32 %v859, 2147483648
      %v1012 = vxor.u32 %v862, 2147483648
      %v1013 = vxor.u32 %v865, 2147483648
      %v1014 = vxor.u32 %v868, 2147483648
      %v1015 = vxor.u32 %v871, 2147483648
      %v1016 = vxor.u32 %v874, 2147483648
      %v1017 = vxor.u32 %v877, 2147483648
      %v1018 = vxor.u32 %v880, 2147483648
      %v1019 = vxor.u32 %v883, 2147483648
      %v1020 = vxor.u32 %v886, 2147483648
      %v1021 = vxor.u32 %v889, 2147483648
      %v1022 = vxor.u32 %v892, 2147483648
      %v1023 = vxor.u32 %v895, 2147483648
      %v1024 = vxor.u32 %v898, 2147483648
      %v1025 = vxor.u32 %v901, 2147483648
      %v1026 = vxor.u32 %v904, 2147483648
      %v1027 = vxor.u32 %v907, 2147483648
      %v1028 = vxor.u32 %v910, 2147483648
      %v1029 = vxor.u32 %v913, 2147483648
      %v1030 = vxor.u32 %v916, 2147483648
      %v1031 = vxor.u32 %v919, 2147483648
      %v1032 = vxor.u32 %v922, 2147483648
      %v1033 = vxor.u32 %v925, 2147483648
      %v1034 = vxor.u32 %v928, 2147483648
      %v1035 = vxor.u32 %v931, 2147483648
      %v1036 = vxor.u32 %v934, 2147483648
      %v1037 = vxor.u32 %v937, 2147483648
      %v1038 = vxor.u32 %v940, 2147483648
      %v1039 = vxor.u32 %v943, 2147483648
      %v1040 = vxor.u32 %v946, 2147483648
      %v1041 = vxor.u32 %v949, 2147483648
      %v1042 = vxor.u32 %v952, 2147483648
      %v1043 = vxor.u32 %v955, 2147483648
      %v1044 = vxor.u32 %v958, 2147483648
      %v1045 = vxor.u32 %v961, 2147483648
      %v1046 = vxor.u32 %v964, 2147483648
      %v1047 = vxor.u32 %v967, 2147483648
      %v1048 = vxor.u32 %v970, 2147483648
      %v1049 = vxor.u32 %v973, 2147483648
      %v1050 = vxor.u32 %v976, 2147483648
      %v1051 = vmul.f32 %v978, 1.442695
      %v1052 = vpow.pop %v1051
      %v1053 = vmul.f32 %v979, 1.442695
      %v1054 = vpow.pop %v1053
      %v1055 = vmul.f32 %v980, 1.442695
      %v1056 = vpow.pop %v1055
      %v1057 = vmul.f32 %v981, 1.442695
      %v1058 = vpow.pop %v1057
      %v1059 = vmul.f32 %v982, 1.442695
      %v1060 = vpow.pop %v1059
      %v1061 = vmul.f32 %v983, 1.442695
      %v1062 = vpow.pop %v1061
      %v1063 = vmul.f32 %v984, 1.442695
      %v1064 = vpow.pop %v1063
      %v1065 = vmul.f32 %v985, 1.442695
      %v1066 = vpow.pop %v1065
      %v1067 = vmul.f32 %v986, 1.442695
      %v1068 = vpow.pop %v1067
      %v1069 = vmul.f32 %v987, 1.442695
      %v1070 = vpow.pop %v1069
      %v1071 = vmul.f32 %v988, 1.442695
      %v1072 = vpow.pop %v1071
      %v1073 = vmul.f32 %v989, 1.442695
      %v1074 = vpow.pop %v1073
      %v1075 = vmul.f32 %v990, 1.442695
      %v1076 = vpow.pop %v1075
      %v1077 = vmul.f32 %v991, 1.442695
      %v1078 = vpow.pop %v1077
      %v1079 = vmul.f32 %v992, 1.442695
      %v1080 = vpow.pop %v1079
      %v1081 = vmul.f32 %v993, 1.442695
      %v1082 = vpow.pop %v1081
      %v1083 = vmul.f32 %v994, 1.442695
      %v1084 = vpow.pop %v1083
      %v1085 = vmul.f32 %v995, 1.442695
      %v1086 = vpow.pop %v1085
      %v1087 = vmul.f32 %v996, 1.442695
      %v1088 = vpow.pop %v1087
      %v1089 = vmul.f32 %v997, 1.442695
      %v1090 = vpow.pop %v1089
      %v1091 = vmul.f32 %v998, 1.442695
      %v1092 = vpow.pop %v1091
      %v1093 = vmul.f32 %v999, 1.442695
      %v1094 = vpow.pop %v1093
      %v1095 = vmul.f32 %v1000, 1.442695
      %v1096 = vpow.pop %v1095
      %v1097 = vmul.f32 %v1001, 1.442695
      %v1098 = vpow.pop %v1097
      %v1099 = vmul.f32 %v1002, 1.442695
      %v1100 = vpow.pop %v1099
      %v1101 = vmul.f32 %v1003, 1.442695
      %v1102 = vpow.pop %v1101
      %v1103 = vmul.f32 %v1004, 1.442695
      %v1104 = vpow.pop %v1103
      %v1105 = vmul.f32 %v1005, 1.442695
      %v1106 = vpow.pop %v1105
      %v1107 = vmul.f32 %v1006, 1.442695
      %v1108 = vpow.pop %v1107
      %v1109 = vmul.f32 %v1007, 1.442695
      %v1110 = vpow.pop %v1109
      %v1111 = vmul.f32 %v1008, 1.442695
      %v1112 = vpow.pop %v1111
      %v1113 = vmul.f32 %v1009, 1.442695
      %v1114 = vpow.pop %v1113
      %v1115 = vmul.f32 %v1010, 1.442695
      %v1116 = vpow.pop %v1115
      %v1117 = vmul.f32 %v1011, 1.442695
      %v1118 = vpow.pop %v1117
      %v1119 = vmul.f32 %v1012, 1.442695
      %v1120 = vpow.pop %v1119
      %v1121 = vmul.f32 %v1013, 1.442695
      %v1122 = vpow.pop %v1121
      %v1123 = vmul.f32 %v1014, 1.442695
      %v1124 = vpow.pop %v1123
      %v1125 = vmul.f32 %v1015, 1.442695
      %v1126 = vpow.pop %v1125
      %v1127 = vmul.f32 %v1016, 1.442695
      %v1128 = vpow.pop %v1127
      %v1129 = vmul.f32 %v1017, 1.442695
      %v1130 = vpow.pop %v1129
      %v1131 = vmul.f32 %v1018, 1.442695
      %v1132 = vpow.pop %v1131
      %v1133 = vmul.f32 %v1019, 1.442695
      %v1134 = vpow.pop %v1133
      %v1135 = vmul.f32 %v1020, 1.442695
      %v1136 = vpow.pop %v1135
      %v1137 = vmul.f32 %v1021, 1.442695
      %v1138 = vpow.pop %v1137
      %v1139 = vmul.f32 %v1022, 1.442695
      %v1140 = vpow.pop %v1139
      %v1141 = vmul.f32 %v1023, 1.442695
      %v1142 = vpow.pop %v1141
      %v1143 = vmul.f32 %v1024, 1.442695
      %v1144 = vpow.pop %v1143
      %v1145 = vmul.f32 %v1025, 1.442695
      %v1146 = vpow.pop %v1145
      %v1147 = vmul.f32 %v1026, 1.442695
      %v1148 = vpow.pop %v1147
      %v1149 = vmul.f32 %v1027, 1.442695
      %v1150 = vpow.pop %v1149
      %v1151 = vmul.f32 %v1028, 1.442695
      %v1152 = vpow.pop %v1151
      %v1153 = vmul.f32 %v1029, 1.442695
      %v1154 = vpow.pop %v1153
      %v1155 = vmul.f32 %v1030, 1.442695
      %v1156 = vpow.pop %v1155
      %v1157 = vmul.f32 %v1031, 1.442695
      %v1158 = vpow.pop %v1157
      %v1159 = vmul.f32 %v1032, 1.442695
      %v1160 = vpow.pop %v1159
      %v1161 = vmul.f32 %v1033, 1.442695
      %v1162 = vpow.pop %v1161
      %v1163 = vmul.f32 %v1034, 1.442695
      %v1164 = vpow.pop %v1163
      %v1165 = vmul.f32 %v1035, 1.442695
      %v1166 = vpow.pop %v1165
      %v1167 = vmul.f32 %v1036, 1.442695
      %v1168 = vpow.pop %v1167
      %v1169 = vmul.f32 %v1037, 1.442695
      %v1170 = vpow.pop %v1169
      %v1171 = vmul.f32 %v1038, 1.442695
      %v1172 = vpow.pop %v1171
      %v1173 = vmul.f32 %v1039, 1.442695
      %v1174 = vpow.pop %v1173
      %v1175 = vmul.f32 %v1040, 1.442695
      %v1176 = vpow.pop %v1175
      %v1177 = vmul.f32 %v1041, 1.442695
      %v1178 = vpow.pop %v1177
      %v1179 = vmul.f32 %v1042, 1.442695
      %v1180 = vpow.pop %v1179
      %v1181 = vmul.f32 %v1043, 1.442695
      %v1182 = vpow.pop %v1181
      %v1183 = vmul.f32 %v1044, 1.442695
      %v1184 = vpow.pop %v1183
      %v1185 = vmul.f32 %v1045, 1.442695
      %v1186 = vpow.pop %v1185
      %v1187 = vmul.f32 %v1046, 1.442695
      %v1188 = vpow.pop %v1187
      %v1189 = vmul.f32 %v1047, 1.442695
      %v1190 = vpow.pop %v1189
      %v1191 = vmul.f32 %v1048, 1.442695
      %v1192 = vpow.pop %v1191
      %v1193 = vmul.f32 %v1049, 1.442695
      %v1194 = vpow.pop %v1193
      %v1195 = vmul.f32 %v1050, 1.442695
      %v1196 = vpow.pop %v1195
      %v1197 = vadd.f32 %v1052, 1.0
      %v1198 = vadd.f32 %v1054, 1.0
      %v1199 = vadd.f32 %v1056, 1.0
      %v1200 = vadd.f32 %v1058, 1.0
      %v1201 = vadd.f32 %v1060, 1.0
      %v1202 = vadd.f32 %v1062, 1.0
      %v1203 = vadd.f32 %v1064, 1.0
      %v1204 = vadd.f32 %v1066, 1.0
      %v1205 = vadd.f32 %v1068, 1.0
      %v1206 = vadd.f32 %v1070, 1.0
      %v1207 = vadd.f32 %v1072, 1.0
      %v1208 = vadd.f32 %v1074, 1.0
      %v1209 = vadd.f32 %v1076, 1.0
      %v1210 = vadd.f32 %v1078, 1.0
      %v1211 = vadd.f32 %v1080, 1.0
      %v1212 = vadd.f32 %v1082, 1.0
      %v1213 = vadd.f32 %v1084, 1.0
      %v1214 = vadd.f32 %v1086, 1.0
      %v1215 = vadd.f32 %v1088, 1.0
      %v1216 = vadd.f32 %v1090, 1.0
      %v1217 = vadd.f32 %v1092, 1.0
      %v1218 = vadd.f32 %v1094, 1.0
      %v1219 = vadd.f32 %v1096, 1.0
      %v1220 = vadd.f32 %v1098, 1.0
      %v1221 = vadd.f32 %v1100, 1.0
      %v1222 = vadd.f32 %v1102, 1.0
      %v1223 = vadd.f32 %v1104, 1.0
      %v1224 = vadd.f32 %v1106, 1.0
      %v1225 = vadd.f32 %v1108, 1.0
      %v1226 = vadd.f32 %v1110, 1.0
      %v1227 = vadd.f32 %v1112, 1.0
      %v1228 = vadd.f32 %v1114, 1.0
      %v1229 = vadd.f32 %v1116, 1.0
      %v1230 = vadd.f32 %v1118, 1.0
      %v1231 = vadd.f32 %v1120, 1.0
      %v1232 = vadd.f32 %v1122, 1.0
      %v1233 = vadd.f32 %v1124, 1.0
      %v1234 = vadd.f32 %v1126, 1.0
      %v1235 = vadd.f32 %v1128, 1.0
      %v1236 = vadd.f32 %v1130, 1.0
      %v1237 = vadd.f32 %v1132, 1.0
      %v1238 = vadd.f32 %v1134, 1.0
      %v1239 = vadd.f32 %v1136, 1.0
      %v1240 = vadd.f32 %v1138, 1.0
      %v1241 = vadd.f32 %v1140, 1.0
      %v1242 = vadd.f32 %v1142, 1.0
      %v1243 = vadd.f32 %v1144, 1.0
      %v1244 = vadd.f32 %v1146, 1.0
      %v1245 = vadd.f32 %v1148, 1.0
      %v1246 = vadd.f32 %v1150, 1.0
      %v1247 = vadd.f32 %v1152, 1.0
      %v1248 = vadd.f32 %v1154, 1.0
      %v1249 = vadd.f32 %v1156, 1.0
      %v1250 = vadd.f32 %v1158, 1.0
      %v1251 = vadd.f32 %v1160, 1.0
      %v1252 = vadd.f32 %v1162, 1.0
      %v1253 = vadd.f32 %v1164, 1.0
      %v1254 = vadd.f32 %v1166, 1.0
      %v1255 = vadd.f32 %v1168, 1.0
      %v1256 = vadd.f32 %v1170, 1.0
      %v1257 = vadd.f32 %v1172, 1.0
      %v1258 = vadd.f32 %v1174, 1.0
      %v1259 = vadd.f32 %v1176, 1.0
      %v1260 = vadd.f32 %v1178, 1.0
      %v1261 = vadd.f32 %v1180, 1.0
      %v1262 = vadd.f32 %v1182, 1.0
      %v1263 = vadd.f32 %v1184, 1.0
      %v1264 = vadd.f32 %v1186, 1.0
      %v1265 = vadd.f32 %v1188, 1.0
      %v1266 = vadd.f32 %v1190, 1.0
      %v1267 = vadd.f32 %v1192, 1.0
      %v1268 = vadd.f32 %v1194, 1.0
      %v1269 = vadd.f32 %v1196, 1.0
      %v1270 = vrcp.pop %v1197
      %v1271 = vmul.f32 %v1197, %v1270
      %v1272 = vsub.f32 1.0, %v1271
      %v1273 = vmul.f32 %v1270, %v1272
      %v1274 = vadd.f32 %v1270, %v1273
      %vm1275 = vweird.f32 %v1197
      %vm1276 = vweird.f32 %v1270
      %vm1277 = vmor %vm1275, %vm1276
      %v1278 = vsel %vm1277, %v1270, %v1274
      %v1279 = vand.u32 2147483647, %v1197
      %vm1280 = vcmp.eq.f32.partialorder %v1279, 8.507059e+37
      %v1281 = vand.u32 %v1197, 2147483648
      %v1282 = vor.u32 1.1754944e-38, %v1281
      %v1283 = vsel %vm1280, %v1282, %v1278
      %v1284 = vmul.f32 1.0, %v1283
      %v1285 = vrcp.pop %v1198
      %v1286 = vmul.f32 %v1198, %v1285
      %v1287 = vsub.f32 1.0, %v1286
      %v1288 = vmul.f32 %v1285, %v1287
      %v1289 = vadd.f32 %v1285, %v1288
      %vm1290 = vweird.f32 %v1198
      %vm1291 = vweird.f32 %v1285
      %vm1292 = vmor %vm1290, %vm1291
      %v1293 = vsel %vm1292, %v1285, %v1289
      %v1294 = vand.u32 2147483647, %v1198
      %vm1295 = vcmp.eq.f32.partialorder %v1294, 8.507059e+37
      %v1296 = vand.u32 %v1198, 2147483648
      %v1297 = vor.u32 1.1754944e-38, %v1296
      %v1298 = vsel %vm1295, %v1297, %v1293
      %v1299 = vmul.f32 1.0, %v1298
      %v1300 = vrcp.pop %v1199
      %v1301 = vmul.f32 %v1199, %v1300
      %v1302 = vsub.f32 1.0, %v1301
      %v1303 = vmul.f32 %v1300, %v1302
      %v1304 = vadd.f32 %v1300, %v1303
      %vm1305 = vweird.f32 %v1199
      %vm1306 = vweird.f32 %v1300
      %vm1307 = vmor %vm1305, %vm1306
      %v1308 = vsel %vm1307, %v1300, %v1304
      %v1309 = vand.u32 2147483647, %v1199
      %vm1310 = vcmp.eq.f32.partialorder %v1309, 8.507059e+37
      %v1311 = vand.u32 %v1199, 2147483648
      %v1312 = vor.u32 1.1754944e-38, %v1311
      %v1313 = vsel %vm1310, %v1312, %v1308
      %v1314 = vmul.f32 1.0, %v1313
      %v1315 = vrcp.pop %v1200
      %v1316 = vmul.f32 %v1200, %v1315
      %v1317 = vsub.f32 1.0, %v1316
      %v1318 = vmul.f32 %v1315, %v1317
      %v1319 = vadd.f32 %v1315, %v1318
      %vm1320 = vweird.f32 %v1200
      %vm1321 = vweird.f32 %v1315
      %vm1322 = vmor %vm1320, %vm1321
      %v1323 = vsel %vm1322, %v1315, %v1319
      %v1324 = vand.u32 2147483647, %v1200
      %vm1325 = vcmp.eq.f32.partialorder %v1324, 8.507059e+37
      %v1326 = vand.u32 %v1200, 2147483648
      %v1327 = vor.u32 1.1754944e-38, %v1326
      %v1328 = vsel %vm1325, %v1327, %v1323
      %v1329 = vmul.f32 1.0, %v1328
      %v1330 = vrcp.pop %v1201
      %v1331 = vmul.f32 %v1201, %v1330
      %v1332 = vsub.f32 1.0, %v1331
      %v1333 = vmul.f32 %v1330, %v1332
      %v1334 = vadd.f32 %v1330, %v1333
      %vm1335 = vweird.f32 %v1201
      %vm1336 = vweird.f32 %v1330
      %vm1337 = vmor %vm1335, %vm1336
      %v1338 = vsel %vm1337, %v1330, %v1334
      %v1339 = vand.u32 2147483647, %v1201
      %vm1340 = vcmp.eq.f32.partialorder %v1339, 8.507059e+37
      %v1341 = vand.u32 %v1201, 2147483648
      %v1342 = vor.u32 1.1754944e-38, %v1341
      %v1343 = vsel %vm1340, %v1342, %v1338
      %v1344 = vmul.f32 1.0, %v1343
      %v1345 = vrcp.pop %v1202
      %v1346 = vmul.f32 %v1202, %v1345
      %v1347 = vsub.f32 1.0, %v1346
      %v1348 = vmul.f32 %v1345, %v1347
      %v1349 = vadd.f32 %v1345, %v1348
      %vm1350 = vweird.f32 %v1202
      %vm1351 = vweird.f32 %v1345
      %vm1352 = vmor %vm1350, %vm1351
      %v1353 = vsel %vm1352, %v1345, %v1349
      %v1354 = vand.u32 2147483647, %v1202
      %vm1355 = vcmp.eq.f32.partialorder %v1354, 8.507059e+37
      %v1356 = vand.u32 %v1202, 2147483648
      %v1357 = vor.u32 1.1754944e-38, %v1356
      %v1358 = vsel %vm1355, %v1357, %v1353
      %v1359 = vmul.f32 1.0, %v1358
      %v1360 = vrcp.pop %v1203
      %v1361 = vmul.f32 %v1203, %v1360
      %v1362 = vsub.f32 1.0, %v1361
      %v1363 = vmul.f32 %v1360, %v1362
      %v1364 = vadd.f32 %v1360, %v1363
      %vm1365 = vweird.f32 %v1203
      %vm1366 = vweird.f32 %v1360
      %vm1367 = vmor %vm1365, %vm1366
      %v1368 = vsel %vm1367, %v1360, %v1364
      %v1369 = vand.u32 2147483647, %v1203
      %vm1370 = vcmp.eq.f32.partialorder %v1369, 8.507059e+37
      %v1371 = vand.u32 %v1203, 2147483648
      %v1372 = vor.u32 1.1754944e-38, %v1371
      %v1373 = vsel %vm1370, %v1372, %v1368
      %v1374 = vmul.f32 1.0, %v1373
      %v1375 = vrcp.pop %v1204
      %v1376 = vmul.f32 %v1204, %v1375
      %v1377 = vsub.f32 1.0, %v1376
      %v1378 = vmul.f32 %v1375, %v1377
      %v1379 = vadd.f32 %v1375, %v1378
      %vm1380 = vweird.f32 %v1204
      %vm1381 = vweird.f32 %v1375
      %vm1382 = vmor %vm1380, %vm1381
      %v1383 = vsel %vm1382, %v1375, %v1379
      %v1384 = vand.u32 2147483647, %v1204
      %vm1385 = vcmp.eq.f32.partialorder %v1384, 8.507059e+37
      %v1386 = vand.u32 %v1204, 2147483648
      %v1387 = vor.u32 1.1754944e-38, %v1386
      %v1388 = vsel %vm1385, %v1387, %v1383
      %v1389 = vmul.f32 1.0, %v1388
      %v1390 = vrcp.pop %v1205
      %v1391 = vmul.f32 %v1205, %v1390
      %v1392 = vsub.f32 1.0, %v1391
      %v1393 = vmul.f32 %v1390, %v1392
      %v1394 = vadd.f32 %v1390, %v1393
      %vm1395 = vweird.f32 %v1205
      %vm1396 = vweird.f32 %v1390
      %vm1397 = vmor %vm1395, %vm1396
      %v1398 = vsel %vm1397, %v1390, %v1394
      %v1399 = vand.u32 2147483647, %v1205
      %vm1400 = vcmp.eq.f32.partialorder %v1399, 8.507059e+37
      %v1401 = vand.u32 %v1205, 2147483648
      %v1402 = vor.u32 1.1754944e-38, %v1401
      %v1403 = vsel %vm1400, %v1402, %v1398
      %v1404 = vmul.f32 1.0, %v1403
      %v1405 = vrcp.pop %v1206
      %v1406 = vmul.f32 %v1206, %v1405
      %v1407 = vsub.f32 1.0, %v1406
      %v1408 = vmul.f32 %v1405, %v1407
      %v1409 = vadd.f32 %v1405, %v1408
      %vm1410 = vweird.f32 %v1206
      %vm1411 = vweird.f32 %v1405
      %vm1412 = vmor %vm1410, %vm1411
      %v1413 = vsel %vm1412, %v1405, %v1409
      %v1414 = vand.u32 2147483647, %v1206
      %vm1415 = vcmp.eq.f32.partialorder %v1414, 8.507059e+37
      %v1416 = vand.u32 %v1206, 2147483648
      %v1417 = vor.u32 1.1754944e-38, %v1416
      %v1418 = vsel %vm1415, %v1417, %v1413
      %v1419 = vmul.f32 1.0, %v1418
      %v1420 = vrcp.pop %v1207
      %v1421 = vmul.f32 %v1207, %v1420
      %v1422 = vsub.f32 1.0, %v1421
      %v1423 = vmul.f32 %v1420, %v1422
      %v1424 = vadd.f32 %v1420, %v1423
      %vm1425 = vweird.f32 %v1207
      %vm1426 = vweird.f32 %v1420
      %vm1427 = vmor %vm1425, %vm1426
      %v1428 = vsel %vm1427, %v1420, %v1424
      %v1429 = vand.u32 2147483647, %v1207
      %vm1430 = vcmp.eq.f32.partialorder %v1429, 8.507059e+37
      %v1431 = vand.u32 %v1207, 2147483648
      %v1432 = vor.u32 1.1754944e-38, %v1431
      %v1433 = vsel %vm1430, %v1432, %v1428
      %v1434 = vmul.f32 1.0, %v1433
      %v1435 = vrcp.pop %v1208
      %v1436 = vmul.f32 %v1208, %v1435
      %v1437 = vsub.f32 1.0, %v1436
      %v1438 = vmul.f32 %v1435, %v1437
      %v1439 = vadd.f32 %v1435, %v1438
      %vm1440 = vweird.f32 %v1208
      %vm1441 = vweird.f32 %v1435
      %vm1442 = vmor %vm1440, %vm1441
      %v1443 = vsel %vm1442, %v1435, %v1439
      %v1444 = vand.u32 2147483647, %v1208
      %vm1445 = vcmp.eq.f32.partialorder %v1444, 8.507059e+37
      %v1446 = vand.u32 %v1208, 2147483648
      %v1447 = vor.u32 1.1754944e-38, %v1446
      %v1448 = vsel %vm1445, %v1447, %v1443
      %v1449 = vmul.f32 1.0, %v1448
      %v1450 = vrcp.pop %v1209
      %v1451 = vmul.f32 %v1209, %v1450
      %v1452 = vsub.f32 1.0, %v1451
      %v1453 = vmul.f32 %v1450, %v1452
      %v1454 = vadd.f32 %v1450, %v1453
      %vm1455 = vweird.f32 %v1209
      %vm1456 = vweird.f32 %v1450
      %vm1457 = vmor %vm1455, %vm1456
      %v1458 = vsel %vm1457, %v1450, %v1454
      %v1459 = vand.u32 2147483647, %v1209
      %vm1460 = vcmp.eq.f32.partialorder %v1459, 8.507059e+37
      %v1461 = vand.u32 %v1209, 2147483648
      %v1462 = vor.u32 1.1754944e-38, %v1461
      %v1463 = vsel %vm1460, %v1462, %v1458
      %v1464 = vmul.f32 1.0, %v1463
      %v1465 = vrcp.pop %v1210
      %v1466 = vmul.f32 %v1210, %v1465
      %v1467 = vsub.f32 1.0, %v1466
      %v1468 = vmul.f32 %v1465, %v1467
      %v1469 = vadd.f32 %v1465, %v1468
      %vm1470 = vweird.f32 %v1210
      %vm1471 = vweird.f32 %v1465
      %vm1472 = vmor %vm1470, %vm1471
      %v1473 = vsel %vm1472, %v1465, %v1469
      %v1474 = vand.u32 2147483647, %v1210
      %vm1475 = vcmp.eq.f32.partialorder %v1474, 8.507059e+37
      %v1476 = vand.u32 %v1210, 2147483648
      %v1477 = vor.u32 1.1754944e-38, %v1476
      %v1478 = vsel %vm1475, %v1477, %v1473
      %v1479 = vmul.f32 1.0, %v1478
      %v1480 = vrcp.pop %v1211
      %v1481 = vmul.f32 %v1211, %v1480
      %v1482 = vsub.f32 1.0, %v1481
      %v1483 = vmul.f32 %v1480, %v1482
      %v1484 = vadd.f32 %v1480, %v1483
      %vm1485 = vweird.f32 %v1211
      %vm1486 = vweird.f32 %v1480
      %vm1487 = vmor %vm1485, %vm1486
      %v1488 = vsel %vm1487, %v1480, %v1484
      %v1489 = vand.u32 2147483647, %v1211
      %vm1490 = vcmp.eq.f32.partialorder %v1489, 8.507059e+37
      %v1491 = vand.u32 %v1211, 2147483648
      %v1492 = vor.u32 1.1754944e-38, %v1491
      %v1493 = vsel %vm1490, %v1492, %v1488
      %v1494 = vmul.f32 1.0, %v1493
      %v1495 = vrcp.pop %v1212
      %v1496 = vmul.f32 %v1212, %v1495
      %v1497 = vsub.f32 1.0, %v1496
      %v1498 = vmul.f32 %v1495, %v1497
      %v1499 = vadd.f32 %v1495, %v1498
      %vm1500 = vweird.f32 %v1212
      %vm1501 = vweird.f32 %v1495
      %vm1502 = vmor %vm1500, %vm1501
      %v1503 = vsel %vm1502, %v1495, %v1499
      %v1504 = vand.u32 2147483647, %v1212
      %vm1505 = vcmp.eq.f32.partialorder %v1504, 8.507059e+37
      %v1506 = vand.u32 %v1212, 2147483648
      %v1507 = vor.u32 1.1754944e-38, %v1506
      %v1508 = vsel %vm1505, %v1507, %v1503
      %v1509 = vmul.f32 1.0, %v1508
      %v1510 = vrcp.pop %v1213
      %v1511 = vmul.f32 %v1213, %v1510
      %v1512 = vsub.f32 1.0, %v1511
      %v1513 = vmul.f32 %v1510, %v1512
      %v1514 = vadd.f32 %v1510, %v1513
      %vm1515 = vweird.f32 %v1213
      %vm1516 = vweird.f32 %v1510
      %vm1517 = vmor %vm1515, %vm1516
      %v1518 = vsel %vm1517, %v1510, %v1514
      %v1519 = vand.u32 2147483647, %v1213
      %vm1520 = vcmp.eq.f32.partialorder %v1519, 8.507059e+37
      %v1521 = vand.u32 %v1213, 2147483648
      %v1522 = vor.u32 1.1754944e-38, %v1521
      %v1523 = vsel %vm1520, %v1522, %v1518
      %v1524 = vmul.f32 1.0, %v1523
      %v1525 = vrcp.pop %v1214
      %v1526 = vmul.f32 %v1214, %v1525
      %v1527 = vsub.f32 1.0, %v1526
      %v1528 = vmul.f32 %v1525, %v1527
      %v1529 = vadd.f32 %v1525, %v1528
      %vm1530 = vweird.f32 %v1214
      %vm1531 = vweird.f32 %v1525
      %vm1532 = vmor %vm1530, %vm1531
      %v1533 = vsel %vm1532, %v1525, %v1529
      %v1534 = vand.u32 2147483647, %v1214
      %vm1535 = vcmp.eq.f32.partialorder %v1534, 8.507059e+37
      %v1536 = vand.u32 %v1214, 2147483648
      %v1537 = vor.u32 1.1754944e-38, %v1536
      %v1538 = vsel %vm1535, %v1537, %v1533
      %v1539 = vmul.f32 1.0, %v1538
      %v1540 = vrcp.pop %v1215
      %v1541 = vmul.f32 %v1215, %v1540
      %v1542 = vsub.f32 1.0, %v1541
      %v1543 = vmul.f32 %v1540, %v1542
      %v1544 = vadd.f32 %v1540, %v1543
      %vm1545 = vweird.f32 %v1215
      %vm1546 = vweird.f32 %v1540
      %vm1547 = vmor %vm1545, %vm1546
      %v1548 = vsel %vm1547, %v1540, %v1544
      %v1549 = vand.u32 2147483647, %v1215
      %vm1550 = vcmp.eq.f32.partialorder %v1549, 8.507059e+37
      %v1551 = vand.u32 %v1215, 2147483648
      %v1552 = vor.u32 1.1754944e-38, %v1551
      %v1553 = vsel %vm1550, %v1552, %v1548
      %v1554 = vmul.f32 1.0, %v1553
      %v1555 = vrcp.pop %v1216
      %v1556 = vmul.f32 %v1216, %v1555
      %v1557 = vsub.f32 1.0, %v1556
      %v1558 = vmul.f32 %v1555, %v1557
      %v1559 = vadd.f32 %v1555, %v1558
      %vm1560 = vweird.f32 %v1216
      %vm1561 = vweird.f32 %v1555
      %vm1562 = vmor %vm1560, %vm1561
      %v1563 = vsel %vm1562, %v1555, %v1559
      %v1564 = vand.u32 2147483647, %v1216
      %vm1565 = vcmp.eq.f32.partialorder %v1564, 8.507059e+37
      %v1566 = vand.u32 %v1216, 2147483648
      %v1567 = vor.u32 1.1754944e-38, %v1566
      %v1568 = vsel %vm1565, %v1567, %v1563
      %v1569 = vmul.f32 1.0, %v1568
      %v1570 = vrcp.pop %v1217
      %v1571 = vmul.f32 %v1217, %v1570
      %v1572 = vsub.f32 1.0, %v1571
      %v1573 = vmul.f32 %v1570, %v1572
      %v1574 = vadd.f32 %v1570, %v1573
      %vm1575 = vweird.f32 %v1217
      %vm1576 = vweird.f32 %v1570
      %vm1577 = vmor %vm1575, %vm1576
      %v1578 = vsel %vm1577, %v1570, %v1574
      %v1579 = vand.u32 2147483647, %v1217
      %vm1580 = vcmp.eq.f32.partialorder %v1579, 8.507059e+37
      %v1581 = vand.u32 %v1217, 2147483648
      %v1582 = vor.u32 1.1754944e-38, %v1581
      %v1583 = vsel %vm1580, %v1582, %v1578
      %v1584 = vmul.f32 1.0, %v1583
      %v1585 = vrcp.pop %v1218
      %v1586 = vmul.f32 %v1218, %v1585
      %v1587 = vsub.f32 1.0, %v1586
      %v1588 = vmul.f32 %v1585, %v1587
      %v1589 = vadd.f32 %v1585, %v1588
      %vm1590 = vweird.f32 %v1218
      %vm1591 = vweird.f32 %v1585
      %vm1592 = vmor %vm1590, %vm1591
      %v1593 = vsel %vm1592, %v1585, %v1589
      %v1594 = vand.u32 2147483647, %v1218
      %vm1595 = vcmp.eq.f32.partialorder %v1594, 8.507059e+37
      %v1596 = vand.u32 %v1218, 2147483648
      %v1597 = vor.u32 1.1754944e-38, %v1596
      %v1598 = vsel %vm1595, %v1597, %v1593
      %v1599 = vmul.f32 1.0, %v1598
      %v1600 = vrcp.pop %v1219
      %v1601 = vmul.f32 %v1219, %v1600
      %v1602 = vsub.f32 1.0, %v1601
      %v1603 = vmul.f32 %v1600, %v1602
      %v1604 = vadd.f32 %v1600, %v1603
      %vm1605 = vweird.f32 %v1219
      %vm1606 = vweird.f32 %v1600
      %vm1607 = vmor %vm1605, %vm1606
      %v1608 = vsel %vm1607, %v1600, %v1604
      %v1609 = vand.u32 2147483647, %v1219
      %vm1610 = vcmp.eq.f32.partialorder %v1609, 8.507059e+37
      %v1611 = vand.u32 %v1219, 2147483648
      %v1612 = vor.u32 1.1754944e-38, %v1611
      %v1613 = vsel %vm1610, %v1612, %v1608
      %v1614 = vmul.f32 1.0, %v1613
      %v1615 = vrcp.pop %v1220
      %v1616 = vmul.f32 %v1220, %v1615
      %v1617 = vsub.f32 1.0, %v1616
      %v1618 = vmul.f32 %v1615, %v1617
      %v1619 = vadd.f32 %v1615, %v1618
      %vm1620 = vweird.f32 %v1220
      %vm1621 = vweird.f32 %v1615
      %vm1622 = vmor %vm1620, %vm1621
      %v1623 = vsel %vm1622, %v1615, %v1619
      %v1624 = vand.u32 2147483647, %v1220
      %vm1625 = vcmp.eq.f32.partialorder %v1624, 8.507059e+37
      %v1626 = vand.u32 %v1220, 2147483648
      %v1627 = vor.u32 1.1754944e-38, %v1626
      %v1628 = vsel %vm1625, %v1627, %v1623
      %v1629 = vmul.f32 1.0, %v1628
      %v1630 = vrcp.pop %v1221
      %v1631 = vmul.f32 %v1221, %v1630
      %v1632 = vsub.f32 1.0, %v1631
      %v1633 = vmul.f32 %v1630, %v1632
      %v1634 = vadd.f32 %v1630, %v1633
      %vm1635 = vweird.f32 %v1221
      %vm1636 = vweird.f32 %v1630
      %vm1637 = vmor %vm1635, %vm1636
      %v1638 = vsel %vm1637, %v1630, %v1634
      %v1639 = vand.u32 2147483647, %v1221
      %vm1640 = vcmp.eq.f32.partialorder %v1639, 8.507059e+37
      %v1641 = vand.u32 %v1221, 2147483648
      %v1642 = vor.u32 1.1754944e-38, %v1641
      %v1643 = vsel %vm1640, %v1642, %v1638
      %v1644 = vmul.f32 1.0, %v1643
      %v1645 = vrcp.pop %v1222
      %v1646 = vmul.f32 %v1222, %v1645
      %v1647 = vsub.f32 1.0, %v1646
      %v1648 = vmul.f32 %v1645, %v1647
      %v1649 = vadd.f32 %v1645, %v1648
      %vm1650 = vweird.f32 %v1222
      %vm1651 = vweird.f32 %v1645
      %vm1652 = vmor %vm1650, %vm1651
      %v1653 = vsel %vm1652, %v1645, %v1649
      %v1654 = vand.u32 2147483647, %v1222
      %vm1655 = vcmp.eq.f32.partialorder %v1654, 8.507059e+37
      %v1656 = vand.u32 %v1222, 2147483648
      %v1657 = vor.u32 1.1754944e-38, %v1656
      %v1658 = vsel %vm1655, %v1657, %v1653
      %v1659 = vmul.f32 1.0, %v1658
      %v1660 = vrcp.pop %v1223
      %v1661 = vmul.f32 %v1223, %v1660
      %v1662 = vsub.f32 1.0, %v1661
      %v1663 = vmul.f32 %v1660, %v1662
      %v1664 = vadd.f32 %v1660, %v1663
      %vm1665 = vweird.f32 %v1223
      %vm1666 = vweird.f32 %v1660
      %vm1667 = vmor %vm1665, %vm1666
      %v1668 = vsel %vm1667, %v1660, %v1664
      %v1669 = vand.u32 2147483647, %v1223
      %vm1670 = vcmp.eq.f32.partialorder %v1669, 8.507059e+37
      %v1671 = vand.u32 %v1223, 2147483648
      %v1672 = vor.u32 1.1754944e-38, %v1671
      %v1673 = vsel %vm1670, %v1672, %v1668
      %v1674 = vmul.f32 1.0, %v1673
      %v1675 = vrcp.pop %v1224
      %v1676 = vmul.f32 %v1224, %v1675
      %v1677 = vsub.f32 1.0, %v1676
      %v1678 = vmul.f32 %v1675, %v1677
      %v1679 = vadd.f32 %v1675, %v1678
      %vm1680 = vweird.f32 %v1224
      %vm1681 = vweird.f32 %v1675
      %vm1682 = vmor %vm1680, %vm1681
      %v1683 = vsel %vm1682, %v1675, %v1679
      %v1684 = vand.u32 2147483647, %v1224
      %vm1685 = vcmp.eq.f32.partialorder %v1684, 8.507059e+37
      %v1686 = vand.u32 %v1224, 2147483648
      %v1687 = vor.u32 1.1754944e-38, %v1686
      %v1688 = vsel %vm1685, %v1687, %v1683
      %v1689 = vmul.f32 1.0, %v1688
      %v1690 = vrcp.pop %v1225
      %v1691 = vmul.f32 %v1225, %v1690
      %v1692 = vsub.f32 1.0, %v1691
      %v1693 = vmul.f32 %v1690, %v1692
      %v1694 = vadd.f32 %v1690, %v1693
      %vm1695 = vweird.f32 %v1225
      %vm1696 = vweird.f32 %v1690
      %vm1697 = vmor %vm1695, %vm1696
      %v1698 = vsel %vm1697, %v1690, %v1694
      %v1699 = vand.u32 2147483647, %v1225
      %vm1700 = vcmp.eq.f32.partialorder %v1699, 8.507059e+37
      %v1701 = vand.u32 %v1225, 2147483648
      %v1702 = vor.u32 1.1754944e-38, %v1701
      %v1703 = vsel %vm1700, %v1702, %v1698
      %v1704 = vmul.f32 1.0, %v1703
      %v1705 = vrcp.pop %v1226
      %v1706 = vmul.f32 %v1226, %v1705
      %v1707 = vsub.f32 1.0, %v1706
      %v1708 = vmul.f32 %v1705, %v1707
      %v1709 = vadd.f32 %v1705, %v1708
      %vm1710 = vweird.f32 %v1226
      %vm1711 = vweird.f32 %v1705
      %vm1712 = vmor %vm1710, %vm1711
      %v1713 = vsel %vm1712, %v1705, %v1709
      %v1714 = vand.u32 2147483647, %v1226
      %vm1715 = vcmp.eq.f32.partialorder %v1714, 8.507059e+37
      %v1716 = vand.u32 %v1226, 2147483648
      %v1717 = vor.u32 1.1754944e-38, %v1716
      %v1718 = vsel %vm1715, %v1717, %v1713
      %v1719 = vmul.f32 1.0, %v1718
      %v1720 = vrcp.pop %v1227
      %v1721 = vmul.f32 %v1227, %v1720
      %v1722 = vsub.f32 1.0, %v1721
      %v1723 = vmul.f32 %v1720, %v1722
      %v1724 = vadd.f32 %v1720, %v1723
      %vm1725 = vweird.f32 %v1227
      %vm1726 = vweird.f32 %v1720
      %vm1727 = vmor %vm1725, %vm1726
      %v1728 = vsel %vm1727, %v1720, %v1724
      %v1729 = vand.u32 2147483647, %v1227
      %vm1730 = vcmp.eq.f32.partialorder %v1729, 8.507059e+37
      %v1731 = vand.u32 %v1227, 2147483648
      %v1732 = vor.u32 1.1754944e-38, %v1731
      %v1733 = vsel %vm1730, %v1732, %v1728
      %v1734 = vmul.f32 1.0, %v1733
      %v1735 = vrcp.pop %v1228
      %v1736 = vmul.f32 %v1228, %v1735
      %v1737 = vsub.f32 1.0, %v1736
      %v1738 = vmul.f32 %v1735, %v1737
      %v1739 = vadd.f32 %v1735, %v1738
      %vm1740 = vweird.f32 %v1228
      %vm1741 = vweird.f32 %v1735
      %vm1742 = vmor %vm1740, %vm1741
      %v1743 = vsel %vm1742, %v1735, %v1739
      %v1744 = vand.u32 2147483647, %v1228
      %vm1745 = vcmp.eq.f32.partialorder %v1744, 8.507059e+37
      %v1746 = vand.u32 %v1228, 2147483648
      %v1747 = vor.u32 1.1754944e-38, %v1746
      %v1748 = vsel %vm1745, %v1747, %v1743
      %v1749 = vmul.f32 1.0, %v1748
      %v1750 = vrcp.pop %v1229
      %v1751 = vmul.f32 %v1229, %v1750
      %v1752 = vsub.f32 1.0, %v1751
      %v1753 = vmul.f32 %v1750, %v1752
      %v1754 = vadd.f32 %v1750, %v1753
      %vm1755 = vweird.f32 %v1229
      %vm1756 = vweird.f32 %v1750
      %vm1757 = vmor %vm1755, %vm1756
      %v1758 = vsel %vm1757, %v1750, %v1754
      %v1759 = vand.u32 2147483647, %v1229
      %vm1760 = vcmp.eq.f32.partialorder %v1759, 8.507059e+37
      %v1761 = vand.u32 %v1229, 2147483648
      %v1762 = vor.u32 1.1754944e-38, %v1761
      %v1763 = vsel %vm1760, %v1762, %v1758
      %v1764 = vmul.f32 1.0, %v1763
      %v1765 = vrcp.pop %v1230
      %v1766 = vmul.f32 %v1230, %v1765
      %v1767 = vsub.f32 1.0, %v1766
      %v1768 = vmul.f32 %v1765, %v1767
      %v1769 = vadd.f32 %v1765, %v1768
      %vm1770 = vweird.f32 %v1230
      %vm1771 = vweird.f32 %v1765
      %vm1772 = vmor %vm1770, %vm1771
      %v1773 = vsel %vm1772, %v1765, %v1769
      %v1774 = vand.u32 2147483647, %v1230
      %vm1775 = vcmp.eq.f32.partialorder %v1774, 8.507059e+37
      %v1776 = vand.u32 %v1230, 2147483648
      %v1777 = vor.u32 1.1754944e-38, %v1776
      %v1778 = vsel %vm1775, %v1777, %v1773
      %v1779 = vmul.f32 1.0, %v1778
      %v1780 = vrcp.pop %v1231
      %v1781 = vmul.f32 %v1231, %v1780
      %v1782 = vsub.f32 1.0, %v1781
      %v1783 = vmul.f32 %v1780, %v1782
      %v1784 = vadd.f32 %v1780, %v1783
      %vm1785 = vweird.f32 %v1231
      %vm1786 = vweird.f32 %v1780
      %vm1787 = vmor %vm1785, %vm1786
      %v1788 = vsel %vm1787, %v1780, %v1784
      %v1789 = vand.u32 2147483647, %v1231
      %vm1790 = vcmp.eq.f32.partialorder %v1789, 8.507059e+37
      %v1791 = vand.u32 %v1231, 2147483648
      %v1792 = vor.u32 1.1754944e-38, %v1791
      %v1793 = vsel %vm1790, %v1792, %v1788
      %v1794 = vmul.f32 1.0, %v1793
      %v1795 = vrcp.pop %v1232
      %v1796 = vmul.f32 %v1232, %v1795
      %v1797 = vsub.f32 1.0, %v1796
      %v1798 = vmul.f32 %v1795, %v1797
      %v1799 = vadd.f32 %v1795, %v1798
      %vm1800 = vweird.f32 %v1232
      %vm1801 = vweird.f32 %v1795
      %vm1802 = vmor %vm1800, %vm1801
      %v1803 = vsel %vm1802, %v1795, %v1799
      %v1804 = vand.u32 2147483647, %v1232
      %vm1805 = vcmp.eq.f32.partialorder %v1804, 8.507059e+37
      %v1806 = vand.u32 %v1232, 2147483648
      %v1807 = vor.u32 1.1754944e-38, %v1806
      %v1808 = vsel %vm1805, %v1807, %v1803
      %v1809 = vmul.f32 1.0, %v1808
      %v1810 = vrcp.pop %v1233
      %v1811 = vmul.f32 %v1233, %v1810
      %v1812 = vsub.f32 1.0, %v1811
      %v1813 = vmul.f32 %v1810, %v1812
      %v1814 = vadd.f32 %v1810, %v1813
      %vm1815 = vweird.f32 %v1233
      %vm1816 = vweird.f32 %v1810
      %vm1817 = vmor %vm1815, %vm1816
      %v1818 = vsel %vm1817, %v1810, %v1814
      %v1819 = vand.u32 2147483647, %v1233
      %vm1820 = vcmp.eq.f32.partialorder %v1819, 8.507059e+37
      %v1821 = vand.u32 %v1233, 2147483648
      %v1822 = vor.u32 1.1754944e-38, %v1821
      %v1823 = vsel %vm1820, %v1822, %v1818
      %v1824 = vmul.f32 1.0, %v1823
      %v1825 = vrcp.pop %v1234
      %v1826 = vmul.f32 %v1234, %v1825
      %v1827 = vsub.f32 1.0, %v1826
      %v1828 = vmul.f32 %v1825, %v1827
      %v1829 = vadd.f32 %v1825, %v1828
      %vm1830 = vweird.f32 %v1234
      %vm1831 = vweird.f32 %v1825
      %vm1832 = vmor %vm1830, %vm1831
      %v1833 = vsel %vm1832, %v1825, %v1829
      %v1834 = vand.u32 2147483647, %v1234
      %vm1835 = vcmp.eq.f32.partialorder %v1834, 8.507059e+37
      %v1836 = vand.u32 %v1234, 2147483648
      %v1837 = vor.u32 1.1754944e-38, %v1836
      %v1838 = vsel %vm1835, %v1837, %v1833
      %v1839 = vmul.f32 1.0, %v1838
      %v1840 = vrcp.pop %v1235
      %v1841 = vmul.f32 %v1235, %v1840
      %v1842 = vsub.f32 1.0, %v1841
      %v1843 = vmul.f32 %v1840, %v1842
      %v1844 = vadd.f32 %v1840, %v1843
      %vm1845 = vweird.f32 %v1235
      %vm1846 = vweird.f32 %v1840
      %vm1847 = vmor %vm1845, %vm1846
      %v1848 = vsel %vm1847, %v1840, %v1844
      %v1849 = vand.u32 2147483647, %v1235
      %vm1850 = vcmp.eq.f32.partialorder %v1849, 8.507059e+37
      %v1851 = vand.u32 %v1235, 2147483648
      %v1852 = vor.u32 1.1754944e-38, %v1851
      %v1853 = vsel %vm1850, %v1852, %v1848
      %v1854 = vmul.f32 1.0, %v1853
      %v1855 = vrcp.pop %v1236
      %v1856 = vmul.f32 %v1236, %v1855
      %v1857 = vsub.f32 1.0, %v1856
      %v1858 = vmul.f32 %v1855, %v1857
      %v1859 = vadd.f32 %v1855, %v1858
      %vm1860 = vweird.f32 %v1236
      %vm1861 = vweird.f32 %v1855
      %vm1862 = vmor %vm1860, %vm1861
      %v1863 = vsel %vm1862, %v1855, %v1859
      %v1864 = vand.u32 2147483647, %v1236
      %vm1865 = vcmp.eq.f32.partialorder %v1864, 8.507059e+37
      %v1866 = vand.u32 %v1236, 2147483648
      %v1867 = vor.u32 1.1754944e-38, %v1866
      %v1868 = vsel %vm1865, %v1867, %v1863
      %v1869 = vmul.f32 1.0, %v1868
      %v1870 = vrcp.pop %v1237
      %v1871 = vmul.f32 %v1237, %v1870
      %v1872 = vsub.f32 1.0, %v1871
      %v1873 = vmul.f32 %v1870, %v1872
      %v1874 = vadd.f32 %v1870, %v1873
      %vm1875 = vweird.f32 %v1237
      %vm1876 = vweird.f32 %v1870
      %vm1877 = vmor %vm1875, %vm1876
      %v1878 = vsel %vm1877, %v1870, %v1874
      %v1879 = vand.u32 2147483647, %v1237
      %vm1880 = vcmp.eq.f32.partialorder %v1879, 8.507059e+37
      %v1881 = vand.u32 %v1237, 2147483648
      %v1882 = vor.u32 1.1754944e-38, %v1881
      %v1883 = vsel %vm1880, %v1882, %v1878
      %v1884 = vmul.f32 1.0, %v1883
      %v1885 = vrcp.pop %v1238
      %v1886 = vmul.f32 %v1238, %v1885
      %v1887 = vsub.f32 1.0, %v1886
      %v1888 = vmul.f32 %v1885, %v1887
      %v1889 = vadd.f32 %v1885, %v1888
      %vm1890 = vweird.f32 %v1238
      %vm1891 = vweird.f32 %v1885
      %vm1892 = vmor %vm1890, %vm1891
      %v1893 = vsel %vm1892, %v1885, %v1889
      %v1894 = vand.u32 2147483647, %v1238
      %vm1895 = vcmp.eq.f32.partialorder %v1894, 8.507059e+37
      %v1896 = vand.u32 %v1238, 2147483648
      %v1897 = vor.u32 1.1754944e-38, %v1896
      %v1898 = vsel %vm1895, %v1897, %v1893
      %v1899 = vmul.f32 1.0, %v1898
      %v1900 = vrcp.pop %v1239
      %v1901 = vmul.f32 %v1239, %v1900
      %v1902 = vsub.f32 1.0, %v1901
      %v1903 = vmul.f32 %v1900, %v1902
      %v1904 = vadd.f32 %v1900, %v1903
      %vm1905 = vweird.f32 %v1239
      %vm1906 = vweird.f32 %v1900
      %vm1907 = vmor %vm1905, %vm1906
      %v1908 = vsel %vm1907, %v1900, %v1904
      %v1909 = vand.u32 2147483647, %v1239
      %vm1910 = vcmp.eq.f32.partialorder %v1909, 8.507059e+37
      %v1911 = vand.u32 %v1239, 2147483648
      %v1912 = vor.u32 1.1754944e-38, %v1911
      %v1913 = vsel %vm1910, %v1912, %v1908
      %v1914 = vmul.f32 1.0, %v1913
      %v1915 = vrcp.pop %v1240
      %v1916 = vmul.f32 %v1240, %v1915
      %v1917 = vsub.f32 1.0, %v1916
      %v1918 = vmul.f32 %v1915, %v1917
      %v1919 = vadd.f32 %v1915, %v1918
      %vm1920 = vweird.f32 %v1240
      %vm1921 = vweird.f32 %v1915
      %vm1922 = vmor %vm1920, %vm1921
      %v1923 = vsel %vm1922, %v1915, %v1919
      %v1924 = vand.u32 2147483647, %v1240
      %vm1925 = vcmp.eq.f32.partialorder %v1924, 8.507059e+37
      %v1926 = vand.u32 %v1240, 2147483648
      %v1927 = vor.u32 1.1754944e-38, %v1926
      %v1928 = vsel %vm1925, %v1927, %v1923
      %v1929 = vmul.f32 1.0, %v1928
      %v1930 = vrcp.pop %v1241
      %v1931 = vmul.f32 %v1241, %v1930
      %v1932 = vsub.f32 1.0, %v1931
      %v1933 = vmul.f32 %v1930, %v1932
      %v1934 = vadd.f32 %v1930, %v1933
      %vm1935 = vweird.f32 %v1241
      %vm1936 = vweird.f32 %v1930
      %vm1937 = vmor %vm1935, %vm1936
      %v1938 = vsel %vm1937, %v1930, %v1934
      %v1939 = vand.u32 2147483647, %v1241
      %vm1940 = vcmp.eq.f32.partialorder %v1939, 8.507059e+37
      %v1941 = vand.u32 %v1241, 2147483648
      %v1942 = vor.u32 1.1754944e-38, %v1941
      %v1943 = vsel %vm1940, %v1942, %v1938
      %v1944 = vmul.f32 1.0, %v1943
      %v1945 = vrcp.pop %v1242
      %v1946 = vmul.f32 %v1242, %v1945
      %v1947 = vsub.f32 1.0, %v1946
      %v1948 = vmul.f32 %v1945, %v1947
      %v1949 = vadd.f32 %v1945, %v1948
      %vm1950 = vweird.f32 %v1242
      %vm1951 = vweird.f32 %v1945
      %vm1952 = vmor %vm1950, %vm1951
      %v1953 = vsel %vm1952, %v1945, %v1949
      %v1954 = vand.u32 2147483647, %v1242
      %vm1955 = vcmp.eq.f32.partialorder %v1954, 8.507059e+37
      %v1956 = vand.u32 %v1242, 2147483648
      %v1957 = vor.u32 1.1754944e-38, %v1956
      %v1958 = vsel %vm1955, %v1957, %v1953
      %v1959 = vmul.f32 1.0, %v1958
      %v1960 = vrcp.pop %v1243
      %v1961 = vmul.f32 %v1243, %v1960
      %v1962 = vsub.f32 1.0, %v1961
      %v1963 = vmul.f32 %v1960, %v1962
      %v1964 = vadd.f32 %v1960, %v1963
      %vm1965 = vweird.f32 %v1243
      %vm1966 = vweird.f32 %v1960
      %vm1967 = vmor %vm1965, %vm1966
      %v1968 = vsel %vm1967, %v1960, %v1964
      %v1969 = vand.u32 2147483647, %v1243
      %vm1970 = vcmp.eq.f32.partialorder %v1969, 8.507059e+37
      %v1971 = vand.u32 %v1243, 2147483648
      %v1972 = vor.u32 1.1754944e-38, %v1971
      %v1973 = vsel %vm1970, %v1972, %v1968
      %v1974 = vmul.f32 1.0, %v1973
      %v1975 = vrcp.pop %v1244
      %v1976 = vmul.f32 %v1244, %v1975
      %v1977 = vsub.f32 1.0, %v1976
      %v1978 = vmul.f32 %v1975, %v1977
      %v1979 = vadd.f32 %v1975, %v1978
      %vm1980 = vweird.f32 %v1244
      %vm1981 = vweird.f32 %v1975
      %vm1982 = vmor %vm1980, %vm1981
      %v1983 = vsel %vm1982, %v1975, %v1979
      %v1984 = vand.u32 2147483647, %v1244
      %vm1985 = vcmp.eq.f32.partialorder %v1984, 8.507059e+37
      %v1986 = vand.u32 %v1244, 2147483648
      %v1987 = vor.u32 1.1754944e-38, %v1986
      %v1988 = vsel %vm1985, %v1987, %v1983
      %v1989 = vmul.f32 1.0, %v1988
      %v1990 = vrcp.pop %v1245
      %v1991 = vmul.f32 %v1245, %v1990
      %v1992 = vsub.f32 1.0, %v1991
      %v1993 = vmul.f32 %v1990, %v1992
      %v1994 = vadd.f32 %v1990, %v1993
      %vm1995 = vweird.f32 %v1245
      %vm1996 = vweird.f32 %v1990
      %vm1997 = vmor %vm1995, %vm1996
      %v1998 = vsel %vm1997, %v1990, %v1994
      %v1999 = vand.u32 2147483647, %v1245
      %vm2000 = vcmp.eq.f32.partialorder %v1999, 8.507059e+37
      %v2001 = vand.u32 %v1245, 2147483648
      %v2002 = vor.u32 1.1754944e-38, %v2001
      %v2003 = vsel %vm2000, %v2002, %v1998
      %v2004 = vmul.f32 1.0, %v2003
      %v2005 = vrcp.pop %v1246
      %v2006 = vmul.f32 %v1246, %v2005
      %v2007 = vsub.f32 1.0, %v2006
      %v2008 = vmul.f32 %v2005, %v2007
      %v2009 = vadd.f32 %v2005, %v2008
      %vm2010 = vweird.f32 %v1246
      %vm2011 = vweird.f32 %v2005
      %vm2012 = vmor %vm2010, %vm2011
      %v2013 = vsel %vm2012, %v2005, %v2009
      %v2014 = vand.u32 2147483647, %v1246
      %vm2015 = vcmp.eq.f32.partialorder %v2014, 8.507059e+37
      %v2016 = vand.u32 %v1246, 2147483648
      %v2017 = vor.u32 1.1754944e-38, %v2016
      %v2018 = vsel %vm2015, %v2017, %v2013
      %v2019 = vmul.f32 1.0, %v2018
      %v2020 = vrcp.pop %v1247
      %v2021 = vmul.f32 %v1247, %v2020
      %v2022 = vsub.f32 1.0, %v2021
      %v2023 = vmul.f32 %v2020, %v2022
      %v2024 = vadd.f32 %v2020, %v2023
      %vm2025 = vweird.f32 %v1247
      %vm2026 = vweird.f32 %v2020
      %vm2027 = vmor %vm2025, %vm2026
      %v2028 = vsel %vm2027, %v2020, %v2024
      %v2029 = vand.u32 2147483647, %v1247
      %vm2030 = vcmp.eq.f32.partialorder %v2029, 8.507059e+37
      %v2031 = vand.u32 %v1247, 2147483648
      %v2032 = vor.u32 1.1754944e-38, %v2031
      %v2033 = vsel %vm2030, %v2032, %v2028
      %v2034 = vmul.f32 1.0, %v2033
      %v2035 = vrcp.pop %v1248
      %v2036 = vmul.f32 %v1248, %v2035
      %v2037 = vsub.f32 1.0, %v2036
      %v2038 = vmul.f32 %v2035, %v2037
      %v2039 = vadd.f32 %v2035, %v2038
      %vm2040 = vweird.f32 %v1248
      %vm2041 = vweird.f32 %v2035
      %vm2042 = vmor %vm2040, %vm2041
      %v2043 = vsel %vm2042, %v2035, %v2039
      %v2044 = vand.u32 2147483647, %v1248
      %vm2045 = vcmp.eq.f32.partialorder %v2044, 8.507059e+37
      %v2046 = vand.u32 %v1248, 2147483648
      %v2047 = vor.u32 1.1754944e-38, %v2046
      %v2048 = vsel %vm2045, %v2047, %v2043
      %v2049 = vmul.f32 1.0, %v2048
      %v2050 = vrcp.pop %v1249
      %v2051 = vmul.f32 %v1249, %v2050
      %v2052 = vsub.f32 1.0, %v2051
      %v2053 = vmul.f32 %v2050, %v2052
      %v2054 = vadd.f32 %v2050, %v2053
      %vm2055 = vweird.f32 %v1249
      %vm2056 = vweird.f32 %v2050
      %vm2057 = vmor %vm2055, %vm2056
      %v2058 = vsel %vm2057, %v2050, %v2054
      %v2059 = vand.u32 2147483647, %v1249
      %vm2060 = vcmp.eq.f32.partialorder %v2059, 8.507059e+37
      %v2061 = vand.u32 %v1249, 2147483648
      %v2062 = vor.u32 1.1754944e-38, %v2061
      %v2063 = vsel %vm2060, %v2062, %v2058
      %v2064 = vmul.f32 1.0, %v2063
      %v2065 = vrcp.pop %v1250
      %v2066 = vmul.f32 %v1250, %v2065
      %v2067 = vsub.f32 1.0, %v2066
      %v2068 = vmul.f32 %v2065, %v2067
      %v2069 = vadd.f32 %v2065, %v2068
      %vm2070 = vweird.f32 %v1250
      %vm2071 = vweird.f32 %v2065
      %vm2072 = vmor %vm2070, %vm2071
      %v2073 = vsel %vm2072, %v2065, %v2069
      %v2074 = vand.u32 2147483647, %v1250
      %vm2075 = vcmp.eq.f32.partialorder %v2074, 8.507059e+37
      %v2076 = vand.u32 %v1250, 2147483648
      %v2077 = vor.u32 1.1754944e-38, %v2076
      %v2078 = vsel %vm2075, %v2077, %v2073
      %v2079 = vmul.f32 1.0, %v2078
      %v2080 = vrcp.pop %v1251
      %v2081 = vmul.f32 %v1251, %v2080
      %v2082 = vsub.f32 1.0, %v2081
      %v2083 = vmul.f32 %v2080, %v2082
      %v2084 = vadd.f32 %v2080, %v2083
      %vm2085 = vweird.f32 %v1251
      %vm2086 = vweird.f32 %v2080
      %vm2087 = vmor %vm2085, %vm2086
      %v2088 = vsel %vm2087, %v2080, %v2084
      %v2089 = vand.u32 2147483647, %v1251
      %vm2090 = vcmp.eq.f32.partialorder %v2089, 8.507059e+37
      %v2091 = vand.u32 %v1251, 2147483648
      %v2092 = vor.u32 1.1754944e-38, %v2091
      %v2093 = vsel %vm2090, %v2092, %v2088
      %v2094 = vmul.f32 1.0, %v2093
      %v2095 = vrcp.pop %v1252
      %v2096 = vmul.f32 %v1252, %v2095
      %v2097 = vsub.f32 1.0, %v2096
      %v2098 = vmul.f32 %v2095, %v2097
      %v2099 = vadd.f32 %v2095, %v2098
      %vm2100 = vweird.f32 %v1252
      %vm2101 = vweird.f32 %v2095
      %vm2102 = vmor %vm2100, %vm2101
      %v2103 = vsel %vm2102, %v2095, %v2099
      %v2104 = vand.u32 2147483647, %v1252
      %vm2105 = vcmp.eq.f32.partialorder %v2104, 8.507059e+37
      %v2106 = vand.u32 %v1252, 2147483648
      %v2107 = vor.u32 1.1754944e-38, %v2106
      %v2108 = vsel %vm2105, %v2107, %v2103
      %v2109 = vmul.f32 1.0, %v2108
      %v2110 = vrcp.pop %v1253
      %v2111 = vmul.f32 %v1253, %v2110
      %v2112 = vsub.f32 1.0, %v2111
      %v2113 = vmul.f32 %v2110, %v2112
      %v2114 = vadd.f32 %v2110, %v2113
      %vm2115 = vweird.f32 %v1253
      %vm2116 = vweird.f32 %v2110
      %vm2117 = vmor %vm2115, %vm2116
      %v2118 = vsel %vm2117, %v2110, %v2114
      %v2119 = vand.u32 2147483647, %v1253
      %vm2120 = vcmp.eq.f32.partialorder %v2119, 8.507059e+37
      %v2121 = vand.u32 %v1253, 2147483648
      %v2122 = vor.u32 1.1754944e-38, %v2121
      %v2123 = vsel %vm2120, %v2122, %v2118
      %v2124 = vmul.f32 1.0, %v2123
      %v2125 = vrcp.pop %v1254
      %v2126 = vmul.f32 %v1254, %v2125
      %v2127 = vsub.f32 1.0, %v2126
      %v2128 = vmul.f32 %v2125, %v2127
      %v2129 = vadd.f32 %v2125, %v2128
      %vm2130 = vweird.f32 %v1254
      %vm2131 = vweird.f32 %v2125
      %vm2132 = vmor %vm2130, %vm2131
      %v2133 = vsel %vm2132, %v2125, %v2129
      %v2134 = vand.u32 2147483647, %v1254
      %vm2135 = vcmp.eq.f32.partialorder %v2134, 8.507059e+37
      %v2136 = vand.u32 %v1254, 2147483648
      %v2137 = vor.u32 1.1754944e-38, %v2136
      %v2138 = vsel %vm2135, %v2137, %v2133
      %v2139 = vmul.f32 1.0, %v2138
      %v2140 = vrcp.pop %v1255
      %v2141 = vmul.f32 %v1255, %v2140
      %v2142 = vsub.f32 1.0, %v2141
      %v2143 = vmul.f32 %v2140, %v2142
      %v2144 = vadd.f32 %v2140, %v2143
      %vm2145 = vweird.f32 %v1255
      %vm2146 = vweird.f32 %v2140
      %vm2147 = vmor %vm2145, %vm2146
      %v2148 = vsel %vm2147, %v2140, %v2144
      %v2149 = vand.u32 2147483647, %v1255
      %vm2150 = vcmp.eq.f32.partialorder %v2149, 8.507059e+37
      %v2151 = vand.u32 %v1255, 2147483648
      %v2152 = vor.u32 1.1754944e-38, %v2151
      %v2153 = vsel %vm2150, %v2152, %v2148
      %v2154 = vmul.f32 1.0, %v2153
      %v2155 = vrcp.pop %v1256
      %v2156 = vmul.f32 %v1256, %v2155
      %v2157 = vsub.f32 1.0, %v2156
      %v2158 = vmul.f32 %v2155, %v2157
      %v2159 = vadd.f32 %v2155, %v2158
      %vm2160 = vweird.f32 %v1256
      %vm2161 = vweird.f32 %v2155
      %vm2162 = vmor %vm2160, %vm2161
      %v2163 = vsel %vm2162, %v2155, %v2159
      %v2164 = vand.u32 2147483647, %v1256
      %vm2165 = vcmp.eq.f32.partialorder %v2164, 8.507059e+37
      %v2166 = vand.u32 %v1256, 2147483648
      %v2167 = vor.u32 1.1754944e-38, %v2166
      %v2168 = vsel %vm2165, %v2167, %v2163
      %v2169 = vmul.f32 1.0, %v2168
      %v2170 = vrcp.pop %v1257
      %v2171 = vmul.f32 %v1257, %v2170
      %v2172 = vsub.f32 1.0, %v2171
      %v2173 = vmul.f32 %v2170, %v2172
      %v2174 = vadd.f32 %v2170, %v2173
      %vm2175 = vweird.f32 %v1257
      %vm2176 = vweird.f32 %v2170
      %vm2177 = vmor %vm2175, %vm2176
      %v2178 = vsel %vm2177, %v2170, %v2174
      %v2179 = vand.u32 2147483647, %v1257
      %vm2180 = vcmp.eq.f32.partialorder %v2179, 8.507059e+37
      %v2181 = vand.u32 %v1257, 2147483648
      %v2182 = vor.u32 1.1754944e-38, %v2181
      %v2183 = vsel %vm2180, %v2182, %v2178
      %v2184 = vmul.f32 1.0, %v2183
      %v2185 = vrcp.pop %v1258
      %v2186 = vmul.f32 %v1258, %v2185
      %v2187 = vsub.f32 1.0, %v2186
      %v2188 = vmul.f32 %v2185, %v2187
      %v2189 = vadd.f32 %v2185, %v2188
      %vm2190 = vweird.f32 %v1258
      %vm2191 = vweird.f32 %v2185
      %vm2192 = vmor %vm2190, %vm2191
      %v2193 = vsel %vm2192, %v2185, %v2189
      %v2194 = vand.u32 2147483647, %v1258
      %vm2195 = vcmp.eq.f32.partialorder %v2194, 8.507059e+37
      %v2196 = vand.u32 %v1258, 2147483648
      %v2197 = vor.u32 1.1754944e-38, %v2196
      %v2198 = vsel %vm2195, %v2197, %v2193
      %v2199 = vmul.f32 1.0, %v2198
      %v2200 = vrcp.pop %v1259
      %v2201 = vmul.f32 %v1259, %v2200
      %v2202 = vsub.f32 1.0, %v2201
      %v2203 = vmul.f32 %v2200, %v2202
      %v2204 = vadd.f32 %v2200, %v2203
      %vm2205 = vweird.f32 %v1259
      %vm2206 = vweird.f32 %v2200
      %vm2207 = vmor %vm2205, %vm2206
      %v2208 = vsel %vm2207, %v2200, %v2204
      %v2209 = vand.u32 2147483647, %v1259
      %vm2210 = vcmp.eq.f32.partialorder %v2209, 8.507059e+37
      %v2211 = vand.u32 %v1259, 2147483648
      %v2212 = vor.u32 1.1754944e-38, %v2211
      %v2213 = vsel %vm2210, %v2212, %v2208
      %v2214 = vmul.f32 1.0, %v2213
      %v2215 = vrcp.pop %v1260
      %v2216 = vmul.f32 %v1260, %v2215
      %v2217 = vsub.f32 1.0, %v2216
      %v2218 = vmul.f32 %v2215, %v2217
      %v2219 = vadd.f32 %v2215, %v2218
      %vm2220 = vweird.f32 %v1260
      %vm2221 = vweird.f32 %v2215
      %vm2222 = vmor %vm2220, %vm2221
      %v2223 = vsel %vm2222, %v2215, %v2219
      %v2224 = vand.u32 2147483647, %v1260
      %vm2225 = vcmp.eq.f32.partialorder %v2224, 8.507059e+37
      %v2226 = vand.u32 %v1260, 2147483648
      %v2227 = vor.u32 1.1754944e-38, %v2226
      %v2228 = vsel %vm2225, %v2227, %v2223
      %v2229 = vmul.f32 1.0, %v2228
      %v2230 = vrcp.pop %v1261
      %v2231 = vmul.f32 %v1261, %v2230
      %v2232 = vsub.f32 1.0, %v2231
      %v2233 = vmul.f32 %v2230, %v2232
      %v2234 = vadd.f32 %v2230, %v2233
      %vm2235 = vweird.f32 %v1261
      %vm2236 = vweird.f32 %v2230
      %vm2237 = vmor %vm2235, %vm2236
      %v2238 = vsel %vm2237, %v2230, %v2234
      %v2239 = vand.u32 2147483647, %v1261
      %vm2240 = vcmp.eq.f32.partialorder %v2239, 8.507059e+37
      %v2241 = vand.u32 %v1261, 2147483648
      %v2242 = vor.u32 1.1754944e-38, %v2241
      %v2243 = vsel %vm2240, %v2242, %v2238
      %v2244 = vmul.f32 1.0, %v2243
      %v2245 = vrcp.pop %v1262
      %v2246 = vmul.f32 %v1262, %v2245
      %v2247 = vsub.f32 1.0, %v2246
      %v2248 = vmul.f32 %v2245, %v2247
      %v2249 = vadd.f32 %v2245, %v2248
      %vm2250 = vweird.f32 %v1262
      %vm2251 = vweird.f32 %v2245
      %vm2252 = vmor %vm2250, %vm2251
      %v2253 = vsel %vm2252, %v2245, %v2249
      %v2254 = vand.u32 2147483647, %v1262
      %vm2255 = vcmp.eq.f32.partialorder %v2254, 8.507059e+37
      %v2256 = vand.u32 %v1262, 2147483648
      %v2257 = vor.u32 1.1754944e-38, %v2256
      %v2258 = vsel %vm2255, %v2257, %v2253
      %v2259 = vmul.f32 1.0, %v2258
      %v2260 = vrcp.pop %v1263
      %v2261 = vmul.f32 %v1263, %v2260
      %v2262 = vsub.f32 1.0, %v2261
      %v2263 = vmul.f32 %v2260, %v2262
      %v2264 = vadd.f32 %v2260, %v2263
      %vm2265 = vweird.f32 %v1263
      %vm2266 = vweird.f32 %v2260
      %vm2267 = vmor %vm2265, %vm2266
      %v2268 = vsel %vm2267, %v2260, %v2264
      %v2269 = vand.u32 2147483647, %v1263
      %vm2270 = vcmp.eq.f32.partialorder %v2269, 8.507059e+37
      %v2271 = vand.u32 %v1263, 2147483648
      %v2272 = vor.u32 1.1754944e-38, %v2271
      %v2273 = vsel %vm2270, %v2272, %v2268
      %v2274 = vmul.f32 1.0, %v2273
      %v2275 = vrcp.pop %v1264
      %v2276 = vmul.f32 %v1264, %v2275
      %v2277 = vsub.f32 1.0, %v2276
      %v2278 = vmul.f32 %v2275, %v2277
      %v2279 = vadd.f32 %v2275, %v2278
      %vm2280 = vweird.f32 %v1264
      %vm2281 = vweird.f32 %v2275
      %vm2282 = vmor %vm2280, %vm2281
      %v2283 = vsel %vm2282, %v2275, %v2279
      %v2284 = vand.u32 2147483647, %v1264
      %vm2285 = vcmp.eq.f32.partialorder %v2284, 8.507059e+37
      %v2286 = vand.u32 %v1264, 2147483648
      %v2287 = vor.u32 1.1754944e-38, %v2286
      %v2288 = vsel %vm2285, %v2287, %v2283
      %v2289 = vmul.f32 1.0, %v2288
      %v2290 = vrcp.pop %v1265
      %v2291 = vmul.f32 %v1265, %v2290
      %v2292 = vsub.f32 1.0, %v2291
      %v2293 = vmul.f32 %v2290, %v2292
      %v2294 = vadd.f32 %v2290, %v2293
      %vm2295 = vweird.f32 %v1265
      %vm2296 = vweird.f32 %v2290
      %vm2297 = vmor %vm2295, %vm2296
      %v2298 = vsel %vm2297, %v2290, %v2294
      %v2299 = vand.u32 2147483647, %v1265
      %vm2300 = vcmp.eq.f32.partialorder %v2299, 8.507059e+37
      %v2301 = vand.u32 %v1265, 2147483648
      %v2302 = vor.u32 1.1754944e-38, %v2301
      %v2303 = vsel %vm2300, %v2302, %v2298
      %v2304 = vmul.f32 1.0, %v2303
      %v2305 = vrcp.pop %v1266
      %v2306 = vmul.f32 %v1266, %v2305
      %v2307 = vsub.f32 1.0, %v2306
      %v2308 = vmul.f32 %v2305, %v2307
      %v2309 = vadd.f32 %v2305, %v2308
      %vm2310 = vweird.f32 %v1266
      %vm2311 = vweird.f32 %v2305
      %vm2312 = vmor %vm2310, %vm2311
      %v2313 = vsel %vm2312, %v2305, %v2309
      %v2314 = vand.u32 2147483647, %v1266
      %vm2315 = vcmp.eq.f32.partialorder %v2314, 8.507059e+37
      %v2316 = vand.u32 %v1266, 2147483648
      %v2317 = vor.u32 1.1754944e-38, %v2316
      %v2318 = vsel %vm2315, %v2317, %v2313
      %v2319 = vmul.f32 1.0, %v2318
      %v2320 = vrcp.pop %v1267
      %v2321 = vmul.f32 %v1267, %v2320
      %v2322 = vsub.f32 1.0, %v2321
      %v2323 = vmul.f32 %v2320, %v2322
      %v2324 = vadd.f32 %v2320, %v2323
      %vm2325 = vweird.f32 %v1267
      %vm2326 = vweird.f32 %v2320
      %vm2327 = vmor %vm2325, %vm2326
      %v2328 = vsel %vm2327, %v2320, %v2324
      %v2329 = vand.u32 2147483647, %v1267
      %vm2330 = vcmp.eq.f32.partialorder %v2329, 8.507059e+37
      %v2331 = vand.u32 %v1267, 2147483648
      %v2332 = vor.u32 1.1754944e-38, %v2331
      %v2333 = vsel %vm2330, %v2332, %v2328
      %v2334 = vmul.f32 1.0, %v2333
      %v2335 = vrcp.pop %v1268
      %v2336 = vmul.f32 %v1268, %v2335
      %v2337 = vsub.f32 1.0, %v2336
      %v2338 = vmul.f32 %v2335, %v2337
      %v2339 = vadd.f32 %v2335, %v2338
      %vm2340 = vweird.f32 %v1268
      %vm2341 = vweird.f32 %v2335
      %vm2342 = vmor %vm2340, %vm2341
      %v2343 = vsel %vm2342, %v2335, %v2339
      %v2344 = vand.u32 2147483647, %v1268
      %vm2345 = vcmp.eq.f32.partialorder %v2344, 8.507059e+37
      %v2346 = vand.u32 %v1268, 2147483648
      %v2347 = vor.u32 1.1754944e-38, %v2346
      %v2348 = vsel %vm2345, %v2347, %v2343
      %v2349 = vmul.f32 1.0, %v2348
      %v2350 = vrcp.pop %v1269
      %v2351 = vmul.f32 %v1269, %v2350
      %v2352 = vsub.f32 1.0, %v2351
      %v2353 = vmul.f32 %v2350, %v2352
      %v2354 = vadd.f32 %v2350, %v2353
      %vm2355 = vweird.f32 %v1269
      %vm2356 = vweird.f32 %v2350
      %vm2357 = vmor %vm2355, %vm2356
      %v2358 = vsel %vm2357, %v2350, %v2354
      %v2359 = vand.u32 2147483647, %v1269
      %vm2360 = vcmp.eq.f32.partialorder %v2359, 8.507059e+37
      %v2361 = vand.u32 %v1269, 2147483648
      %v2362 = vor.u32 1.1754944e-38, %v2361
      %v2363 = vsel %vm2360, %v2362, %v2358
      %v2364 = vmul.f32 1.0, %v2363
      %v2365 = vmul.f32 %v760, %v1284
      %v2366 = vmul.f32 %v763, %v1299
      %v2367 = vmul.f32 %v766, %v1314
      %v2368 = vmul.f32 %v769, %v1329
      %v2369 = vmul.f32 %v772, %v1344
      %v2370 = vmul.f32 %v775, %v1359
      %v2371 = vmul.f32 %v778, %v1374
      %v2372 = vmul.f32 %v781, %v1389
      %v2373 = vmul.f32 %v784, %v1404
      %v2374 = vmul.f32 %v787, %v1419
      %v2375 = vmul.f32 %v790, %v1434
      %v2376 = vmul.f32 %v793, %v1449
      %v2377 = vmul.f32 %v796, %v1464
      %v2378 = vmul.f32 %v799, %v1479
      %v2379 = vmul.f32 %v802, %v1494
      %v2380 = vmul.f32 %v805, %v1509
      %v2381 = vmul.f32 %v808, %v1524
      %v2382 = vmul.f32 %v811, %v1539
      %v2383 = vmul.f32 %v814, %v1554
      %v2384 = vmul.f32 %v817, %v1569
      %v2385 = vmul.f32 %v820, %v1584
      %v2386 = vmul.f32 %v823, %v1599
      %v2387 = vmul.f32 %v826, %v1614
      %v2388 = vmul.f32 %v829, %v1629
      %v2389 = vmul.f32 %v832, %v1644
      %v2390 = vmul.f32 %v835, %v1659
      %v2391 = vmul.f32 %v838, %v1674
      %v2392 = vmul.f32 %v841, %v1689
      %v2393 = vmul.f32 %v844, %v1704
      %v2394 = vmul.f32 %v847, %v1719
      %v2395 = vmul.f32 %v850, %v1734
      %v2396 = vmul.f32 %v853, %v1749
      %v2397 = vmul.f32 %v856, %v1764
      %v2398 = vmul.f32 %v859, %v1779
      %v2399 = vmul.f32 %v862, %v1794
      %v2400 = vmul.f32 %v865, %v1809
      %v2401 = vmul.f32 %v868, %v1824
      %v2402 = vmul.f32 %v871, %v1839
      %v2403 = vmul.f32 %v874, %v1854
      %v2404 = vmul.f32 %v877, %v1869
      %v2405 = vmul.f32 %v880, %v1884
      %v2406 = vmul.f32 %v883, %v1899
      %v2407 = vmul.f32 %v886, %v1914
      %v2408 = vmul.f32 %v889, %v1929
      %v2409 = vmul.f32 %v892, %v1944
      %v2410 = vmul.f32 %v895, %v1959
      %v2411 = vmul.f32 %v898, %v1974
      %v2412 = vmul.f32 %v901, %v1989
      %v2413 = vmul.f32 %v904, %v2004
      %v2414 = vmul.f32 %v907, %v2019
      %v2415 = vmul.f32 %v910, %v2034
      %v2416 = vmul.f32 %v913, %v2049
      %v2417 = vmul.f32 %v916, %v2064
      %v2418 = vmul.f32 %v919, %v2079
      %v2419 = vmul.f32 %v922, %v2094
      %v2420 = vmul.f32 %v925, %v2109
      %v2421 = vmul.f32 %v928, %v2124
      %v2422 = vmul.f32 %v931, %v2139
      %v2423 = vmul.f32 %v934, %v2154
      %v2424 = vmul.f32 %v937, %v2169
      %v2425 = vmul.f32 %v940, %v2184
      %v2426 = vmul.f32 %v943, %v2199
      %v2427 = vmul.f32 %v946, %v2214
      %v2428 = vmul.f32 %v949, %v2229
      %v2429 = vmul.f32 %v952, %v2244
      %v2430 = vmul.f32 %v955, %v2259
      %v2431 = vmul.f32 %v958, %v2274
      %v2432 = vmul.f32 %v961, %v2289
      %v2433 = vmul.f32 %v964, %v2304
      %v2434 = vmul.f32 %v967, %v2319
      %v2435 = vmul.f32 %v970, %v2334
      %v2436 = vmul.f32 %v973, %v2349
      %v2437 = vmul.f32 %v976, %v2364
      %v2438 = vld [vmem:[%s268] sm:$0xff]
      %v2439 = vld [vmem:[%s268 + $0x8] sm:$0xff]
      %v2440 = vld [vmem:[%s268 + $0x10] sm:$0xff]
      %v2441 = vld [vmem:[%s268 + $0x18] sm:$0xff]
      %v2442 = vld [vmem:[%s268 + $0x20] sm:$0xff]
      %v2443 = vld [vmem:[%s268 + $0x28] sm:$0xff]
      %v2444 = vld [vmem:[%s268 + $0x30] sm:$0xff]
      %v2445 = vld [vmem:[%s268 + $0x38] sm:$0xff]
      %v2446 = vld [vmem:[%s268 + $0x40] sm:$0xff]
      %v2447 = vld [vmem:[%s268 + $0x48] sm:$0xff]
      %v2448 = vld [vmem:[%s268 + $0x50] sm:$0xff]
      %v2449 = vld [vmem:[%s268 + $0x58] sm:$0xff]
      %v2450 = vld [vmem:[%s268 + $0x60] sm:$0xff]
      %v2451 = vld [vmem:[%s268 + $0x68] sm:$0xff]
      %v2452 = vld [vmem:[%s268 + $0x70] sm:$0xff]
      %v2453 = vld [vmem:[%s268 + $0x78] sm:$0xff]
      %v2454 = vld [vmem:[%s268 + $0x80] sm:$0xff]
      %v2455 = vld [vmem:[%s268 + $0x88] sm:$0xff]
      %v2456 = vld [vmem:[%s268 + $0x90] sm:$0xff]
      %v2457 = vld [vmem:[%s268 + $0x98] sm:$0xff]
      %v2458 = vld [vmem:[%s268 + $0xa0] sm:$0xff]
      %v2459 = vld [vmem:[%s268 + $0xa8] sm:$0xff]
      %v2460 = vld [vmem:[%s268 + $0xb0] sm:$0xff]
      %v2461 = vld [vmem:[%s268 + $0xb8] sm:$0xff]
      %v2462 = vld [vmem:[%s268 + $0xc0] sm:$0xff]
      %v2463 = vld [vmem:[%s268 + $0xc8] sm:$0xff]
      %v2464 = vld [vmem:[%s268 + $0xd0] sm:$0xff]
      %v2465 = vld [vmem:[%s268 + $0xd8] sm:$0xff]
      %v2466 = vld [vmem:[%s268 + $0xe0] sm:$0xff]
      %v2467 = vld [vmem:[%s268 + $0xe8] sm:$0xff]
      %v2468 = vld [vmem:[%s268 + $0xf0] sm:$0xff]
      %v2469 = vld [vmem:[%s268 + $0xf8] sm:$0xff]
      %v2470 = vld [vmem:[%s268 + $0x100] sm:$0xff]
      %v2471 = vld [vmem:[%s268 + $0x108] sm:$0xff]
      %v2472 = vld [vmem:[%s268 + $0x110] sm:$0xff]
      %v2473 = vld [vmem:[%s268 + $0x118] sm:$0xff]
      %v2474 = vld [vmem:[%s268 + $0x120] sm:$0xff]
      %v2475 = vld [vmem:[%s268 + $0x128] sm:$0xff]
      %v2476 = vld [vmem:[%s268 + $0x130] sm:$0xff]
      %v2477 = vld [vmem:[%s268 + $0x138] sm:$0xff]
      %v2478 = vld [vmem:[%s268 + $0x140] sm:$0xff]
      %v2479 = vld [vmem:[%s268 + $0x148] sm:$0xff]
      %v2480 = vld [vmem:[%s268 + $0x150] sm:$0xff]
      %v2481 = vld [vmem:[%s268 + $0x158] sm:$0xff]
      %v2482 = vld [vmem:[%s268 + $0x160] sm:$0xff]
      %v2483 = vld [vmem:[%s268 + $0x168] sm:$0xff]
      %v2484 = vld [vmem:[%s268 + $0x170] sm:$0xff]
      %v2485 = vld [vmem:[%s268 + $0x178] sm:$0xff]
      %v2486 = vld [vmem:[%s268 + $0x180] sm:$0xff]
      %v2487 = vld [vmem:[%s268 + $0x188] sm:$0xff]
      %v2488 = vld [vmem:[%s268 + $0x190] sm:$0xff]
      %v2489 = vld [vmem:[%s268 + $0x198] sm:$0xff]
      %v2490 = vld [vmem:[%s268 + $0x1a0] sm:$0xff]
      %v2491 = vld [vmem:[%s268 + $0x1a8] sm:$0xff]
      %v2492 = vld [vmem:[%s268 + $0x1b0] sm:$0xff]
      %v2493 = vld [vmem:[%s268 + $0x1b8] sm:$0xff]
      %v2494 = vld [vmem:[%s268 + $0x1c0] sm:$0xff]
      %v2495 = vld [vmem:[%s268 + $0x1c8] sm:$0xff]
      %v2496 = vld [vmem:[%s268 + $0x1d0] sm:$0xff]
      %v2497 = vld [vmem:[%s268 + $0x1d8] sm:$0xff]
      %v2498 = vld [vmem:[%s268 + $0x1e0] sm:$0xff]
      %v2499 = vld [vmem:[%s268 + $0x1e8] sm:$0xff]
      %v2500 = vld [vmem:[%s268 + $0x1f0] sm:$0xff]
      %v2501 = vld [vmem:[%s268 + $0x1f8] sm:$0xff]
      %v2502 = vld [vmem:[%s268 + $0x200] sm:$0xff]
      %v2503 = vld [vmem:[%s268 + $0x208] sm:$0xff]
      %v2504 = vld [vmem:[%s268 + $0x210] sm:$0xff]
      %v2505 = vld [vmem:[%s268 + $0x218] sm:$0xff]
      %v2506 = vld [vmem:[%s268 + $0x220] sm:$0xff]
      %v2507 = vld [vmem:[%s268 + $0x228] sm:$0xff]
      %v2508 = vld [vmem:[%s268 + $0x230] sm:$0xff]
      %v2509 = vld [vmem:[%s268 + $0x238] sm:$0xff]
      %v2510 = vld [vmem:[%s268 + $0x240] sm:$0xff]
      %v2511 = vadd.f32 %v2438, %v2365
      %v2512 = vadd.f32 %v2439, %v2366
      %v2513 = vadd.f32 %v2440, %v2367
      %v2514 = vadd.f32 %v2441, %v2368
      %v2515 = vadd.f32 %v2442, %v2369
      %v2516 = vadd.f32 %v2443, %v2370
      %v2517 = vadd.f32 %v2444, %v2371
      %v2518 = vadd.f32 %v2445, %v2372
      %v2519 = vadd.f32 %v2446, %v2373
      %v2520 = vadd.f32 %v2447, %v2374
      %v2521 = vadd.f32 %v2448, %v2375
      %v2522 = vadd.f32 %v2449, %v2376
      %v2523 = vadd.f32 %v2450, %v2377
      %v2524 = vadd.f32 %v2451, %v2378
      %v2525 = vadd.f32 %v2452, %v2379
      %v2526 = vadd.f32 %v2453, %v2380
      %v2527 = vadd.f32 %v2454, %v2381
      %v2528 = vadd.f32 %v2455, %v2382
      %v2529 = vadd.f32 %v2456, %v2383
      %v2530 = vadd.f32 %v2457, %v2384
      %v2531 = vadd.f32 %v2458, %v2385
      %v2532 = vadd.f32 %v2459, %v2386
      %v2533 = vadd.f32 %v2460, %v2387
      %v2534 = vadd.f32 %v2461, %v2388
      %v2535 = vadd.f32 %v2462, %v2389
      %v2536 = vadd.f32 %v2463, %v2390
      %v2537 = vadd.f32 %v2464, %v2391
      %v2538 = vadd.f32 %v2465, %v2392
      %v2539 = vadd.f32 %v2466, %v2393
      %v2540 = vadd.f32 %v2467, %v2394
      %v2541 = vadd.f32 %v2468, %v2395
      %v2542 = vadd.f32 %v2469, %v2396
      %v2543 = vadd.f32 %v2470, %v2397
      %v2544 = vadd.f32 %v2471, %v2398
      %v2545 = vadd.f32 %v2472, %v2399
      %v2546 = vadd.f32 %v2473, %v2400
      %v2547 = vadd.f32 %v2474, %v2401
      %v2548 = vadd.f32 %v2475, %v2402
      %v2549 = vadd.f32 %v2476, %v2403
      %v2550 = vadd.f32 %v2477, %v2404
      %v2551 = vadd.f32 %v2478, %v2405
      %v2552 = vadd.f32 %v2479, %v2406
      %v2553 = vadd.f32 %v2480, %v2407
      %v2554 = vadd.f32 %v2481, %v2408
      %v2555 = vadd.f32 %v2482, %v2409
      %v2556 = vadd.f32 %v2483, %v2410
      %v2557 = vadd.f32 %v2484, %v2411
      %v2558 = vadd.f32 %v2485, %v2412
      %v2559 = vadd.f32 %v2486, %v2413
      %v2560 = vadd.f32 %v2487, %v2414
      %v2561 = vadd.f32 %v2488, %v2415
      %v2562 = vadd.f32 %v2489, %v2416
      %v2563 = vadd.f32 %v2490, %v2417
      %v2564 = vadd.f32 %v2491, %v2418
      %v2565 = vadd.f32 %v2492, %v2419
      %v2566 = vadd.f32 %v2493, %v2420
      %v2567 = vadd.f32 %v2494, %v2421
      %v2568 = vadd.f32 %v2495, %v2422
      %v2569 = vadd.f32 %v2496, %v2423
      %v2570 = vadd.f32 %v2497, %v2424
      %v2571 = vadd.f32 %v2498, %v2425
      %v2572 = vadd.f32 %v2499, %v2426
      %v2573 = vadd.f32 %v2500, %v2427
      %v2574 = vadd.f32 %v2501, %v2428
      %v2575 = vadd.f32 %v2502, %v2429
      %v2576 = vadd.f32 %v2503, %v2430
      %v2577 = vadd.f32 %v2504, %v2431
      %v2578 = vadd.f32 %v2505, %v2432
      %v2579 = vadd.f32 %v2506, %v2433
      %v2580 = vadd.f32 %v2507, %v2434
      %v2581 = vadd.f32 %v2508, %v2435
      %v2582 = vadd.f32 %v2509, %v2436
      %v2583 = vadd.f32 %v2510, %v2437
      %2584 = vst.msk [vmem:[%s285] sm:$0xff] %vm522, %v2511
      %2585 = vst.msk [vmem:[%s285 + $0x8] sm:$0xff] %vm522, %v2512
      %2586 = vst.msk [vmem:[%s285 + $0x10] sm:$0xff] %vm522, %v2513
      %2587 = vst.msk [vmem:[%s285 + $0x18] sm:$0xff] %vm522, %v2514
      %2588 = vst.msk [vmem:[%s285 + $0x20] sm:$0xff] %vm522, %v2515
      %2589 = vst.msk [vmem:[%s285 + $0x28] sm:$0xff] %vm522, %v2516
      %2590 = vst.msk [vmem:[%s285 + $0x30] sm:$0xff] %vm522, %v2517
      %2591 = vst.msk [vmem:[%s285 + $0x38] sm:$0xff] %vm522, %v2518
      %2592 = vst.msk [vmem:[%s285 + $0x40] sm:$0xff] %vm522, %v2519
      %2593 = vst.msk [vmem:[%s285 + $0x48] sm:$0xff] %vm522, %v2520
      %2594 = vst.msk [vmem:[%s285 + $0x50] sm:$0xff] %vm522, %v2521
      %2595 = vst.msk [vmem:[%s285 + $0x58] sm:$0xff] %vm522, %v2522
      %2596 = vst.msk [vmem:[%s285 + $0x60] sm:$0xff] %vm522, %v2523
      %2597 = vst.msk [vmem:[%s285 + $0x68] sm:$0xff] %vm522, %v2524
      %2598 = vst.msk [vmem:[%s285 + $0x70] sm:$0xff] %vm522, %v2525
      %2599 = vst.msk [vmem:[%s285 + $0x78] sm:$0xff] %vm522, %v2526
      %2600 = vst.msk [vmem:[%s285 + $0x80] sm:$0xff] %vm522, %v2527
      %2601 = vst.msk [vmem:[%s285 + $0x88] sm:$0xff] %vm522, %v2528
      %2602 = vst.msk [vmem:[%s285 + $0x90] sm:$0xff] %vm522, %v2529
      %2603 = vst.msk [vmem:[%s285 + $0x98] sm:$0xff] %vm522, %v2530
      %2604 = vst.msk [vmem:[%s285 + $0xa0] sm:$0xff] %vm522, %v2531
      %2605 = vst.msk [vmem:[%s285 + $0xa8] sm:$0xff] %vm522, %v2532
      %2606 = vst.msk [vmem:[%s285 + $0xb0] sm:$0xff] %vm522, %v2533
      %2607 = vst.msk [vmem:[%s285 + $0xb8] sm:$0xff] %vm522, %v2534
      %2608 = vst.msk [vmem:[%s285 + $0xc0] sm:$0xff] %vm522, %v2535
      %2609 = vst.msk [vmem:[%s285 + $0xc8] sm:$0xff] %vm522, %v2536
      %2610 = vst.msk [vmem:[%s285 + $0xd0] sm:$0xff] %vm522, %v2537
      %2611 = vst.msk [vmem:[%s285 + $0xd8] sm:$0xff] %vm522, %v2538
      %2612 = vst.msk [vmem:[%s285 + $0xe0] sm:$0xff] %vm522, %v2539
      %2613 = vst.msk [vmem:[%s285 + $0xe8] sm:$0xff] %vm522, %v2540
      %2614 = vst.msk [vmem:[%s285 + $0xf0] sm:$0xff] %vm522, %v2541
      %2615 = vst.msk [vmem:[%s285 + $0xf8] sm:$0xff] %vm522, %v2542
      %2616 = vst.msk [vmem:[%s285 + $0x100] sm:$0xff] %vm522, %v2543
      %2617 = vst.msk [vmem:[%s285 + $0x108] sm:$0xff] %vm522, %v2544
      %2618 = vst.msk [vmem:[%s285 + $0x110] sm:$0xff] %vm522, %v2545
      %2619 = vst.msk [vmem:[%s285 + $0x118] sm:$0xff] %vm522, %v2546
      %2620 = vst.msk [vmem:[%s285 + $0x120] sm:$0xff] %vm522, %v2547
      %2621 = vst.msk [vmem:[%s285 + $0x128] sm:$0xff] %vm522, %v2548
      %2622 = vst.msk [vmem:[%s285 + $0x130] sm:$0xff] %vm522, %v2549
      %2623 = vst.msk [vmem:[%s285 + $0x138] sm:$0xff] %vm522, %v2550
      %2624 = vst.msk [vmem:[%s285 + $0x140] sm:$0xff] %vm522, %v2551
      %2625 = vst.msk [vmem:[%s285 + $0x148] sm:$0xff] %vm522, %v2552
      %2626 = vst.msk [vmem:[%s285 + $0x150] sm:$0xff] %vm522, %v2553
      %2627 = vst.msk [vmem:[%s285 + $0x158] sm:$0xff] %vm522, %v2554
      %2628 = vst.msk [vmem:[%s285 + $0x160] sm:$0xff] %vm522, %v2555
      %2629 = vst.msk [vmem:[%s285 + $0x168] sm:$0xff] %vm522, %v2556
      %2630 = vst.msk [vmem:[%s285 + $0x170] sm:$0xff] %vm522, %v2557
      %2631 = vst.msk [vmem:[%s285 + $0x178] sm:$0xff] %vm522, %v2558
      %2632 = vst.msk [vmem:[%s285 + $0x180] sm:$0xff] %vm522, %v2559
      %2633 = vst.msk [vmem:[%s285 + $0x188] sm:$0xff] %vm522, %v2560
      %2634 = vst.msk [vmem:[%s285 + $0x190] sm:$0xff] %vm522, %v2561
      %2635 = vst.msk [vmem:[%s285 + $0x198] sm:$0xff] %vm522, %v2562
      %2636 = vst.msk [vmem:[%s285 + $0x1a0] sm:$0xff] %vm522, %v2563
      %2637 = vst.msk [vmem:[%s285 + $0x1a8] sm:$0xff] %vm522, %v2564
      %2638 = vst.msk [vmem:[%s285 + $0x1b0] sm:$0xff] %vm522, %v2565
      %2639 = vst.msk [vmem:[%s285 + $0x1b8] sm:$0xff] %vm522, %v2566
      %2640 = vst.msk [vmem:[%s285 + $0x1c0] sm:$0xff] %vm522, %v2567
      %2641 = vst.msk [vmem:[%s285 + $0x1c8] sm:$0xff] %vm522, %v2568
      %2642 = vst.msk [vmem:[%s285 + $0x1d0] sm:$0xff] %vm522, %v2569
      %2643 = vst.msk [vmem:[%s285 + $0x1d8] sm:$0xff] %vm522, %v2570
      %2644 = vst.msk [vmem:[%s285 + $0x1e0] sm:$0xff] %vm522, %v2571
      %2645 = vst.msk [vmem:[%s285 + $0x1e8] sm:$0xff] %vm522, %v2572
      %2646 = vst.msk [vmem:[%s285 + $0x1f0] sm:$0xff] %vm522, %v2573
      %2647 = vst.msk [vmem:[%s285 + $0x1f8] sm:$0xff] %vm522, %v2574
      %2648 = vst.msk [vmem:[%s285 + $0x200] sm:$0xff] %vm522, %v2575
      %2649 = vst.msk [vmem:[%s285 + $0x208] sm:$0xff] %vm522, %v2576
      %2650 = vst.msk [vmem:[%s285 + $0x210] sm:$0xff] %vm522, %v2577
      %2651 = vst.msk [vmem:[%s285 + $0x218] sm:$0xff] %vm522, %v2578
      %2652 = vst.msk [vmem:[%s285 + $0x220] sm:$0xff] %vm522, %v2579
      %2653 = vst.msk [vmem:[%s285 + $0x228] sm:$0xff] %vm522, %v2580
      %2654 = vst.msk [vmem:[%s285 + $0x230] sm:$0xff] %vm522, %v2581
      %2655 = vst.msk [vmem:[%s285 + $0x238] sm:$0xff] %vm522, %v2582
      %2656 = vst.msk [vmem:[%s285 + $0x240] sm:$0xff] %vm522, %v2583
      %p2657 = scmp.lt.s32.totalorder %s19, 1
      %s2658 = scalar_select %p2657, %s19, 1
      %p2659 = scmp.lt.s32.totalorder %s20, 0
      %s2660 = scalar_select %p2659, %s20, 0
      %s2661 = smul.addr %s2658, 73
      %s2662 = sadd.s32 %s2660, %s2661
      %s2663 = smul.addr %s2662, 8
      %s2664 = scalar_lea.vmem %s4, %s2663
      // Predicated region
      $region41: #{image_rearrangement_forward.5} parent=35 // pred_check
        %p2665 = pneg %p153
      $region42: #{image_rearrangement_forward.5} parent=35 // pred_check_branch
        %2667 = sbr.rel (%p2665) target = $region44
      $region43: #{image_rearrangement_forward.5} parent=35 // pred_region
        _
      $region44: #{image_rearrangement_forward.5} parent=35 // pred_fallthru
        _
    $region36: #{image_rearrangement_forward.5} parent=5 // pred_fallthru
      _
    %p2668 = scmp.le.s32.totalorder 2, %s10
    // Predicated region
    $region45: #{image_rearrangement_forward.5} parent=5 // pred_check
      %p2669 = pneg %p2668
    $region46: #{image_rearrangement_forward.5} parent=5 // pred_check_branch
      %2671 = sbr.rel (%p2669) target = $region48
    $region47: #{image_rearrangement_forward.5} parent=5 // pred_region
      %s2672 = ssub.s32 %s10, 2
      // Predicated region
      $region49: #{image_rearrangement_forward.5} parent=47 // pred_check
        %p2673 = pneg %p159
      $region50: #{image_rearrangement_forward.5} parent=47 // pred_check_branch
        %2675 = sbr.rel (%p2673) target = $region52
      $region51: #{image_rearrangement_forward.5} parent=47 // pred_region
        %p2676 = scmp.lt.s32.totalorder %s21, 1
        %s2677 = scalar_select %p2676, %s21, 1
        %p2678 = scmp.lt.s32.totalorder %s22, 0
        %s2679 = scalar_select %p2678, %s22, 0
        %s2680 = smul.addr %s2677, 73
        %s2681 = sadd.s32 %s2679, %s2680
        %s2682 = smul.addr %s2681, 8
        %s2683 = scalar_lea.vmem %s4, %s2682
      $region52: #{image_rearrangement_forward.5} parent=47 // pred_fallthru
        _
    $region48: #{image_rearrangement_forward.5} parent=5 // pred_fallthru
      _
  $region6: #{image_rearrangement_forward.5} parent=0 // loop_footer
    %s14 = sadd.s32 1, %s10
  $region7: #{image_rearrangement_forward.5} parent=0 // loop_footer_branch
    %9 = sbr.rel target = $region3
  $region8: #{image_rearrangement_forward.5} parent=0 // loop_exit
    _

</llo_original>
